<compile_context>
chip_gen: v7x
topology: tpu7x:2x2x1
jax: 0.10.0
libtpu: 0.0.40
codegen_flags: <defaults>
</compile_context>

<pallas_src>
import jax
import jax.numpy as jnp
from jax.experimental import pallas as pl
from jax.experimental.pallas import tpu as pltpu


def _zseq_decoder_kernel(beta_ref, w1_ref, b1_ref, w2_ref, b2_ref, out_ref):
    """Single-shot fused MLP: everything is VMEM-resident, one kernel body."""
    # fc1: bf16 x bf16 on the MXU, f32 accumulation; bias + ReLU in f32 (VPU).
    h = jnp.dot(
        beta_ref[...].astype(jnp.bfloat16),
        w1_ref[...],
        preferred_element_type=jnp.float32,
    )
    h = jnp.maximum(h + b1_ref[...], 0.0)

    # fc2: cast activations to bf16 for the MXU, keep f32 accumulation.
    out = jnp.dot(
        h.astype(jnp.bfloat16),
        w2_ref[...],
        preferred_element_type=jnp.float32,
    )
    out_ref[...] = (out + b2_ref[...]).astype(out_ref.dtype)


def zseq_decoder_forward(beta, w1, b1, w2, b2, pred_z_steps, z_dim):
    """beta: (B, beta_dim); w1: (beta_dim, H); b1: (H,); w2: (H, out); b2: (out,)."""
    B, beta_dim = beta.shape
    H = w1.shape[1]
    out_dim = w2.shape[1]
    assert out_dim == pred_z_steps * z_dim

    # Weight storage / DMA dtype = bf16 (halves HBM traffic); math accumulates f32.
    w1_bf = w1.astype(jnp.bfloat16)
    w2_bf = w2.astype(jnp.bfloat16)
    b1_2d = b1.reshape(1, H).astype(jnp.float32)
    b2_2d = b2.reshape(1, out_dim).astype(jnp.float32)

    # Pad batch to a sublane multiple (8): unmasked full-vreg loads/stores.
    B_pad = max(8, ((B + 7) // 8) * 8)
    beta_pad = jnp.zeros((B_pad, beta_dim), beta.dtype).at[:B].set(beta)

    # No grid: one kernel invocation, whole arrays resident in VMEM.
    # VMEM footprint: beta 1 KiB + W1 256 KiB + b1 16 KiB + W2 1 MiB + b2 0.5 KiB
    # + out 4 KiB + h (8x4096 f32) 128 KiB  ->  well under every VMEM budget.
    vmem_specs = [
        pl.BlockSpec(memory_space=pltpu.MemorySpace.VMEM) for _ in range(5)
    ]

    out_flat = pl.pallas_call(
        _zseq_decoder_kernel,
        out_shape=jax.ShapeDtypeStruct((B_pad, out_dim), beta.dtype),
        in_specs=vmem_specs,
        out_specs=pl.BlockSpec(memory_space=pltpu.MemorySpace.VMEM),
    )(beta_pad, w1_bf, b1_2d, w2_bf, b2_2d)

    # Glue: drop batch padding and view as (B, pred_z_steps, z_dim).
    return out_flat[:B].reshape(B, pred_z_steps, z_dim)


def _reference_matched(beta, w1_bf, b1, w2_bf, b2, pred_z_steps, z_dim):
    """Pure-JAX reference with the same precision policy as the kernel
    (bf16 weight/activation storage for the dots, f32 accumulation)."""
    hp = jax.lax.Precision.HIGHEST
    h = jnp.maximum(
        jnp.dot(beta.astype(jnp.bfloat16).astype(jnp.float32),
                w1_bf.astype(jnp.float32), precision=hp) + b1,
        0.0,
    )
    x = jnp.dot(h.astype(jnp.bfloat16).astype(jnp.float32),
                w2_bf.astype(jnp.float32), precision=hp) + b2
    return x.reshape(beta.shape[0], pred_z_steps, z_dim)


def _reference_f32(beta, w1, b1, w2, b2, pred_z_steps, z_dim):
    """Original full-f32 forward (module semantics)."""
    hp = jax.lax.Precision.HIGHEST
    h = jnp.maximum(jnp.dot(beta, w1, precision=hp) + b1, 0.0)
    x = jnp.dot(h, w2, precision=hp) + b2
    return x.reshape(beta.shape[0], pred_z_steps, z_dim)


if __name__ == "__main__":
    # Small shapes consistent with the module's forward.
    B = 2
    beta_dim = 32
    z_dim = 16
    pred_z_steps = 8
    hidden_dim = 4096
    out_dim = pred_z_steps * z_dim

    key = jax.random.PRNGKey(0)
    k_beta, k_w1, k_b1, k_w2, k_b2 = jax.random.split(key, 5)

    beta = jax.random.normal(k_beta, (B, beta_dim), dtype=jnp.float32)
    # Deterministic synthetic parameters (fan-in scaled, like nn.Linear's default range).
    w1 = jax.random.uniform(k_w1, (beta_dim, hidden_dim), jnp.float32,
                            -1.0, 1.0) / jnp.sqrt(beta_dim)
    b1 = jax.random.uniform(k_b1, (hidden_dim,), jnp.float32,
                            -1.0, 1.0) / jnp.sqrt(beta_dim)
    w2 = jax.random.uniform(k_w2, (hidden_dim, out_dim), jnp.float32,
                            -1.0, 1.0) / jnp.sqrt(hidden_dim)
    b2 = jax.random.uniform(k_b2, (out_dim,), jnp.float32,
                            -1.0, 1.0) / jnp.sqrt(hidden_dim)

    pred_z_seq = zseq_decoder_forward(beta, w1, b1, w2, b2, pred_z_steps, z_dim)
    pred_z_seq = jax.block_until_ready(pred_z_seq)
    assert pred_z_seq.shape == (B, pred_z_steps, z_dim)

    # Tight check against a precision-matched reference (validates the kernel).
    ref_m = _reference_matched(beta, w1.astype(jnp.bfloat16), b1,
                               w2.astype(jnp.bfloat16), b2, pred_z_steps, z_dim)
    assert jnp.allclose(pred_z_seq, ref_m, atol=1e-3, rtol=1e-3)

    # Loose check against the original f32 forward (bf16 weight quantization only).
    ref_f = _reference_f32(beta, w1, b1, w2, b2, pred_z_steps, z_dim)
    assert jnp.allclose(pred_z_seq, ref_f, atol=3e-2, rtol=3e-2)

    print("KERNEL_OK")
</pallas_src>

<mosaic_0001>
module attributes {stable_mosaic.version = 11 : i64} {
  func.func @_zseq_decoder_kernel(%arg0: memref<8x32xf32, #tpu.memory_space<vmem>>, %arg1: memref<32x4096xbf16, #tpu.memory_space<vmem>>, %arg2: memref<1x4096xf32, #tpu.memory_space<vmem>>, %arg3: memref<4096x128xbf16, #tpu.memory_space<vmem>>, %arg4: memref<1x128xf32, #tpu.memory_space<vmem>>, %arg5: memref<8x128xf32, #tpu.memory_space<vmem>>) attributes {dimension_semantics = [], scalar_prefetch = 0 : i64, scratch_operands = 0 : i64, tpu.core_type = #tpu.core_type<tc>} {
    %c0 = arith.constant 0 : index
    %c0_0 = arith.constant 0 : index
    %0 = vector.load %arg0[%c0, %c0_0] : memref<8x32xf32, #tpu.memory_space<vmem>>, vector<8x32xf32>
    %1 = arith.truncf %0 : vector<8x32xf32> to vector<8x32xbf16>
    %c0_1 = arith.constant 0 : index
    %c0_2 = arith.constant 0 : index
    %2 = vector.load %arg1[%c0_1, %c0_2] : memref<32x4096xbf16, #tpu.memory_space<vmem>>, vector<32x4096xbf16>
    %cst = arith.constant dense<0.000000e+00> : vector<8x4096xf32>
    %3 = tpu.matmul %1, %2, %cst {dimension_numbers = #tpu.dot_dimension_numbers<[1], [0], [0], [1], [0, 0, 1, 1], [], []>} : vector<8x32xbf16>, vector<32x4096xbf16>, vector<8x4096xf32> -> vector<8x4096xf32>
    %c0_3 = arith.constant 0 : index
    %c0_4 = arith.constant 0 : index
    %4 = vector.load %arg2[%c0_3, %c0_4] : memref<1x4096xf32, #tpu.memory_space<vmem>>, vector<1x4096xf32>
    %5 = vector.broadcast %4 : vector<1x4096xf32> to vector<8x4096xf32>
    %6 = arith.addf %3, %5 : vector<8x4096xf32>
    %cst_5 = arith.constant 0.000000e+00 : f32
    %7 = vector.broadcast %cst_5 : f32 to vector<8x4096xf32>
    %8 = arith.maximumf %6, %7 : vector<8x4096xf32>
    %9 = arith.truncf %8 : vector<8x4096xf32> to vector<8x4096xbf16>
    %c0_6 = arith.constant 0 : index
    %c0_7 = arith.constant 0 : index
    %10 = vector.load %arg3[%c0_6, %c0_7] : memref<4096x128xbf16, #tpu.memory_space<vmem>>, vector<4096x128xbf16>
    %cst_8 = arith.constant dense<0.000000e+00> : vector<8x128xf32>
    %11 = tpu.matmul %9, %10, %cst_8 {dimension_numbers = #tpu.dot_dimension_numbers<[1], [0], [0], [1], [0, 0, 1, 1], [], []>} : vector<8x4096xbf16>, vector<4096x128xbf16>, vector<8x128xf32> -> vector<8x128xf32>
    %c0_9 = arith.constant 0 : index
    %c0_10 = arith.constant 0 : index
    %12 = vector.load %arg4[%c0_9, %c0_10] : memref<1x128xf32, #tpu.memory_space<vmem>>, vector<1x128xf32>
    %13 = vector.broadcast %12 : vector<1x128xf32> to vector<8x128xf32>
    %14 = arith.addf %11, %13 : vector<8x128xf32>
    %c0_11 = arith.constant 0 : index
    %c0_12 = arith.constant 0 : index
    %15 = vector.load %arg5[%c0_11, %c0_12] : memref<8x128xf32, #tpu.memory_space<vmem>>, vector<8x128xf32>
    tpu.vector_store %arg5[%c0_11, %c0_12], %14 {strides = array<i32>} : memref<8x128xf32, #tpu.memory_space<vmem>>, vector<8x128xf32>,
    return
  }
}

</mosaic_0001>

<llo_original>
// kernel: tpu_custom_call.1
$region0: #{tpu_custom_call.1}
  #allocation0 [shape = 'u32[]', space=smem, size = 0x4, offset = 0x4, fixed_abs, tag = 'smem constant byte address 0x4 - core index']
  #allocation1 [shape = 'u32[144,128]{1,0:T(1,128)}', space=vmem, size = 0x12000, scoped, tag = 'internal scratch']
  %s0 = inlined_call_operand.hbm [shape: f32[8,32], index: 0, kind: input, shape index: {}]
  %s1 = inlined_call_operand.hbm [shape: bf16[32,4096], index: 1, kind: input, shape index: {}]
  %s2 = inlined_call_operand.hbm [shape: f32[1,4096], index: 2, kind: input, shape index: {}]
  %s3 = inlined_call_operand.hbm [shape: bf16[4096,128], index: 3, kind: input, shape index: {}]
  %s4 = inlined_call_operand.vmem [shape: f32[1,128], index: 4, kind: input, shape index: {}]
  %s5 = inlined_call_operand.hbm [shape: f32[8,128], index: 5, kind: output, shape index: {}]
  %s6 = sld [smem:[#allocation0]]
  $region46: #{tpu_custom_call.1} parent=0
    _
  %s8 = ssub.s32 1, %s6
  %s9 = scalar_select 0, %s8, %s6
  $region1: #{tpu_custom_call.1} parent=0
    #allocation2 [shape = 'u8[4096]{0}', space=vmem, size = 0x1000, scoped, tag = 'input window, operand 0, single buffered']
    #allocation3 [shape = 's32[1]{0}', space=sflag, size = 0x4, scoped, tag = 'scoped memory for tpu_custom_call.1']
    #allocation4 [shape = 's32[1]{0}', space=sflag, size = 0x4, scoped, tag = 'scoped memory for tpu_custom_call.1']
    #allocation5 [shape = 'u8[262144]{0}', space=vmem, size = 0x40000, scoped, tag = 'input window, operand 1, single buffered']
    #allocation6 [shape = 's32[1]{0}', space=sflag, size = 0x4, scoped, tag = 'scoped memory for tpu_custom_call.1']
    #allocation7 [shape = 'u8[16384]{0}', space=vmem, size = 0x4000, scoped, tag = 'input window, operand 2, single buffered']
    #allocation8 [shape = 'u8[1048576]{0}', space=vmem, size = 0x100000, scoped, tag = 'input window, operand 3, single buffered']
    #allocation9 [shape = 's32[1]{0}', space=sflag, size = 0x4, scoped, tag = 'scoped memory for tpu_custom_call.1']
    #allocation10 [shape = 'u8[4096]{0}', space=vmem, size = 0x1000, scoped, tag = 'output window, operand 0, single buffered']
    %10 = vsyncpa [#allocation3], 0
    %11 = vsyncpa [#allocation6], 0
    %12 = vsyncpa [#allocation9], 0
    %13 = vsyncpa [#allocation4], 0
    // Predicated region
    $region2: #{tpu_custom_call.1} parent=1 // pred_check
      _
    $region3: #{tpu_custom_call.1} parent=1 // pred_check_branch
      %15 = sbr.rel (0) target = $region5
    $region4: #{tpu_custom_call.1} parent=1 // pred_region
      %s17 = ssub.s32 128, 128
      %18 = vsyncadd [#allocation3], %s17
      %s20 = sshll.u32 [#allocation2], 4
      %s21 = int_to_ptr.vmem [resolvable:$true] %s20
      %23 = dma.hbm_to_vmem [thread:$0]  %s0, 128, %s21, [#allocation3]
    $region5: #{tpu_custom_call.1} parent=1 // pred_fallthru
      _
    // Predicated region
    $region6: #{tpu_custom_call.1} parent=1 // pred_check
      _
    $region7: #{tpu_custom_call.1} parent=1 // pred_check_branch
      %25 = sbr.rel (0) target = $region9
    $region8: #{tpu_custom_call.1} parent=1 // pred_region
      %s27 = ssub.s32 8192, 8192
      %28 = vsyncadd [#allocation6], %s27
      %s29 = sshll.u32 [#allocation5], 4
      %s30 = int_to_ptr.vmem [resolvable:$true] %s29
      %35 = dma.hbm_to_vmem [thread:$0]  %s1, 8192, %s30, [#allocation6], 2048, 2048, 128
    $region9: #{tpu_custom_call.1} parent=1 // pred_fallthru
      _
    // Predicated region
    $region10: #{tpu_custom_call.1} parent=1 // pred_check
      _
    $region11: #{tpu_custom_call.1} parent=1 // pred_check_branch
      %37 = sbr.rel (0) target = $region13
    $region12: #{tpu_custom_call.1} parent=1 // pred_region
      %s39 = ssub.s32 512, 512
      %40 = vsyncadd [#allocation6], %s39
      %s42 = sshll.u32 [#allocation7], 4
      %s43 = int_to_ptr.vmem [resolvable:$true] %s42
      %45 = dma.hbm_to_vmem [thread:$0]  %s2, 512, %s43, [#allocation6]
    $region13: #{tpu_custom_call.1} parent=1 // pred_fallthru
      _
    // Predicated region
    $region14: #{tpu_custom_call.1} parent=1 // pred_check
      _
    $region15: #{tpu_custom_call.1} parent=1 // pred_check_branch
      %47 = sbr.rel (0) target = $region17
    $region16: #{tpu_custom_call.1} parent=1 // pred_region
      %s49 = ssub.s32 32768, 32768
      %50 = vsyncadd [#allocation9], %s49
      %s51 = sshll.u32 [#allocation8], 4
      %s52 = int_to_ptr.vmem [resolvable:$true] %s51
      %57 = dma.hbm_to_vmem [thread:$0]  %s3, 32768, %s52, [#allocation9], 64, 64, 4
    $region17: #{tpu_custom_call.1} parent=1 // pred_fallthru
      _
    // Predicated region
    $region18: #{tpu_custom_call.1} parent=1 // pred_check
      _
    $region19: #{tpu_custom_call.1} parent=1 // pred_check_branch
      %59 = sbr.rel (0) target = $region21
    $region20: #{tpu_custom_call.1} parent=1 // pred_region
      _
    $region21: #{tpu_custom_call.1} parent=1 // pred_fallthru
      _
    // Predicated region
    $region22: #{tpu_custom_call.1} parent=1 // pred_check
      _
    $region23: #{tpu_custom_call.1} parent=1 // pred_check_branch
      %61 = sbr.rel (0) target = $region25
    $region24: #{tpu_custom_call.1} parent=1 // pred_region
      %62 = dma.done [#allocation3], 128
    $region25: #{tpu_custom_call.1} parent=1 // pred_fallthru
      _
    // Predicated region
    $region26: #{tpu_custom_call.1} parent=1 // pred_check
      _
    $region27: #{tpu_custom_call.1} parent=1 // pred_check_branch
      %64 = sbr.rel (0) target = $region29
    $region28: #{tpu_custom_call.1} parent=1 // pred_region
      %65 = dma.done [#allocation6], 8192
    $region29: #{tpu_custom_call.1} parent=1 // pred_fallthru
      _
    // Predicated region
    $region30: #{tpu_custom_call.1} parent=1 // pred_check
      _
    $region31: #{tpu_custom_call.1} parent=1 // pred_check_branch
      %67 = sbr.rel (0) target = $region33
    $region32: #{tpu_custom_call.1} parent=1 // pred_region
      %68 = dma.done [#allocation6], 512
    $region33: #{tpu_custom_call.1} parent=1 // pred_fallthru
      _
    // Predicated region
    $region34: #{tpu_custom_call.1} parent=1 // pred_check
      _
    $region35: #{tpu_custom_call.1} parent=1 // pred_check_branch
      %70 = sbr.rel (0) target = $region37
    $region36: #{tpu_custom_call.1} parent=1 // pred_region
      %71 = dma.done [#allocation9], 32768
    $region37: #{tpu_custom_call.1} parent=1 // pred_fallthru
      _
    %v73 = vld [vmem:[#allocation2] sm:$0xff]
    %v74 = vpack.c.bf16 %v73, %v73
    %v75 = vld [vmem:[#allocation5] sm:$0xff]
    %v76 = vld [vmem:[#allocation5 + $0x8] sm:$0xff]
    %v77 = vld [vmem:[#allocation5 + $0x10] sm:$0xff]
    %v78 = vld [vmem:[#allocation5 + $0x18] sm:$0xff]
    %v79 = vld [vmem:[#allocation5 + $0x20] sm:$0xff]
    %v80 = vld [vmem:[#allocation5 + $0x28] sm:$0xff]
    %v81 = vld [vmem:[#allocation5 + $0x30] sm:$0xff]
    %v82 = vld [vmem:[#allocation5 + $0x38] sm:$0xff]
    %v83 = vld [vmem:[#allocation5 + $0x40] sm:$0xff]
    %v84 = vld [vmem:[#allocation5 + $0x48] sm:$0xff]
    %v85 = vld [vmem:[#allocation5 + $0x50] sm:$0xff]
    %v86 = vld [vmem:[#allocation5 + $0x58] sm:$0xff]
    %v87 = vld [vmem:[#allocation5 + $0x60] sm:$0xff]
    %v88 = vld [vmem:[#allocation5 + $0x68] sm:$0xff]
    %v89 = vld [vmem:[#allocation5 + $0x70] sm:$0xff]
    %v90 = vld [vmem:[#allocation5 + $0x78] sm:$0xff]
    %v91 = vld [vmem:[#allocation5 + $0x80] sm:$0xff]
    %v92 = vld [vmem:[#allocation5 + $0x88] sm:$0xff]
    %v93 = vld [vmem:[#allocation5 + $0x90] sm:$0xff]
    %v94 = vld [vmem:[#allocation5 + $0x98] sm:$0xff]
    %v95 = vld [vmem:[#allocation5 + $0xa0] sm:$0xff]
    %v96 = vld [vmem:[#allocation5 + $0xa8] sm:$0xff]
    %v97 = vld [vmem:[#allocation5 + $0xb0] sm:$0xff]
    %v98 = vld [vmem:[#allocation5 + $0xb8] sm:$0xff]
    %v99 = vld [vmem:[#allocation5 + $0xc0] sm:$0xff]
    %v100 = vld [vmem:[#allocation5 + $0xc8] sm:$0xff]
    %v101 = vld [vmem:[#allocation5 + $0xd0] sm:$0xff]
    %v102 = vld [vmem:[#allocation5 + $0xd8] sm:$0xff]
    %v103 = vld [vmem:[#allocation5 + $0xe0] sm:$0xff]
    %v104 = vld [vmem:[#allocation5 + $0xe8] sm:$0xff]
    %v105 = vld [vmem:[#allocation5 + $0xf0] sm:$0xff]
    %v106 = vld [vmem:[#allocation5 + $0xf8] sm:$0xff]
    %v107 = vld [vmem:[#allocation5 + $0x100] sm:$0xff]
    %v108 = vld [vmem:[#allocation5 + $0x108] sm:$0xff]
    %v109 = vld [vmem:[#allocation5 + $0x110] sm:$0xff]
    %v110 = vld [vmem:[#allocation5 + $0x118] sm:$0xff]
    %v111 = vld [vmem:[#allocation5 + $0x120] sm:$0xff]
    %v112 = vld [vmem:[#allocation5 + $0x128] sm:$0xff]
    %v113 = vld [vmem:[#allocation5 + $0x130] sm:$0xff]
    %v114 = vld [vmem:[#allocation5 + $0x138] sm:$0xff]
    %v115 = vld [vmem:[#allocation5 + $0x140] sm:$0xff]
    %v116 = vld [vmem:[#allocation5 + $0x148] sm:$0xff]
    %v117 = vld [vmem:[#allocation5 + $0x150] sm:$0xff]
    %v118 = vld [vmem:[#allocation5 + $0x158] sm:$0xff]
    %v119 = vld [vmem:[#allocation5 + $0x160] sm:$0xff]
    %v120 = vld [vmem:[#allocation5 + $0x168] sm:$0xff]
    %v121 = vld [vmem:[#allocation5 + $0x170] sm:$0xff]
    %v122 = vld [vmem:[#allocation5 + $0x178] sm:$0xff]
    %v123 = vld [vmem:[#allocation5 + $0x180] sm:$0xff]
    %v124 = vld [vmem:[#allocation5 + $0x188] sm:$0xff]
    %v125 = vld [vmem:[#allocation5 + $0x190] sm:$0xff]
    %v126 = vld [vmem:[#allocation5 + $0x198] sm:$0xff]
    %v127 = vld [vmem:[#allocation5 + $0x1a0] sm:$0xff]
    %v128 = vld [vmem:[#allocation5 + $0x1a8] sm:$0xff]
    %v129 = vld [vmem:[#allocation5 + $0x1b0] sm:$0xff]
    %v130 = vld [vmem:[#allocation5 + $0x1b8] sm:$0xff]
    %v131 = vld [vmem:[#allocation5 + $0x1c0] sm:$0xff]
    %v132 = vld [vmem:[#allocation5 + $0x1c8] sm:$0xff]
    %v133 = vld [vmem:[#allocation5 + $0x1d0] sm:$0xff]
    %v134 = vld [vmem:[#allocation5 + $0x1d8] sm:$0xff]
    %v135 = vld [vmem:[#allocation5 + $0x1e0] sm:$0xff]
    %v136 = vld [vmem:[#allocation5 + $0x1e8] sm:$0xff]
    %v137 = vld [vmem:[#allocation5 + $0x1f0] sm:$0xff]
    %v138 = vld [vmem:[#allocation5 + $0x1f8] sm:$0xff]
    %v139 = vld [vmem:[#allocation7] sm:$0xff]
    %v140 = vld [vmem:[#allocation7 + $0x8] sm:$0xff]
    %v141 = vld [vmem:[#allocation7 + $0x10] sm:$0xff]
    %v142 = vld [vmem:[#allocation7 + $0x18] sm:$0xff]
    %v147 = vlaneseq
    %v148 = vshrl.u32 %v147, 7
    %v149 = vsub.s32 0, %v148
    %v150 = vrot.slane %v139, %v149
    %v151 = vlaneseq
    %v152 = vshrl.u32 %v151, 7
    %v153 = vsub.s32 1, %v152
    %v154 = vrot.slane %v139, %v153
    %v155 = vlaneseq
    %v156 = vshrl.u32 %v155, 7
    %v157 = vsub.s32 2, %v156
    %v158 = vrot.slane %v139, %v157
    %v159 = vlaneseq
    %v160 = vshrl.u32 %v159, 7
    %v161 = vsub.s32 3, %v160
    %v162 = vrot.slane %v139, %v161
    %v163 = vlaneseq
    %v164 = vshrl.u32 %v163, 7
    %v165 = vsub.s32 4, %v164
    %v166 = vrot.slane %v139, %v165
    %v167 = vlaneseq
    %v168 = vshrl.u32 %v167, 7
    %v169 = vsub.s32 5, %v168
    %v170 = vrot.slane %v139, %v169
    %v171 = vlaneseq
    %v172 = vshrl.u32 %v171, 7
    %v173 = vsub.s32 6, %v172
    %v174 = vrot.slane %v139, %v173
    %v175 = vlaneseq
    %v176 = vshrl.u32 %v175, 7
    %v177 = vsub.s32 7, %v176
    %v178 = vrot.slane %v139, %v177
    %v179 = vlaneseq
    %v180 = vshrl.u32 %v179, 7
    %v181 = vsub.s32 0, %v180
    %v182 = vrot.slane %v140, %v181
    %v183 = vlaneseq
    %v184 = vshrl.u32 %v183, 7
    %v185 = vsub.s32 1, %v184
    %v186 = vrot.slane %v140, %v185
    %v187 = vlaneseq
    %v188 = vshrl.u32 %v187, 7
    %v189 = vsub.s32 2, %v188
    %v190 = vrot.slane %v140, %v189
    %v191 = vlaneseq
    %v192 = vshrl.u32 %v191, 7
    %v193 = vsub.s32 3, %v192
    %v194 = vrot.slane %v140, %v193
    %v195 = vlaneseq
    %v196 = vshrl.u32 %v195, 7
    %v197 = vsub.s32 4, %v196
    %v198 = vrot.slane %v140, %v197
    %v199 = vlaneseq
    %v200 = vshrl.u32 %v199, 7
    %v201 = vsub.s32 5, %v200
    %v202 = vrot.slane %v140, %v201
    %v203 = vlaneseq
    %v204 = vshrl.u32 %v203, 7
    %v205 = vsub.s32 6, %v204
    %v206 = vrot.slane %v140, %v205
    %v207 = vlaneseq
    %v208 = vshrl.u32 %v207, 7
    %v209 = vsub.s32 7, %v208
    %v210 = vrot.slane %v140, %v209
    %v211 = vlaneseq
    %v212 = vshrl.u32 %v211, 7
    %v213 = vsub.s32 0, %v212
    %v214 = vrot.slane %v141, %v213
    %v215 = vlaneseq
    %v216 = vshrl.u32 %v215, 7
    %v217 = vsub.s32 1, %v216
    %v218 = vrot.slane %v141, %v217
    %v219 = vlaneseq
    %v220 = vshrl.u32 %v219, 7
    %v221 = vsub.s32 2, %v220
    %v222 = vrot.slane %v141, %v221
    %v223 = vlaneseq
    %v224 = vshrl.u32 %v223, 7
    %v225 = vsub.s32 3, %v224
    %v226 = vrot.slane %v141, %v225
    %v227 = vlaneseq
    %v228 = vshrl.u32 %v227, 7
    %v229 = vsub.s32 4, %v228
    %v230 = vrot.slane %v141, %v229
    %v231 = vlaneseq
    %v232 = vshrl.u32 %v231, 7
    %v233 = vsub.s32 5, %v232
    %v234 = vrot.slane %v141, %v233
    %v235 = vlaneseq
    %v236 = vshrl.u32 %v235, 7
    %v237 = vsub.s32 6, %v236
    %v238 = vrot.slane %v141, %v237
    %v239 = vlaneseq
    %v240 = vshrl.u32 %v239, 7
    %v241 = vsub.s32 7, %v240
    %v242 = vrot.slane %v141, %v241
    %v243 = vlaneseq
    %v244 = vshrl.u32 %v243, 7
    %v245 = vsub.s32 0, %v244
    %v246 = vrot.slane %v142, %v245
    %v247 = vlaneseq
    %v248 = vshrl.u32 %v247, 7
    %v249 = vsub.s32 1, %v248
    %v250 = vrot.slane %v142, %v249
    %v251 = vlaneseq
    %v252 = vshrl.u32 %v251, 7
    %v253 = vsub.s32 2, %v252
    %v254 = vrot.slane %v142, %v253
    %v255 = vlaneseq
    %v256 = vshrl.u32 %v255, 7
    %v257 = vsub.s32 3, %v256
    %v258 = vrot.slane %v142, %v257
    %v259 = vlaneseq
    %v260 = vshrl.u32 %v259, 7
    %v261 = vsub.s32 4, %v260
    %v262 = vrot.slane %v142, %v261
    %v263 = vlaneseq
    %v264 = vshrl.u32 %v263, 7
    %v265 = vsub.s32 5, %v264
    %v266 = vrot.slane %v142, %v265
    %v267 = vlaneseq
    %v268 = vshrl.u32 %v267, 7
    %v269 = vsub.s32 6, %v268
    %v270 = vrot.slane %v142, %v269
    %v271 = vlaneseq
    %v272 = vshrl.u32 %v271, 7
    %v273 = vsub.s32 7, %v272
    %v274 = vrot.slane %v142, %v273
    %v371 = vunpack.c.l.b16 %v75
    %v372 = vunpack.c.h.b16 %v75
    %v373 = vunpack.c.l.b16 %v76
    %v374 = vunpack.c.h.b16 %v76
    %v375 = vunpack.c.l.b16 %v77
    %v376 = vunpack.c.h.b16 %v77
    %v377 = vunpack.c.l.b16 %v78
    %v378 = vunpack.c.h.b16 %v78
    %v379 = vunpack.c.l.b16 %v79
    %v380 = vunpack.c.h.b16 %v79
    %v381 = vunpack.c.l.b16 %v80
    %v382 = vunpack.c.h.b16 %v80
    %v383 = vunpack.c.l.b16 %v81
    %v384 = vunpack.c.h.b16 %v81
    %v385 = vunpack.c.l.b16 %v82
    %v386 = vunpack.c.h.b16 %v82
    %v387 = vunpack.c.l.b16 %v83
    %v388 = vunpack.c.h.b16 %v83
    %v389 = vunpack.c.l.b16 %v84
    %v390 = vunpack.c.h.b16 %v84
    %v391 = vunpack.c.l.b16 %v85
    %v392 = vunpack.c.h.b16 %v85
    %v393 = vunpack.c.l.b16 %v86
    %v394 = vunpack.c.h.b16 %v86
    %v395 = vunpack.c.l.b16 %v87
    %v396 = vunpack.c.h.b16 %v87
    %v397 = vunpack.c.l.b16 %v88
    %v398 = vunpack.c.h.b16 %v88
    %v399 = vunpack.c.l.b16 %v89
    %v400 = vunpack.c.h.b16 %v89
    %v401 = vunpack.c.l.b16 %v90
    %v402 = vunpack.c.h.b16 %v90
    %v403 = vunpack.c.l.b16 %v91
    %v404 = vunpack.c.h.b16 %v91
    %v405 = vunpack.c.l.b16 %v92
    %v406 = vunpack.c.h.b16 %v92
    %v407 = vunpack.c.l.b16 %v93
    %v408 = vunpack.c.h.b16 %v93
    %v409 = vunpack.c.l.b16 %v94
    %v410 = vunpack.c.h.b16 %v94
    %v411 = vunpack.c.l.b16 %v95
    %v412 = vunpack.c.h.b16 %v95
    %v413 = vunpack.c.l.b16 %v96
    %v414 = vunpack.c.h.b16 %v96
    %v415 = vunpack.c.l.b16 %v97
    %v416 = vunpack.c.h.b16 %v97
    %v417 = vunpack.c.l.b16 %v98
    %v418 = vunpack.c.h.b16 %v98
    %v419 = vunpack.c.l.b16 %v99
    %v420 = vunpack.c.h.b16 %v99
    %v421 = vunpack.c.l.b16 %v100
    %v422 = vunpack.c.h.b16 %v100
    %v423 = vunpack.c.l.b16 %v101
    %v424 = vunpack.c.h.b16 %v101
    %v425 = vunpack.c.l.b16 %v102
    %v426 = vunpack.c.h.b16 %v102
    %v427 = vunpack.c.l.b16 %v103
    %v428 = vunpack.c.h.b16 %v103
    %v429 = vunpack.c.l.b16 %v104
    %v430 = vunpack.c.h.b16 %v104
    %v431 = vunpack.c.l.b16 %v105
    %v432 = vunpack.c.h.b16 %v105
    %v433 = vunpack.c.l.b16 %v106
    %v434 = vunpack.c.h.b16 %v106
    %v435 = vunpack.c.l.b16 %v107
    %v436 = vunpack.c.h.b16 %v107
    %v437 = vunpack.c.l.b16 %v108
    %v438 = vunpack.c.h.b16 %v108
    %v439 = vunpack.c.l.b16 %v109
    %v440 = vunpack.c.h.b16 %v109
    %v441 = vunpack.c.l.b16 %v110
    %v442 = vunpack.c.h.b16 %v110
    %v443 = vunpack.c.l.b16 %v111
    %v444 = vunpack.c.h.b16 %v111
    %v445 = vunpack.c.l.b16 %v112
    %v446 = vunpack.c.h.b16 %v112
    %v447 = vunpack.c.l.b16 %v113
    %v448 = vunpack.c.h.b16 %v113
    %v449 = vunpack.c.l.b16 %v114
    %v450 = vunpack.c.h.b16 %v114
    %v451 = vunpack.c.l.b16 %v115
    %v452 = vunpack.c.h.b16 %v115
    %v453 = vunpack.c.l.b16 %v116
    %v454 = vunpack.c.h.b16 %v116
    %v455 = vunpack.c.l.b16 %v117
    %v456 = vunpack.c.h.b16 %v117
    %v457 = vunpack.c.l.b16 %v118
    %v458 = vunpack.c.h.b16 %v118
    %v459 = vunpack.c.l.b16 %v119
    %v460 = vunpack.c.h.b16 %v119
    %v461 = vunpack.c.l.b16 %v120
    %v462 = vunpack.c.h.b16 %v120
    %v463 = vunpack.c.l.b16 %v121
    %v464 = vunpack.c.h.b16 %v121
    %v465 = vunpack.c.l.b16 %v122
    %v466 = vunpack.c.h.b16 %v122
    %v467 = vunpack.c.l.b16 %v123
    %v468 = vunpack.c.h.b16 %v123
    %v469 = vunpack.c.l.b16 %v124
    %v470 = vunpack.c.h.b16 %v124
    %v471 = vunpack.c.l.b16 %v125
    %v472 = vunpack.c.h.b16 %v125
    %v473 = vunpack.c.l.b16 %v126
    %v474 = vunpack.c.h.b16 %v126
    %v475 = vunpack.c.l.b16 %v127
    %v476 = vunpack.c.h.b16 %v127
    %v477 = vunpack.c.l.b16 %v128
    %v478 = vunpack.c.h.b16 %v128
    %v479 = vunpack.c.l.b16 %v129
    %v480 = vunpack.c.h.b16 %v129
    %v481 = vunpack.c.l.b16 %v130
    %v482 = vunpack.c.h.b16 %v130
    %v483 = vunpack.c.l.b16 %v131
    %v484 = vunpack.c.h.b16 %v131
    %v485 = vunpack.c.l.b16 %v132
    %v486 = vunpack.c.h.b16 %v132
    %v487 = vunpack.c.l.b16 %v133
    %v488 = vunpack.c.h.b16 %v133
    %v489 = vunpack.c.l.b16 %v134
    %v490 = vunpack.c.h.b16 %v134
    %v491 = vunpack.c.l.b16 %v135
    %v492 = vunpack.c.h.b16 %v135
    %v493 = vunpack.c.l.b16 %v136
    %v494 = vunpack.c.h.b16 %v136
    %v495 = vunpack.c.l.b16 %v137
    %v496 = vunpack.c.h.b16 %v137
    %v497 = vunpack.c.l.b16 %v138
    %v498 = vunpack.c.h.b16 %v138
    %v499 = vpack.c.b16 %v403, %v371
    %v500 = vpack.c.b16 %v404, %v372
    %v501 = vpack.c.b16 %v405, %v373
    %v502 = vpack.c.b16 %v406, %v374
    %v503 = vpack.c.b16 %v407, %v375
    %v504 = vpack.c.b16 %v408, %v376
    %v505 = vpack.c.b16 %v409, %v377
    %v506 = vpack.c.b16 %v410, %v378
    %v507 = vpack.c.b16 %v411, %v379
    %v508 = vpack.c.b16 %v412, %v380
    %v509 = vpack.c.b16 %v413, %v381
    %v510 = vpack.c.b16 %v414, %v382
    %v511 = vpack.c.b16 %v415, %v383
    %v512 = vpack.c.b16 %v416, %v384
    %v513 = vpack.c.b16 %v417, %v385
    %v514 = vpack.c.b16 %v418, %v386
    %v515 = vpack.c.b16 %v419, %v387
    %v516 = vpack.c.b16 %v420, %v388
    %v517 = vpack.c.b16 %v421, %v389
    %v518 = vpack.c.b16 %v422, %v390
    %v519 = vpack.c.b16 %v423, %v391
    %v520 = vpack.c.b16 %v424, %v392
    %v521 = vpack.c.b16 %v425, %v393
    %v522 = vpack.c.b16 %v426, %v394
    %v523 = vpack.c.b16 %v427, %v395
    %v524 = vpack.c.b16 %v428, %v396
    %v525 = vpack.c.b16 %v429, %v397
    %v526 = vpack.c.b16 %v430, %v398
    %v527 = vpack.c.b16 %v431, %v399
    %v528 = vpack.c.b16 %v432, %v400
    %v529 = vpack.c.b16 %v433, %v401
    %v530 = vpack.c.b16 %v434, %v402
    %v531 = vpack.c.b16 %v467, %v435
    %v532 = vpack.c.b16 %v468, %v436
    %v533 = vpack.c.b16 %v469, %v437
    %v534 = vpack.c.b16 %v470, %v438
    %v535 = vpack.c.b16 %v471, %v439
    %v536 = vpack.c.b16 %v472, %v440
    %v537 = vpack.c.b16 %v473, %v441
    %v538 = vpack.c.b16 %v474, %v442
    %v539 = vpack.c.b16 %v475, %v443
    %v540 = vpack.c.b16 %v476, %v444
    %v541 = vpack.c.b16 %v477, %v445
    %v542 = vpack.c.b16 %v478, %v446
    %v543 = vpack.c.b16 %v479, %v447
    %v544 = vpack.c.b16 %v480, %v448
    %v545 = vpack.c.b16 %v481, %v449
    %v546 = vpack.c.b16 %v482, %v450
    %v547 = vpack.c.b16 %v483, %v451
    %v548 = vpack.c.b16 %v484, %v452
    %v549 = vpack.c.b16 %v485, %v453
    %v550 = vpack.c.b16 %v486, %v454
    %v551 = vpack.c.b16 %v487, %v455
    %v552 = vpack.c.b16 %v488, %v456
    %v553 = vpack.c.b16 %v489, %v457
    %v554 = vpack.c.b16 %v490, %v458
    %v555 = vpack.c.b16 %v491, %v459
    %v556 = vpack.c.b16 %v492, %v460
    %v557 = vpack.c.b16 %v493, %v461
    %v558 = vpack.c.b16 %v494, %v462
    %v559 = vpack.c.b16 %v495, %v463
    %v560 = vpack.c.b16 %v496, %v464
    %v561 = vpack.c.b16 %v497, %v465
    %v562 = vpack.c.b16 %v498, %v466
    %vm627 = vcmask 261120
    %v629 = vsel %vm627, %v74, 0
    %631 = vmatprep.subr.bf16.mxu0 %v500
    %632 = vmatpush1.bf16.msra.mxu0 %v499
    %633 = vmatprep.subr.bf16.mxu0 %v532
    %634 = vmatpush1.bf16.msra.mxu0 %v531
    %635 = vmatprep.subr.bf16.mxu0 0
    %636 = vmatpush1.bf16.msra.mxu0 0
    %637 = vmatprep.subr.bf16.mxu0 0
    %638 = vmatpush1.bf16.msra.mxu0 0
    %639 = vmatprep.subr.bf16.mxu0 0
    %640 = vmatpush1.bf16.msra.mxu0 0
    %641 = vmatprep.subr.bf16.mxu0 0
    %642 = vmatpush1.bf16.msra.mxu0 0
    %643 = vmatprep.subr.bf16.mxu0 0
    %644 = vmatpush1.bf16.msra.mxu0 0
    %645 = vmatprep.subr.bf16.mxu0 0
    %646 = vmatpush1.bf16.msra.mxu0 0
    %647 = vmatprep.subr.bf16.mxu0 0
    %648 = vmatpush1.bf16.msra.mxu0 0
    %649 = vmatprep.subr.bf16.mxu0 0
    %650 = vmatpush1.bf16.msra.mxu0 0
    %651 = vmatprep.subr.bf16.mxu0 0
    %652 = vmatpush1.bf16.msra.mxu0 0
    %653 = vmatprep.subr.bf16.mxu0 0
    %654 = vmatpush1.bf16.msra.mxu0 0
    %655 = vmatprep.subr.bf16.mxu0 0
    %656 = vmatpush1.bf16.msra.mxu0 0
    %657 = vmatprep.subr.bf16.mxu0 0
    %658 = vmatpush1.bf16.msra.mxu0 0
    %659 = vmatprep.subr.bf16.mxu0 0
    %660 = vmatpush1.bf16.msra.mxu0 0
    %661 = vmatprep.subr.bf16.mxu0 0
    %662 = vmatpush1.bf16.msra.mxu0 0
    %663 = vmatprep.mubr.bf16.mxu0 0
    %664 = vmatmul.mubr.bf16.gmra.mrb[0].mxu0 %v629
    %v665 = vpop.f32.mrb[0].mxu0
    %v666 = vadd.f32 %v150, %v665
    %v667 = vpop.f32.mrb[0].mxu0
    %v668 = vadd.f32 %v154, %v667
    %v669 = vpop.f32.mrb[0].mxu0
    %v670 = vpop.f32.mrb[0].mxu0
    %671 = vdwg.mxu0
    %672 = vmatprep.subr.bf16.mxu0 %v502
    %673 = vmatpush1.bf16.msra.mxu0 %v501
    %674 = vmatprep.subr.bf16.mxu0 %v534
    %675 = vmatpush1.bf16.msra.mxu0 %v533
    %676 = vmatprep.subr.bf16.mxu0 0
    %677 = vmatpush1.bf16.msra.mxu0 0
    %678 = vmatprep.subr.bf16.mxu0 0
    %679 = vmatpush1.bf16.msra.mxu0 0
    %680 = vmatprep.subr.bf16.mxu0 0
    %681 = vmatpush1.bf16.msra.mxu0 0
    %682 = vmatprep.subr.bf16.mxu0 0
    %683 = vmatpush1.bf16.msra.mxu0 0
    %684 = vmatprep.subr.bf16.mxu0 0
    %685 = vmatpush1.bf16.msra.mxu0 0
    %686 = vmatprep.subr.bf16.mxu0 0
    %687 = vmatpush1.bf16.msra.mxu0 0
    %688 = vmatprep.subr.bf16.mxu0 0
    %689 = vmatpush1.bf16.msra.mxu0 0
    %690 = vmatprep.subr.bf16.mxu0 0
    %691 = vmatpush1.bf16.msra.mxu0 0
    %692 = vmatprep.subr.bf16.mxu0 0
    %693 = vmatpush1.bf16.msra.mxu0 0
    %694 = vmatprep.subr.bf16.mxu0 0
    %695 = vmatpush1.bf16.msra.mxu0 0
    %696 = vmatprep.subr.bf16.mxu0 0
    %697 = vmatpush1.bf16.msra.mxu0 0
    %698 = vmatprep.subr.bf16.mxu0 0
    %699 = vmatpush1.bf16.msra.mxu0 0
    %700 = vmatprep.subr.bf16.mxu0 0
    %701 = vmatpush1.bf16.msra.mxu0 0
    %702 = vmatprep.subr.bf16.mxu0 0
    %703 = vmatpush1.bf16.msra.mxu0 0
    %704 = vmatprep.mubr.bf16.mxu0 0
    %705 = vmatmul.mubr.bf16.gmra.mrb[0].mxu0 %v629
    %v706 = vpop.f32.mrb[0].mxu0
    %v707 = vadd.f32 %v158, %v706
    %v708 = vpop.f32.mrb[0].mxu0
    %v709 = vadd.f32 %v162, %v708
    %v710 = vpop.f32.mrb[0].mxu0
    %v711 = vpop.f32.mrb[0].mxu0
    %712 = vdwg.mxu0
    %713 = vmatprep.subr.bf16.mxu0 %v504
    %714 = vmatpush1.bf16.msra.mxu0 %v503
    %715 = vmatprep.subr.bf16.mxu0 %v536
    %716 = vmatpush1.bf16.msra.mxu0 %v535
    %717 = vmatprep.subr.bf16.mxu0 0
    %718 = vmatpush1.bf16.msra.mxu0 0
    %719 = vmatprep.subr.bf16.mxu0 0
    %720 = vmatpush1.bf16.msra.mxu0 0
    %721 = vmatprep.subr.bf16.mxu0 0
    %722 = vmatpush1.bf16.msra.mxu0 0
    %723 = vmatprep.subr.bf16.mxu0 0
    %724 = vmatpush1.bf16.msra.mxu0 0
    %725 = vmatprep.subr.bf16.mxu0 0
    %726 = vmatpush1.bf16.msra.mxu0 0
    %727 = vmatprep.subr.bf16.mxu0 0
    %728 = vmatpush1.bf16.msra.mxu0 0
    %729 = vmatprep.subr.bf16.mxu0 0
    %730 = vmatpush1.bf16.msra.mxu0 0
    %731 = vmatprep.subr.bf16.mxu0 0
    %732 = vmatpush1.bf16.msra.mxu0 0
    %733 = vmatprep.subr.bf16.mxu0 0
    %734 = vmatpush1.bf16.msra.mxu0 0
    %735 = vmatprep.subr.bf16.mxu0 0
    %736 = vmatpush1.bf16.msra.mxu0 0
    %737 = vmatprep.subr.bf16.mxu0 0
    %738 = vmatpush1.bf16.msra.mxu0 0
    %739 = vmatprep.subr.bf16.mxu0 0
    %740 = vmatpush1.bf16.msra.mxu0 0
    %741 = vmatprep.subr.bf16.mxu0 0
    %742 = vmatpush1.bf16.msra.mxu0 0
    %743 = vmatprep.subr.bf16.mxu0 0
    %744 = vmatpush1.bf16.msra.mxu0 0
    %745 = vmatprep.mubr.bf16.mxu0 0
    %746 = vmatmul.mubr.bf16.gmra.mrb[0].mxu0 %v629
    %v747 = vpop.f32.mrb[0].mxu0
    %v748 = vadd.f32 %v166, %v747
    %v749 = vpop.f32.mrb[0].mxu0
    %v750 = vadd.f32 %v170, %v749
    %v751 = vpop.f32.mrb[0].mxu0
    %v752 = vpop.f32.mrb[0].mxu0
    %753 = vdwg.mxu0
    %754 = vmatprep.subr.bf16.mxu0 %v506
    %755 = vmatpush1.bf16.msra.mxu0 %v505
    %756 = vmatprep.subr.bf16.mxu0 %v538
    %757 = vmatpush1.bf16.msra.mxu0 %v537
    %758 = vmatprep.subr.bf16.mxu0 0
    %759 = vmatpush1.bf16.msra.mxu0 0
    %760 = vmatprep.subr.bf16.mxu0 0
    %761 = vmatpush1.bf16.msra.mxu0 0
    %762 = vmatprep.subr.bf16.mxu0 0
    %763 = vmatpush1.bf16.msra.mxu0 0
    %764 = vmatprep.subr.bf16.mxu0 0
    %765 = vmatpush1.bf16.msra.mxu0 0
    %766 = vmatprep.subr.bf16.mxu0 0
    %767 = vmatpush1.bf16.msra.mxu0 0
    %768 = vmatprep.subr.bf16.mxu0 0
    %769 = vmatpush1.bf16.msra.mxu0 0
    %770 = vmatprep.subr.bf16.mxu0 0
    %771 = vmatpush1.bf16.msra.mxu0 0
    %772 = vmatprep.subr.bf16.mxu0 0
    %773 = vmatpush1.bf16.msra.mxu0 0
    %774 = vmatprep.subr.bf16.mxu0 0
    %775 = vmatpush1.bf16.msra.mxu0 0
    %776 = vmatprep.subr.bf16.mxu0 0
    %777 = vmatpush1.bf16.msra.mxu0 0
    %778 = vmatprep.subr.bf16.mxu0 0
    %779 = vmatpush1.bf16.msra.mxu0 0
    %780 = vmatprep.subr.bf16.mxu0 0
    %781 = vmatpush1.bf16.msra.mxu0 0
    %782 = vmatprep.subr.bf16.mxu0 0
    %783 = vmatpush1.bf16.msra.mxu0 0
    %784 = vmatprep.subr.bf16.mxu0 0
    %785 = vmatpush1.bf16.msra.mxu0 0
    %786 = vmatprep.mubr.bf16.mxu0 0
    %787 = vmatmul.mubr.bf16.gmra.mrb[0].mxu0 %v629
    %v788 = vpop.f32.mrb[0].mxu0
    %v789 = vadd.f32 %v174, %v788
    %v790 = vpop.f32.mrb[0].mxu0
    %v791 = vadd.f32 %v178, %v790
    %v792 = vpop.f32.mrb[0].mxu0
    %v793 = vpop.f32.mrb[0].mxu0
    %794 = vdwg.mxu0
    %795 = vmatprep.subr.bf16.mxu0 %v508
    %796 = vmatpush1.bf16.msra.mxu0 %v507
    %797 = vmatprep.subr.bf16.mxu0 %v540
    %798 = vmatpush1.bf16.msra.mxu0 %v539
    %799 = vmatprep.subr.bf16.mxu0 0
    %800 = vmatpush1.bf16.msra.mxu0 0
    %801 = vmatprep.subr.bf16.mxu0 0
    %802 = vmatpush1.bf16.msra.mxu0 0
    %803 = vmatprep.subr.bf16.mxu0 0
    %804 = vmatpush1.bf16.msra.mxu0 0
    %805 = vmatprep.subr.bf16.mxu0 0
    %806 = vmatpush1.bf16.msra.mxu0 0
    %807 = vmatprep.subr.bf16.mxu0 0
    %808 = vmatpush1.bf16.msra.mxu0 0
    %809 = vmatprep.subr.bf16.mxu0 0
    %810 = vmatpush1.bf16.msra.mxu0 0
    %811 = vmatprep.subr.bf16.mxu0 0
    %812 = vmatpush1.bf16.msra.mxu0 0
    %813 = vmatprep.subr.bf16.mxu0 0
    %814 = vmatpush1.bf16.msra.mxu0 0
    %815 = vmatprep.subr.bf16.mxu0 0
    %816 = vmatpush1.bf16.msra.mxu0 0
    %817 = vmatprep.subr.bf16.mxu0 0
    %818 = vmatpush1.bf16.msra.mxu0 0
    %819 = vmatprep.subr.bf16.mxu0 0
    %820 = vmatpush1.bf16.msra.mxu0 0
    %821 = vmatprep.subr.bf16.mxu0 0
    %822 = vmatpush1.bf16.msra.mxu0 0
    %823 = vmatprep.subr.bf16.mxu0 0
    %824 = vmatpush1.bf16.msra.mxu0 0
    %825 = vmatprep.subr.bf16.mxu0 0
    %826 = vmatpush1.bf16.msra.mxu0 0
    %827 = vmatprep.mubr.bf16.mxu0 0
    %828 = vmatmul.mubr.bf16.gmra.mrb[0].mxu0 %v629
    %v829 = vpop.f32.mrb[0].mxu0
    %v830 = vadd.f32 %v182, %v829
    %v831 = vpop.f32.mrb[0].mxu0
    %v832 = vadd.f32 %v186, %v831
    %v833 = vpop.f32.mrb[0].mxu0
    %v834 = vpop.f32.mrb[0].mxu0
    %835 = vdwg.mxu0
    %836 = vmatprep.subr.bf16.mxu0 %v510
    %837 = vmatpush1.bf16.msra.mxu0 %v509
    %838 = vmatprep.subr.bf16.mxu0 %v542
    %839 = vmatpush1.bf16.msra.mxu0 %v541
    %840 = vmatprep.subr.bf16.mxu0 0
    %841 = vmatpush1.bf16.msra.mxu0 0
    %842 = vmatprep.subr.bf16.mxu0 0
    %843 = vmatpush1.bf16.msra.mxu0 0
    %844 = vmatprep.subr.bf16.mxu0 0
    %845 = vmatpush1.bf16.msra.mxu0 0
    %846 = vmatprep.subr.bf16.mxu0 0
    %847 = vmatpush1.bf16.msra.mxu0 0
    %848 = vmatprep.subr.bf16.mxu0 0
    %849 = vmatpush1.bf16.msra.mxu0 0
    %850 = vmatprep.subr.bf16.mxu0 0
    %851 = vmatpush1.bf16.msra.mxu0 0
    %852 = vmatprep.subr.bf16.mxu0 0
    %853 = vmatpush1.bf16.msra.mxu0 0
    %854 = vmatprep.subr.bf16.mxu0 0
    %855 = vmatpush1.bf16.msra.mxu0 0
    %856 = vmatprep.subr.bf16.mxu0 0
    %857 = vmatpush1.bf16.msra.mxu0 0
    %858 = vmatprep.subr.bf16.mxu0 0
    %859 = vmatpush1.bf16.msra.mxu0 0
    %860 = vmatprep.subr.bf16.mxu0 0
    %861 = vmatpush1.bf16.msra.mxu0 0
    %862 = vmatprep.subr.bf16.mxu0 0
    %863 = vmatpush1.bf16.msra.mxu0 0
    %864 = vmatprep.subr.bf16.mxu0 0
    %865 = vmatpush1.bf16.msra.mxu0 0
    %866 = vmatprep.subr.bf16.mxu0 0
    %867 = vmatpush1.bf16.msra.mxu0 0
    %868 = vmatprep.mubr.bf16.mxu0 0
    %869 = vmatmul.mubr.bf16.gmra.mrb[0].mxu0 %v629
    %v870 = vpop.f32.mrb[0].mxu0
    %v871 = vadd.f32 %v190, %v870
    %v872 = vpop.f32.mrb[0].mxu0
    %v873 = vadd.f32 %v194, %v872
    %v874 = vpop.f32.mrb[0].mxu0
    %v875 = vpop.f32.mrb[0].mxu0
    %876 = vdwg.mxu0
    %877 = vmatprep.subr.bf16.mxu0 %v512
    %878 = vmatpush1.bf16.msra.mxu0 %v511
    %879 = vmatprep.subr.bf16.mxu0 %v544
    %880 = vmatpush1.bf16.msra.mxu0 %v543
    %881 = vmatprep.subr.bf16.mxu0 0
    %882 = vmatpush1.bf16.msra.mxu0 0
    %883 = vmatprep.subr.bf16.mxu0 0
    %884 = vmatpush1.bf16.msra.mxu0 0
    %885 = vmatprep.subr.bf16.mxu0 0
    %886 = vmatpush1.bf16.msra.mxu0 0
    %887 = vmatprep.subr.bf16.mxu0 0
    %888 = vmatpush1.bf16.msra.mxu0 0
    %889 = vmatprep.subr.bf16.mxu0 0
    %890 = vmatpush1.bf16.msra.mxu0 0
    %891 = vmatprep.subr.bf16.mxu0 0
    %892 = vmatpush1.bf16.msra.mxu0 0
    %893 = vmatprep.subr.bf16.mxu0 0
    %894 = vmatpush1.bf16.msra.mxu0 0
    %895 = vmatprep.subr.bf16.mxu0 0
    %896 = vmatpush1.bf16.msra.mxu0 0
    %897 = vmatprep.subr.bf16.mxu0 0
    %898 = vmatpush1.bf16.msra.mxu0 0
    %899 = vmatprep.subr.bf16.mxu0 0
    %900 = vmatpush1.bf16.msra.mxu0 0
    %901 = vmatprep.subr.bf16.mxu0 0
    %902 = vmatpush1.bf16.msra.mxu0 0
    %903 = vmatprep.subr.bf16.mxu0 0
    %904 = vmatpush1.bf16.msra.mxu0 0
    %905 = vmatprep.subr.bf16.mxu0 0
    %906 = vmatpush1.bf16.msra.mxu0 0
    %907 = vmatprep.subr.bf16.mxu0 0
    %908 = vmatpush1.bf16.msra.mxu0 0
    %909 = vmatprep.mubr.bf16.mxu0 0
    %910 = vmatmul.mubr.bf16.gmra.mrb[0].mxu0 %v629
    %v911 = vpop.f32.mrb[0].mxu0
    %v912 = vadd.f32 %v198, %v911
    %v913 = vpop.f32.mrb[0].mxu0
    %v914 = vadd.f32 %v202, %v913
    %v915 = vpop.f32.mrb[0].mxu0
    %v916 = vpop.f32.mrb[0].mxu0
    %917 = vdwg.mxu0
    %918 = vmatprep.subr.bf16.mxu0 %v514
    %919 = vmatpush1.bf16.msra.mxu0 %v513
    %920 = vmatprep.subr.bf16.mxu0 %v546
    %921 = vmatpush1.bf16.msra.mxu0 %v545
    %922 = vmatprep.subr.bf16.mxu0 0
    %923 = vmatpush1.bf16.msra.mxu0 0
    %924 = vmatprep.subr.bf16.mxu0 0
    %925 = vmatpush1.bf16.msra.mxu0 0
    %926 = vmatprep.subr.bf16.mxu0 0
    %927 = vmatpush1.bf16.msra.mxu0 0
    %928 = vmatprep.subr.bf16.mxu0 0
    %929 = vmatpush1.bf16.msra.mxu0 0
    %930 = vmatprep.subr.bf16.mxu0 0
    %931 = vmatpush1.bf16.msra.mxu0 0
    %932 = vmatprep.subr.bf16.mxu0 0
    %933 = vmatpush1.bf16.msra.mxu0 0
    %934 = vmatprep.subr.bf16.mxu0 0
    %935 = vmatpush1.bf16.msra.mxu0 0
    %936 = vmatprep.subr.bf16.mxu0 0
    %937 = vmatpush1.bf16.msra.mxu0 0
    %938 = vmatprep.subr.bf16.mxu0 0
    %939 = vmatpush1.bf16.msra.mxu0 0
    %940 = vmatprep.subr.bf16.mxu0 0
    %941 = vmatpush1.bf16.msra.mxu0 0
    %942 = vmatprep.subr.bf16.mxu0 0
    %943 = vmatpush1.bf16.msra.mxu0 0
    %944 = vmatprep.subr.bf16.mxu0 0
    %945 = vmatpush1.bf16.msra.mxu0 0
    %946 = vmatprep.subr.bf16.mxu0 0
    %947 = vmatpush1.bf16.msra.mxu0 0
    %948 = vmatprep.subr.bf16.mxu0 0
    %949 = vmatpush1.bf16.msra.mxu0 0
    %950 = vmatprep.mubr.bf16.mxu0 0
    %951 = vmatmul.mubr.bf16.gmra.mrb[0].mxu0 %v629
    %v952 = vpop.f32.mrb[0].mxu0
    %v953 = vadd.f32 %v206, %v952
    %v954 = vpop.f32.mrb[0].mxu0
    %v955 = vadd.f32 %v210, %v954
    %v956 = vpop.f32.mrb[0].mxu0
    %v957 = vpop.f32.mrb[0].mxu0
    %958 = vdwg.mxu0
    %959 = vmatprep.subr.bf16.mxu0 %v516
    %960 = vmatpush1.bf16.msra.mxu0 %v515
    %961 = vmatprep.subr.bf16.mxu0 %v548
    %962 = vmatpush1.bf16.msra.mxu0 %v547
    %963 = vmatprep.subr.bf16.mxu0 0
    %964 = vmatpush1.bf16.msra.mxu0 0
    %965 = vmatprep.subr.bf16.mxu0 0
    %966 = vmatpush1.bf16.msra.mxu0 0
    %967 = vmatprep.subr.bf16.mxu0 0
    %968 = vmatpush1.bf16.msra.mxu0 0
    %969 = vmatprep.subr.bf16.mxu0 0
    %970 = vmatpush1.bf16.msra.mxu0 0
    %971 = vmatprep.subr.bf16.mxu0 0
    %972 = vmatpush1.bf16.msra.mxu0 0
    %973 = vmatprep.subr.bf16.mxu0 0
    %974 = vmatpush1.bf16.msra.mxu0 0
    %975 = vmatprep.subr.bf16.mxu0 0
    %976 = vmatpush1.bf16.msra.mxu0 0
    %977 = vmatprep.subr.bf16.mxu0 0
    %978 = vmatpush1.bf16.msra.mxu0 0
    %979 = vmatprep.subr.bf16.mxu0 0
    %980 = vmatpush1.bf16.msra.mxu0 0
    %981 = vmatprep.subr.bf16.mxu0 0
    %982 = vmatpush1.bf16.msra.mxu0 0
    %983 = vmatprep.subr.bf16.mxu0 0
    %984 = vmatpush1.bf16.msra.mxu0 0
    %985 = vmatprep.subr.bf16.mxu0 0
    %986 = vmatpush1.bf16.msra.mxu0 0
    %987 = vmatprep.subr.bf16.mxu0 0
    %988 = vmatpush1.bf16.msra.mxu0 0
    %989 = vmatprep.subr.bf16.mxu0 0
    %990 = vmatpush1.bf16.msra.mxu0 0
    %991 = vmatprep.mubr.bf16.mxu0 0
    %992 = vmatmul.mubr.bf16.gmra.mrb[0].mxu0 %v629
    %v993 = vpop.f32.mrb[0].mxu0
    %v994 = vadd.f32 %v214, %v993
    %v995 = vpop.f32.mrb[0].mxu0
    %v996 = vadd.f32 %v218, %v995
    %v997 = vpop.f32.mrb[0].mxu0
    %v998 = vpop.f32.mrb[0].mxu0
    %999 = vdwg.mxu0
    %1000 = vmatprep.subr.bf16.mxu0 %v518
    %1001 = vmatpush1.bf16.msra.mxu0 %v517
    %1002 = vmatprep.subr.bf16.mxu0 %v550
    %1003 = vmatpush1.bf16.msra.mxu0 %v549
    %1004 = vmatprep.subr.bf16.mxu0 0
    %1005 = vmatpush1.bf16.msra.mxu0 0
    %1006 = vmatprep.subr.bf16.mxu0 0
    %1007 = vmatpush1.bf16.msra.mxu0 0
    %1008 = vmatprep.subr.bf16.mxu0 0
    %1009 = vmatpush1.bf16.msra.mxu0 0
    %1010 = vmatprep.subr.bf16.mxu0 0
    %1011 = vmatpush1.bf16.msra.mxu0 0
    %1012 = vmatprep.subr.bf16.mxu0 0
    %1013 = vmatpush1.bf16.msra.mxu0 0
    %1014 = vmatprep.subr.bf16.mxu0 0
    %1015 = vmatpush1.bf16.msra.mxu0 0
    %1016 = vmatprep.subr.bf16.mxu0 0
    %1017 = vmatpush1.bf16.msra.mxu0 0
    %1018 = vmatprep.subr.bf16.mxu0 0
    %1019 = vmatpush1.bf16.msra.mxu0 0
    %1020 = vmatprep.subr.bf16.mxu0 0
    %1021 = vmatpush1.bf16.msra.mxu0 0
    %1022 = vmatprep.subr.bf16.mxu0 0
    %1023 = vmatpush1.bf16.msra.mxu0 0
    %1024 = vmatprep.subr.bf16.mxu0 0
    %1025 = vmatpush1.bf16.msra.mxu0 0
    %1026 = vmatprep.subr.bf16.mxu0 0
    %1027 = vmatpush1.bf16.msra.mxu0 0
    %1028 = vmatprep.subr.bf16.mxu0 0
    %1029 = vmatpush1.bf16.msra.mxu0 0
    %1030 = vmatprep.subr.bf16.mxu0 0
    %1031 = vmatpush1.bf16.msra.mxu0 0
    %1032 = vmatprep.mubr.bf16.mxu0 0
    %1033 = vmatmul.mubr.bf16.gmra.mrb[0].mxu0 %v629
    %v1034 = vpop.f32.mrb[0].mxu0
    %v1035 = vadd.f32 %v222, %v1034
    %v1036 = vpop.f32.mrb[0].mxu0
    %v1037 = vadd.f32 %v226, %v1036
    %v1038 = vpop.f32.mrb[0].mxu0
    %v1039 = vpop.f32.mrb[0].mxu0
    %1040 = vdwg.mxu0
    %1041 = vmatprep.subr.bf16.mxu0 %v520
    %1042 = vmatpush1.bf16.msra.mxu0 %v519
    %1043 = vmatprep.subr.bf16.mxu0 %v552
    %1044 = vmatpush1.bf16.msra.mxu0 %v551
    %1045 = vmatprep.subr.bf16.mxu0 0
    %1046 = vmatpush1.bf16.msra.mxu0 0
    %1047 = vmatprep.subr.bf16.mxu0 0
    %1048 = vmatpush1.bf16.msra.mxu0 0
    %1049 = vmatprep.subr.bf16.mxu0 0
    %1050 = vmatpush1.bf16.msra.mxu0 0
    %1051 = vmatprep.subr.bf16.mxu0 0
    %1052 = vmatpush1.bf16.msra.mxu0 0
    %1053 = vmatprep.subr.bf16.mxu0 0
    %1054 = vmatpush1.bf16.msra.mxu0 0
    %1055 = vmatprep.subr.bf16.mxu0 0
    %1056 = vmatpush1.bf16.msra.mxu0 0
    %1057 = vmatprep.subr.bf16.mxu0 0
    %1058 = vmatpush1.bf16.msra.mxu0 0
    %1059 = vmatprep.subr.bf16.mxu0 0
    %1060 = vmatpush1.bf16.msra.mxu0 0
    %1061 = vmatprep.subr.bf16.mxu0 0
    %1062 = vmatpush1.bf16.msra.mxu0 0
    %1063 = vmatprep.subr.bf16.mxu0 0
    %1064 = vmatpush1.bf16.msra.mxu0 0
    %1065 = vmatprep.subr.bf16.mxu0 0
    %1066 = vmatpush1.bf16.msra.mxu0 0
    %1067 = vmatprep.subr.bf16.mxu0 0
    %1068 = vmatpush1.bf16.msra.mxu0 0
    %1069 = vmatprep.subr.bf16.mxu0 0
    %1070 = vmatpush1.bf16.msra.mxu0 0
    %1071 = vmatprep.subr.bf16.mxu0 0
    %1072 = vmatpush1.bf16.msra.mxu0 0
    %1073 = vmatprep.mubr.bf16.mxu0 0
    %1074 = vmatmul.mubr.bf16.gmra.mrb[0].mxu0 %v629
    %v1075 = vpop.f32.mrb[0].mxu0
    %v1076 = vadd.f32 %v230, %v1075
    %v1077 = vpop.f32.mrb[0].mxu0
    %v1078 = vadd.f32 %v234, %v1077
    %v1079 = vpop.f32.mrb[0].mxu0
    %v1080 = vpop.f32.mrb[0].mxu0
    %1081 = vdwg.mxu0
    %1082 = vmatprep.subr.bf16.mxu0 %v522
    %1083 = vmatpush1.bf16.msra.mxu0 %v521
    %1084 = vmatprep.subr.bf16.mxu0 %v554
    %1085 = vmatpush1.bf16.msra.mxu0 %v553
    %1086 = vmatprep.subr.bf16.mxu0 0
    %1087 = vmatpush1.bf16.msra.mxu0 0
    %1088 = vmatprep.subr.bf16.mxu0 0
    %1089 = vmatpush1.bf16.msra.mxu0 0
    %1090 = vmatprep.subr.bf16.mxu0 0
    %1091 = vmatpush1.bf16.msra.mxu0 0
    %1092 = vmatprep.subr.bf16.mxu0 0
    %1093 = vmatpush1.bf16.msra.mxu0 0
    %1094 = vmatprep.subr.bf16.mxu0 0
    %1095 = vmatpush1.bf16.msra.mxu0 0
    %1096 = vmatprep.subr.bf16.mxu0 0
    %1097 = vmatpush1.bf16.msra.mxu0 0
    %1098 = vmatprep.subr.bf16.mxu0 0
    %1099 = vmatpush1.bf16.msra.mxu0 0
    %1100 = vmatprep.subr.bf16.mxu0 0
    %1101 = vmatpush1.bf16.msra.mxu0 0
    %1102 = vmatprep.subr.bf16.mxu0 0
    %1103 = vmatpush1.bf16.msra.mxu0 0
    %1104 = vmatprep.subr.bf16.mxu0 0
    %1105 = vmatpush1.bf16.msra.mxu0 0
    %1106 = vmatprep.subr.bf16.mxu0 0
    %1107 = vmatpush1.bf16.msra.mxu0 0
    %1108 = vmatprep.subr.bf16.mxu0 0
    %1109 = vmatpush1.bf16.msra.mxu0 0
    %1110 = vmatprep.subr.bf16.mxu0 0
    %1111 = vmatpush1.bf16.msra.mxu0 0
    %1112 = vmatprep.subr.bf16.mxu0 0
    %1113 = vmatpush1.bf16.msra.mxu0 0
    %1114 = vmatprep.mubr.bf16.mxu0 0
    %1115 = vmatmul.mubr.bf16.gmra.mrb[0].mxu0 %v629
    %v1116 = vpop.f32.mrb[0].mxu0
    %v1117 = vadd.f32 %v238, %v1116
    %v1118 = vpop.f32.mrb[0].mxu0
    %v1119 = vadd.f32 %v242, %v1118
    %v1120 = vpop.f32.mrb[0].mxu0
    %v1121 = vpop.f32.mrb[0].mxu0
    %1122 = vdwg.mxu0
    %1123 = vmatprep.subr.bf16.mxu0 %v524
    %1124 = vmatpush1.bf16.msra.mxu0 %v523
    %1125 = vmatprep.subr.bf16.mxu0 %v556
    %1126 = vmatpush1.bf16.msra.mxu0 %v555
    %1127 = vmatprep.subr.bf16.mxu0 0
    %1128 = vmatpush1.bf16.msra.mxu0 0
    %1129 = vmatprep.subr.bf16.mxu0 0
    %1130 = vmatpush1.bf16.msra.mxu0 0
    %1131 = vmatprep.subr.bf16.mxu0 0
    %1132 = vmatpush1.bf16.msra.mxu0 0
    %1133 = vmatprep.subr.bf16.mxu0 0
    %1134 = vmatpush1.bf16.msra.mxu0 0
    %1135 = vmatprep.subr.bf16.mxu0 0
    %1136 = vmatpush1.bf16.msra.mxu0 0
    %1137 = vmatprep.subr.bf16.mxu0 0
    %1138 = vmatpush1.bf16.msra.mxu0 0
    %1139 = vmatprep.subr.bf16.mxu0 0
    %1140 = vmatpush1.bf16.msra.mxu0 0
    %1141 = vmatprep.subr.bf16.mxu0 0
    %1142 = vmatpush1.bf16.msra.mxu0 0
    %1143 = vmatprep.subr.bf16.mxu0 0
    %1144 = vmatpush1.bf16.msra.mxu0 0
    %1145 = vmatprep.subr.bf16.mxu0 0
    %1146 = vmatpush1.bf16.msra.mxu0 0
    %1147 = vmatprep.subr.bf16.mxu0 0
    %1148 = vmatpush1.bf16.msra.mxu0 0
    %1149 = vmatprep.subr.bf16.mxu0 0
    %1150 = vmatpush1.bf16.msra.mxu0 0
    %1151 = vmatprep.subr.bf16.mxu0 0
    %1152 = vmatpush1.bf16.msra.mxu0 0
    %1153 = vmatprep.subr.bf16.mxu0 0
    %1154 = vmatpush1.bf16.msra.mxu0 0
    %1155 = vmatprep.mubr.bf16.mxu0 0
    %1156 = vmatmul.mubr.bf16.gmra.mrb[0].mxu0 %v629
    %v1157 = vpop.f32.mrb[0].mxu0
    %v1158 = vadd.f32 %v246, %v1157
    %v1159 = vpop.f32.mrb[0].mxu0
    %v1160 = vadd.f32 %v250, %v1159
    %v1161 = vpop.f32.mrb[0].mxu0
    %v1162 = vpop.f32.mrb[0].mxu0
    %1163 = vdwg.mxu0
    %1164 = vmatprep.subr.bf16.mxu0 %v526
    %1165 = vmatpush1.bf16.msra.mxu0 %v525
    %1166 = vmatprep.subr.bf16.mxu0 %v558
    %1167 = vmatpush1.bf16.msra.mxu0 %v557
    %1168 = vmatprep.subr.bf16.mxu0 0
    %1169 = vmatpush1.bf16.msra.mxu0 0
    %1170 = vmatprep.subr.bf16.mxu0 0
    %1171 = vmatpush1.bf16.msra.mxu0 0
    %1172 = vmatprep.subr.bf16.mxu0 0
    %1173 = vmatpush1.bf16.msra.mxu0 0
    %1174 = vmatprep.subr.bf16.mxu0 0
    %1175 = vmatpush1.bf16.msra.mxu0 0
    %1176 = vmatprep.subr.bf16.mxu0 0
    %1177 = vmatpush1.bf16.msra.mxu0 0
    %1178 = vmatprep.subr.bf16.mxu0 0
    %1179 = vmatpush1.bf16.msra.mxu0 0
    %1180 = vmatprep.subr.bf16.mxu0 0
    %1181 = vmatpush1.bf16.msra.mxu0 0
    %1182 = vmatprep.subr.bf16.mxu0 0
    %1183 = vmatpush1.bf16.msra.mxu0 0
    %1184 = vmatprep.subr.bf16.mxu0 0
    %1185 = vmatpush1.bf16.msra.mxu0 0
    %1186 = vmatprep.subr.bf16.mxu0 0
    %1187 = vmatpush1.bf16.msra.mxu0 0
    %1188 = vmatprep.subr.bf16.mxu0 0
    %1189 = vmatpush1.bf16.msra.mxu0 0
    %1190 = vmatprep.subr.bf16.mxu0 0
    %1191 = vmatpush1.bf16.msra.mxu0 0
    %1192 = vmatprep.subr.bf16.mxu0 0
    %1193 = vmatpush1.bf16.msra.mxu0 0
    %1194 = vmatprep.subr.bf16.mxu0 0
    %1195 = vmatpush1.bf16.msra.mxu0 0
    %1196 = vmatprep.mubr.bf16.mxu0 0
    %1197 = vmatmul.mubr.bf16.gmra.mrb[0].mxu0 %v629
    %v1198 = vpop.f32.mrb[0].mxu0
    %v1199 = vadd.f32 %v254, %v1198
    %v1200 = vpop.f32.mrb[0].mxu0
    %v1201 = vadd.f32 %v258, %v1200
    %v1202 = vpop.f32.mrb[0].mxu0
    %v1203 = vpop.f32.mrb[0].mxu0
    %1204 = vdwg.mxu0
    %1205 = vmatprep.subr.bf16.mxu0 %v528
    %1206 = vmatpush1.bf16.msra.mxu0 %v527
    %1207 = vmatprep.subr.bf16.mxu0 %v560
    %1208 = vmatpush1.bf16.msra.mxu0 %v559
    %1209 = vmatprep.subr.bf16.mxu0 0
    %1210 = vmatpush1.bf16.msra.mxu0 0
    %1211 = vmatprep.subr.bf16.mxu0 0
    %1212 = vmatpush1.bf16.msra.mxu0 0
    %1213 = vmatprep.subr.bf16.mxu0 0
    %1214 = vmatpush1.bf16.msra.mxu0 0
    %1215 = vmatprep.subr.bf16.mxu0 0
    %1216 = vmatpush1.bf16.msra.mxu0 0
    %1217 = vmatprep.subr.bf16.mxu0 0
    %1218 = vmatpush1.bf16.msra.mxu0 0
    %1219 = vmatprep.subr.bf16.mxu0 0
    %1220 = vmatpush1.bf16.msra.mxu0 0
    %1221 = vmatprep.subr.bf16.mxu0 0
    %1222 = vmatpush1.bf16.msra.mxu0 0
    %1223 = vmatprep.subr.bf16.mxu0 0
    %1224 = vmatpush1.bf16.msra.mxu0 0
    %1225 = vmatprep.subr.bf16.mxu0 0
    %1226 = vmatpush1.bf16.msra.mxu0 0
    %1227 = vmatprep.subr.bf16.mxu0 0
    %1228 = vmatpush1.bf16.msra.mxu0 0
    %1229 = vmatprep.subr.bf16.mxu0 0
    %1230 = vmatpush1.bf16.msra.mxu0 0
    %1231 = vmatprep.subr.bf16.mxu0 0
    %1232 = vmatpush1.bf16.msra.mxu0 0
    %1233 = vmatprep.subr.bf16.mxu0 0
    %1234 = vmatpush1.bf16.msra.mxu0 0
    %1235 = vmatprep.subr.bf16.mxu0 0
    %1236 = vmatpush1.bf16.msra.mxu0 0
    %1237 = vmatprep.mubr.bf16.mxu0 0
    %1238 = vmatmul.mubr.bf16.gmra.mrb[0].mxu0 %v629
    %v1239 = vpop.f32.mrb[0].mxu0
    %v1240 = vadd.f32 %v262, %v1239
    %v1241 = vpop.f32.mrb[0].mxu0
    %v1242 = vadd.f32 %v266, %v1241
    %v1243 = vpop.f32.mrb[0].mxu0
    %v1244 = vpop.f32.mrb[0].mxu0
    %1245 = vdwg.mxu0
    %1246 = vmatprep.subr.bf16.mxu0 %v530
    %1247 = vmatpush1.bf16.msra.mxu0 %v529
    %1248 = vmatprep.subr.bf16.mxu0 %v562
    %1249 = vmatpush1.bf16.msra.mxu0 %v561
    %1250 = vmatprep.subr.bf16.mxu0 0
    %1251 = vmatpush1.bf16.msra.mxu0 0
    %1252 = vmatprep.subr.bf16.mxu0 0
    %1253 = vmatpush1.bf16.msra.mxu0 0
    %1254 = vmatprep.subr.bf16.mxu0 0
    %1255 = vmatpush1.bf16.msra.mxu0 0
    %1256 = vmatprep.subr.bf16.mxu0 0
    %1257 = vmatpush1.bf16.msra.mxu0 0
    %1258 = vmatprep.subr.bf16.mxu0 0
    %1259 = vmatpush1.bf16.msra.mxu0 0
    %1260 = vmatprep.subr.bf16.mxu0 0
    %1261 = vmatpush1.bf16.msra.mxu0 0
    %1262 = vmatprep.subr.bf16.mxu0 0
    %1263 = vmatpush1.bf16.msra.mxu0 0
    %1264 = vmatprep.subr.bf16.mxu0 0
    %1265 = vmatpush1.bf16.msra.mxu0 0
    %1266 = vmatprep.subr.bf16.mxu0 0
    %1267 = vmatpush1.bf16.msra.mxu0 0
    %1268 = vmatprep.subr.bf16.mxu0 0
    %1269 = vmatpush1.bf16.msra.mxu0 0
    %1270 = vmatprep.subr.bf16.mxu0 0
    %1271 = vmatpush1.bf16.msra.mxu0 0
    %1272 = vmatprep.subr.bf16.mxu0 0
    %1273 = vmatpush1.bf16.msra.mxu0 0
    %1274 = vmatprep.subr.bf16.mxu0 0
    %1275 = vmatpush1.bf16.msra.mxu0 0
    %1276 = vmatprep.subr.bf16.mxu0 0
    %1277 = vmatpush1.bf16.msra.mxu0 0
    %1278 = vmatprep.mubr.bf16.mxu0 0
    %1279 = vmatmul.mubr.bf16.gmra.mrb[0].mxu0 %v629
    %v1280 = vpop.f32.mrb[0].mxu0
    %v1281 = vadd.f32 %v270, %v1280
    %v1282 = vpop.f32.mrb[0].mxu0
    %v1283 = vadd.f32 %v274, %v1282
    %v1284 = vpop.f32.mrb[0].mxu0
    %v1285 = vpop.f32.mrb[0].mxu0
    %1286 = vdwg.mxu0
    %v1287 = vmax.f32 %v666, 0.0
    %v1288 = vmax.f32 %v668, 0.0
    %v1289 = vmax.f32 %v707, 0.0
    %v1290 = vmax.f32 %v709, 0.0
    %v1291 = vmax.f32 %v748, 0.0
    %v1292 = vmax.f32 %v750, 0.0
    %v1293 = vmax.f32 %v789, 0.0
    %v1294 = vmax.f32 %v791, 0.0
    %v1295 = vmax.f32 %v830, 0.0
    %v1296 = vmax.f32 %v832, 0.0
    %v1297 = vmax.f32 %v871, 0.0
    %v1298 = vmax.f32 %v873, 0.0
    %v1299 = vmax.f32 %v912, 0.0
    %v1300 = vmax.f32 %v914, 0.0
    %v1301 = vmax.f32 %v953, 0.0
    %v1302 = vmax.f32 %v955, 0.0
    %v1303 = vmax.f32 %v994, 0.0
    %v1304 = vmax.f32 %v996, 0.0
    %v1305 = vmax.f32 %v1035, 0.0
    %v1306 = vmax.f32 %v1037, 0.0
    %v1307 = vmax.f32 %v1076, 0.0
    %v1308 = vmax.f32 %v1078, 0.0
    %v1309 = vmax.f32 %v1117, 0.0
    %v1310 = vmax.f32 %v1119, 0.0
    %v1311 = vmax.f32 %v1158, 0.0
    %v1312 = vmax.f32 %v1160, 0.0
    %v1313 = vmax.f32 %v1199, 0.0
    %v1314 = vmax.f32 %v1201, 0.0
    %v1315 = vmax.f32 %v1240, 0.0
    %v1316 = vmax.f32 %v1242, 0.0
    %v1317 = vmax.f32 %v1281, 0.0
    %v1318 = vmax.f32 %v1283, 0.0
    %v1319 = vpack.c.bf16 %v1287, %v1287
    %v1320 = vpack.c.bf16 %v1288, %v1288
    %v1321 = vpack.c.bf16 %v1289, %v1289
    %v1322 = vpack.c.bf16 %v1290, %v1290
    %v1323 = vpack.c.bf16 %v1291, %v1291
    %v1324 = vpack.c.bf16 %v1292, %v1292
    %v1325 = vpack.c.bf16 %v1293, %v1293
    %v1326 = vpack.c.bf16 %v1294, %v1294
    %v1327 = vpack.c.bf16 %v1295, %v1295
    %v1328 = vpack.c.bf16 %v1296, %v1296
    %v1329 = vpack.c.bf16 %v1297, %v1297
    %v1330 = vpack.c.bf16 %v1298, %v1298
    %v1331 = vpack.c.bf16 %v1299, %v1299
    %v1332 = vpack.c.bf16 %v1300, %v1300
    %v1333 = vpack.c.bf16 %v1301, %v1301
    %v1334 = vpack.c.bf16 %v1302, %v1302
    %v1335 = vpack.c.bf16 %v1303, %v1303
    %v1336 = vpack.c.bf16 %v1304, %v1304
    %v1337 = vpack.c.bf16 %v1305, %v1305
    %v1338 = vpack.c.bf16 %v1306, %v1306
    %v1339 = vpack.c.bf16 %v1307, %v1307
    %v1340 = vpack.c.bf16 %v1308, %v1308
    %v1341 = vpack.c.bf16 %v1309, %v1309
    %v1342 = vpack.c.bf16 %v1310, %v1310
    %v1343 = vpack.c.bf16 %v1311, %v1311
    %v1344 = vpack.c.bf16 %v1312, %v1312
    %v1345 = vpack.c.bf16 %v1313, %v1313
    %v1346 = vpack.c.bf16 %v1314, %v1314
    %v1347 = vpack.c.bf16 %v1315, %v1315
    %v1348 = vpack.c.bf16 %v1316, %v1316
    %v1349 = vpack.c.bf16 %v1317, %v1317
    %v1350 = vpack.c.bf16 %v1318, %v1318
    %v1351 = vld [vmem:[#allocation8] sm:$0xf]
    %v1352 = vld [vmem:[#allocation8 + $0x4] sm:$0xf]
    %v1353 = vld [vmem:[#allocation8 + $0x8] sm:$0xf]
    %v1354 = vld [vmem:[#allocation8 + $0xc] sm:$0xf]
    %v1355 = vld [vmem:[#allocation8 + $0x10] sm:$0xf]
    %v1356 = vld [vmem:[#allocation8 + $0x14] sm:$0xf]
    %v1357 = vld [vmem:[#allocation8 + $0x18] sm:$0xf]
    %v1358 = vld [vmem:[#allocation8 + $0x1c] sm:$0xf]
    %v1359 = vld [vmem:[#allocation8 + $0x20] sm:$0xf]
    %v1360 = vld [vmem:[#allocation8 + $0x24] sm:$0xf]
    %v1361 = vld [vmem:[#allocation8 + $0x28] sm:$0xf]
    %v1362 = vld [vmem:[#allocation8 + $0x2c] sm:$0xf]
    %v1363 = vld [vmem:[#allocation8 + $0x30] sm:$0xf]
    %v1364 = vld [vmem:[#allocation8 + $0x34] sm:$0xf]
    %v1365 = vld [vmem:[#allocation8 + $0x38] sm:$0xf]
    %v1366 = vld [vmem:[#allocation8 + $0x3c] sm:$0xf]
    %v1367 = vld [vmem:[#allocation8 + $0x40] sm:$0xf]
    %v1368 = vld [vmem:[#allocation8 + $0x44] sm:$0xf]
    %v1369 = vld [vmem:[#allocation8 + $0x48] sm:$0xf]
    %v1370 = vld [vmem:[#allocation8 + $0x4c] sm:$0xf]
    %v1371 = vld [vmem:[#allocation8 + $0x50] sm:$0xf]
    %v1372 = vld [vmem:[#allocation8 + $0x54] sm:$0xf]
    %v1373 = vld [vmem:[#allocation8 + $0x58] sm:$0xf]
    %v1374 = vld [vmem:[#allocation8 + $0x5c] sm:$0xf]
    %v1375 = vld [vmem:[#allocation8 + $0x60] sm:$0xf]
    %v1376 = vld [vmem:[#allocation8 + $0x64] sm:$0xf]
    %v1377 = vld [vmem:[#allocation8 + $0x68] sm:$0xf]
    %v1378 = vld [vmem:[#allocation8 + $0x6c] sm:$0xf]
    %v1379 = vld [vmem:[#allocation8 + $0x70] sm:$0xf]
    %v1380 = vld [vmem:[#allocation8 + $0x74] sm:$0xf]
    %v1381 = vld [vmem:[#allocation8 + $0x78] sm:$0xf]
    %v1382 = vld [vmem:[#allocation8 + $0x7c] sm:$0xf]
    %v1383 = vld [vmem:[#allocation8 + $0x80] sm:$0xf]
    %v1384 = vld [vmem:[#allocation8 + $0x84] sm:$0xf]
    %v1385 = vld [vmem:[#allocation8 + $0x88] sm:$0xf]
    %v1386 = vld [vmem:[#allocation8 + $0x8c] sm:$0xf]
    %v1387 = vld [vmem:[#allocation8 + $0x90] sm:$0xf]
    %v1388 = vld [vmem:[#allocation8 + $0x94] sm:$0xf]
    %v1389 = vld [vmem:[#allocation8 + $0x98] sm:$0xf]
    %v1390 = vld [vmem:[#allocation8 + $0x9c] sm:$0xf]
    %v1391 = vld [vmem:[#allocation8 + $0xa0] sm:$0xf]
    %v1392 = vld [vmem:[#allocation8 + $0xa4] sm:$0xf]
    %v1393 = vld [vmem:[#allocation8 + $0xa8] sm:$0xf]
    %v1394 = vld [vmem:[#allocation8 + $0xac] sm:$0xf]
    %v1395 = vld [vmem:[#allocation8 + $0xb0] sm:$0xf]
    %v1396 = vld [vmem:[#allocation8 + $0xb4] sm:$0xf]
    %v1397 = vld [vmem:[#allocation8 + $0xb8] sm:$0xf]
    %v1398 = vld [vmem:[#allocation8 + $0xbc] sm:$0xf]
    %v1399 = vld [vmem:[#allocation8 + $0xc0] sm:$0xf]
    %v1400 = vld [vmem:[#allocation8 + $0xc4] sm:$0xf]
    %v1401 = vld [vmem:[#allocation8 + $0xc8] sm:$0xf]
    %v1402 = vld [vmem:[#allocation8 + $0xcc] sm:$0xf]
    %v1403 = vld [vmem:[#allocation8 + $0xd0] sm:$0xf]
    %v1404 = vld [vmem:[#allocation8 + $0xd4] sm:$0xf]
    %v1405 = vld [vmem:[#allocation8 + $0xd8] sm:$0xf]
    %v1406 = vld [vmem:[#allocation8 + $0xdc] sm:$0xf]
    %v1407 = vld [vmem:[#allocation8 + $0xe0] sm:$0xf]
    %v1408 = vld [vmem:[#allocation8 + $0xe4] sm:$0xf]
    %v1409 = vld [vmem:[#allocation8 + $0xe8] sm:$0xf]
    %v1410 = vld [vmem:[#allocation8 + $0xec] sm:$0xf]
    %v1411 = vld [vmem:[#allocation8 + $0xf0] sm:$0xf]
    %v1412 = vld [vmem:[#allocation8 + $0xf4] sm:$0xf]
    %v1413 = vld [vmem:[#allocation8 + $0xf8] sm:$0xf]
    %v1414 = vld [vmem:[#allocation8 + $0xfc] sm:$0xf]
    %v1415 = vld [vmem:[#allocation8 + $0x100] sm:$0xf]
    %v1416 = vld [vmem:[#allocation8 + $0x104] sm:$0xf]
    %v1417 = vld [vmem:[#allocation8 + $0x108] sm:$0xf]
    %v1418 = vld [vmem:[#allocation8 + $0x10c] sm:$0xf]
    %v1419 = vld [vmem:[#allocation8 + $0x110] sm:$0xf]
    %v1420 = vld [vmem:[#allocation8 + $0x114] sm:$0xf]
    %v1421 = vld [vmem:[#allocation8 + $0x118] sm:$0xf]
    %v1422 = vld [vmem:[#allocation8 + $0x11c] sm:$0xf]
    %v1423 = vld [vmem:[#allocation8 + $0x120] sm:$0xf]
    %v1424 = vld [vmem:[#allocation8 + $0x124] sm:$0xf]
    %v1425 = vld [vmem:[#allocation8 + $0x128] sm:$0xf]
    %v1426 = vld [vmem:[#allocation8 + $0x12c] sm:$0xf]
    %v1427 = vld [vmem:[#allocation8 + $0x130] sm:$0xf]
    %v1428 = vld [vmem:[#allocation8 + $0x134] sm:$0xf]
    %v1429 = vld [vmem:[#allocation8 + $0x138] sm:$0xf]
    %v1430 = vld [vmem:[#allocation8 + $0x13c] sm:$0xf]
    %v1431 = vld [vmem:[#allocation8 + $0x140] sm:$0xf]
    %v1432 = vld [vmem:[#allocation8 + $0x144] sm:$0xf]
    %v1433 = vld [vmem:[#allocation8 + $0x148] sm:$0xf]
    %v1434 = vld [vmem:[#allocation8 + $0x14c] sm:$0xf]
    %v1435 = vld [vmem:[#allocation8 + $0x150] sm:$0xf]
    %v1436 = vld [vmem:[#allocation8 + $0x154] sm:$0xf]
    %v1437 = vld [vmem:[#allocation8 + $0x158] sm:$0xf]
    %v1438 = vld [vmem:[#allocation8 + $0x15c] sm:$0xf]
    %v1439 = vld [vmem:[#allocation8 + $0x160] sm:$0xf]
    %v1440 = vld [vmem:[#allocation8 + $0x164] sm:$0xf]
    %v1441 = vld [vmem:[#allocation8 + $0x168] sm:$0xf]
    %v1442 = vld [vmem:[#allocation8 + $0x16c] sm:$0xf]
    %v1443 = vld [vmem:[#allocation8 + $0x170] sm:$0xf]
    %v1444 = vld [vmem:[#allocation8 + $0x174] sm:$0xf]
    %v1445 = vld [vmem:[#allocation8 + $0x178] sm:$0xf]
    %v1446 = vld [vmem:[#allocation8 + $0x17c] sm:$0xf]
    %v1447 = vld [vmem:[#allocation8 + $0x180] sm:$0xf]
    %v1448 = vld [vmem:[#allocation8 + $0x184] sm:$0xf]
    %v1449 = vld [vmem:[#allocation8 + $0x188] sm:$0xf]
    %v1450 = vld [vmem:[#allocation8 + $0x18c] sm:$0xf]
    %v1451 = vld [vmem:[#allocation8 + $0x190] sm:$0xf]
    %v1452 = vld [vmem:[#allocation8 + $0x194] sm:$0xf]
    %v1453 = vld [vmem:[#allocation8 + $0x198] sm:$0xf]
    %v1454 = vld [vmem:[#allocation8 + $0x19c] sm:$0xf]
    %v1455 = vld [vmem:[#allocation8 + $0x1a0] sm:$0xf]
    %v1456 = vld [vmem:[#allocation8 + $0x1a4] sm:$0xf]
    %v1457 = vld [vmem:[#allocation8 + $0x1a8] sm:$0xf]
    %v1458 = vld [vmem:[#allocation8 + $0x1ac] sm:$0xf]
    %v1459 = vld [vmem:[#allocation8 + $0x1b0] sm:$0xf]
    %v1460 = vld [vmem:[#allocation8 + $0x1b4] sm:$0xf]
    %v1461 = vld [vmem:[#allocation8 + $0x1b8] sm:$0xf]
    %v1462 = vld [vmem:[#allocation8 + $0x1bc] sm:$0xf]
    %v1463 = vld [vmem:[#allocation8 + $0x1c0] sm:$0xf]
    %v1464 = vld [vmem:[#allocation8 + $0x1c4] sm:$0xf]
    %v1465 = vld [vmem:[#allocation8 + $0x1c8] sm:$0xf]
    %v1466 = vld [vmem:[#allocation8 + $0x1cc] sm:$0xf]
    %v1467 = vld [vmem:[#allocation8 + $0x1d0] sm:$0xf]
    %v1468 = vld [vmem:[#allocation8 + $0x1d4] sm:$0xf]
    %v1469 = vld [vmem:[#allocation8 + $0x1d8] sm:$0xf]
    %v1470 = vld [vmem:[#allocation8 + $0x1dc] sm:$0xf]
    %v1471 = vld [vmem:[#allocation8 + $0x1e0] sm:$0xf]
    %v1472 = vld [vmem:[#allocation8 + $0x1e4] sm:$0xf]
    %v1473 = vld [vmem:[#allocation8 + $0x1e8] sm:$0xf]
    %v1474 = vld [vmem:[#allocation8 + $0x1ec] sm:$0xf]
    %v1475 = vld [vmem:[#allocation8 + $0x1f0] sm:$0xf]
    %v1476 = vld [vmem:[#allocation8 + $0x1f4] sm:$0xf]
    %v1477 = vld [vmem:[#allocation8 + $0x1f8] sm:$0xf]
    %v1478 = vld [vmem:[#allocation8 + $0x1fc] sm:$0xf]
    %v1479 = vld [vmem:[#allocation8 + $0x200] sm:$0xf]
    %v1480 = vld [vmem:[#allocation8 + $0x204] sm:$0xf]
    %v1481 = vld [vmem:[#allocation8 + $0x208] sm:$0xf]
    %v1482 = vld [vmem:[#allocation8 + $0x20c] sm:$0xf]
    %v1483 = vld [vmem:[#allocation8 + $0x210] sm:$0xf]
    %v1484 = vld [vmem:[#allocation8 + $0x214] sm:$0xf]
    %v1485 = vld [vmem:[#allocation8 + $0x218] sm:$0xf]
    %v1486 = vld [vmem:[#allocation8 + $0x21c] sm:$0xf]
    %v1487 = vld [vmem:[#allocation8 + $0x220] sm:$0xf]
    %v1488 = vld [vmem:[#allocation8 + $0x224] sm:$0xf]
    %v1489 = vld [vmem:[#allocation8 + $0x228] sm:$0xf]
    %v1490 = vld [vmem:[#allocation8 + $0x22c] sm:$0xf]
    %v1491 = vld [vmem:[#allocation8 + $0x230] sm:$0xf]
    %v1492 = vld [vmem:[#allocation8 + $0x234] sm:$0xf]
    %v1493 = vld [vmem:[#allocation8 + $0x238] sm:$0xf]
    %v1494 = vld [vmem:[#allocation8 + $0x23c] sm:$0xf]
    %v1495 = vld [vmem:[#allocation8 + $0x240] sm:$0xf]
    %v1496 = vld [vmem:[#allocation8 + $0x244] sm:$0xf]
    %v1497 = vld [vmem:[#allocation8 + $0x248] sm:$0xf]
    %v1498 = vld [vmem:[#allocation8 + $0x24c] sm:$0xf]
    %v1499 = vld [vmem:[#allocation8 + $0x250] sm:$0xf]
    %v1500 = vld [vmem:[#allocation8 + $0x254] sm:$0xf]
    %v1501 = vld [vmem:[#allocation8 + $0x258] sm:$0xf]
    %v1502 = vld [vmem:[#allocation8 + $0x25c] sm:$0xf]
    %v1503 = vld [vmem:[#allocation8 + $0x260] sm:$0xf]
    %v1504 = vld [vmem:[#allocation8 + $0x264] sm:$0xf]
    %v1505 = vld [vmem:[#allocation8 + $0x268] sm:$0xf]
    %v1506 = vld [vmem:[#allocation8 + $0x26c] sm:$0xf]
    %v1507 = vld [vmem:[#allocation8 + $0x270] sm:$0xf]
    %v1508 = vld [vmem:[#allocation8 + $0x274] sm:$0xf]
    %v1509 = vld [vmem:[#allocation8 + $0x278] sm:$0xf]
    %v1510 = vld [vmem:[#allocation8 + $0x27c] sm:$0xf]
    %v1511 = vld [vmem:[#allocation8 + $0x280] sm:$0xf]
    %v1512 = vld [vmem:[#allocation8 + $0x284] sm:$0xf]
    %v1513 = vld [vmem:[#allocation8 + $0x288] sm:$0xf]
    %v1514 = vld [vmem:[#allocation8 + $0x28c] sm:$0xf]
    %v1515 = vld [vmem:[#allocation8 + $0x290] sm:$0xf]
    %v1516 = vld [vmem:[#allocation8 + $0x294] sm:$0xf]
    %v1517 = vld [vmem:[#allocation8 + $0x298] sm:$0xf]
    %v1518 = vld [vmem:[#allocation8 + $0x29c] sm:$0xf]
    %v1519 = vld [vmem:[#allocation8 + $0x2a0] sm:$0xf]
    %v1520 = vld [vmem:[#allocation8 + $0x2a4] sm:$0xf]
    %v1521 = vld [vmem:[#allocation8 + $0x2a8] sm:$0xf]
    %v1522 = vld [vmem:[#allocation8 + $0x2ac] sm:$0xf]
    %v1523 = vld [vmem:[#allocation8 + $0x2b0] sm:$0xf]
    %v1524 = vld [vmem:[#allocation8 + $0x2b4] sm:$0xf]
    %v1525 = vld [vmem:[#allocation8 + $0x2b8] sm:$0xf]
    %v1526 = vld [vmem:[#allocation8 + $0x2bc] sm:$0xf]
    %v1527 = vld [vmem:[#allocation8 + $0x2c0] sm:$0xf]
    %v1528 = vld [vmem:[#allocation8 + $0x2c4] sm:$0xf]
    %v1529 = vld [vmem:[#allocation8 + $0x2c8] sm:$0xf]
    %v1530 = vld [vmem:[#allocation8 + $0x2cc] sm:$0xf]
    %v1531 = vld [vmem:[#allocation8 + $0x2d0] sm:$0xf]
    %v1532 = vld [vmem:[#allocation8 + $0x2d4] sm:$0xf]
    %v1533 = vld [vmem:[#allocation8 + $0x2d8] sm:$0xf]
    %v1534 = vld [vmem:[#allocation8 + $0x2dc] sm:$0xf]
    %v1535 = vld [vmem:[#allocation8 + $0x2e0] sm:$0xf]
    %v1536 = vld [vmem:[#allocation8 + $0x2e4] sm:$0xf]
    %v1537 = vld [vmem:[#allocation8 + $0x2e8] sm:$0xf]
    %v1538 = vld [vmem:[#allocation8 + $0x2ec] sm:$0xf]
    %v1539 = vld [vmem:[#allocation8 + $0x2f0] sm:$0xf]
    %v1540 = vld [vmem:[#allocation8 + $0x2f4] sm:$0xf]
    %v1541 = vld [vmem:[#allocation8 + $0x2f8] sm:$0xf]
    %v1542 = vld [vmem:[#allocation8 + $0x2fc] sm:$0xf]
    %v1543 = vld [vmem:[#allocation8 + $0x300] sm:$0xf]
    %v1544 = vld [vmem:[#allocation8 + $0x304] sm:$0xf]
    %v1545 = vld [vmem:[#allocation8 + $0x308] sm:$0xf]
    %v1546 = vld [vmem:[#allocation8 + $0x30c] sm:$0xf]
    %v1547 = vld [vmem:[#allocation8 + $0x310] sm:$0xf]
    %v1548 = vld [vmem:[#allocation8 + $0x314] sm:$0xf]
    %v1549 = vld [vmem:[#allocation8 + $0x318] sm:$0xf]
    %v1550 = vld [vmem:[#allocation8 + $0x31c] sm:$0xf]
    %v1551 = vld [vmem:[#allocation8 + $0x320] sm:$0xf]
    %v1552 = vld [vmem:[#allocation8 + $0x324] sm:$0xf]
    %v1553 = vld [vmem:[#allocation8 + $0x328] sm:$0xf]
    %v1554 = vld [vmem:[#allocation8 + $0x32c] sm:$0xf]
    %v1555 = vld [vmem:[#allocation8 + $0x330] sm:$0xf]
    %v1556 = vld [vmem:[#allocation8 + $0x334] sm:$0xf]
    %v1557 = vld [vmem:[#allocation8 + $0x338] sm:$0xf]
    %v1558 = vld [vmem:[#allocation8 + $0x33c] sm:$0xf]
    %v1559 = vld [vmem:[#allocation8 + $0x340] sm:$0xf]
    %v1560 = vld [vmem:[#allocation8 + $0x344] sm:$0xf]
    %v1561 = vld [vmem:[#allocation8 + $0x348] sm:$0xf]
    %v1562 = vld [vmem:[#allocation8 + $0x34c] sm:$0xf]
    %v1563 = vld [vmem:[#allocation8 + $0x350] sm:$0xf]
    %v1564 = vld [vmem:[#allocation8 + $0x354] sm:$0xf]
    %v1565 = vld [vmem:[#allocation8 + $0x358] sm:$0xf]
    %v1566 = vld [vmem:[#allocation8 + $0x35c] sm:$0xf]
    %v1567 = vld [vmem:[#allocation8 + $0x360] sm:$0xf]
    %v1568 = vld [vmem:[#allocation8 + $0x364] sm:$0xf]
    %v1569 = vld [vmem:[#allocation8 + $0x368] sm:$0xf]
    %v1570 = vld [vmem:[#allocation8 + $0x36c] sm:$0xf]
    %v1571 = vld [vmem:[#allocation8 + $0x370] sm:$0xf]
    %v1572 = vld [vmem:[#allocation8 + $0x374] sm:$0xf]
    %v1573 = vld [vmem:[#allocation8 + $0x378] sm:$0xf]
    %v1574 = vld [vmem:[#allocation8 + $0x37c] sm:$0xf]
    %v1575 = vld [vmem:[#allocation8 + $0x380] sm:$0xf]
    %v1576 = vld [vmem:[#allocation8 + $0x384] sm:$0xf]
    %v1577 = vld [vmem:[#allocation8 + $0x388] sm:$0xf]
    %v1578 = vld [vmem:[#allocation8 + $0x38c] sm:$0xf]
    %v1579 = vld [vmem:[#allocation8 + $0x390] sm:$0xf]
    %v1580 = vld [vmem:[#allocation8 + $0x394] sm:$0xf]
    %v1581 = vld [vmem:[#allocation8 + $0x398] sm:$0xf]
    %v1582 = vld [vmem:[#allocation8 + $0x39c] sm:$0xf]
    %v1583 = vld [vmem:[#allocation8 + $0x3a0] sm:$0xf]
    %v1584 = vld [vmem:[#allocation8 + $0x3a4] sm:$0xf]
    %v1585 = vld [vmem:[#allocation8 + $0x3a8] sm:$0xf]
    %v1586 = vld [vmem:[#allocation8 + $0x3ac] sm:$0xf]
    %v1587 = vld [vmem:[#allocation8 + $0x3b0] sm:$0xf]
    %v1588 = vld [vmem:[#allocation8 + $0x3b4] sm:$0xf]
    %v1589 = vld [vmem:[#allocation8 + $0x3b8] sm:$0xf]
    %v1590 = vld [vmem:[#allocation8 + $0x3bc] sm:$0xf]
    %v1591 = vld [vmem:[#allocation8 + $0x3c0] sm:$0xf]
    %v1592 = vld [vmem:[#allocation8 + $0x3c4] sm:$0xf]
    %v1593 = vld [vmem:[#allocation8 + $0x3c8] sm:$0xf]
    %v1594 = vld [vmem:[#allocation8 + $0x3cc] sm:$0xf]
    %v1595 = vld [vmem:[#allocation8 + $0x3d0] sm:$0xf]
    %v1596 = vld [vmem:[#allocation8 + $0x3d4] sm:$0xf]
    %v1597 = vld [vmem:[#allocation8 + $0x3d8] sm:$0xf]
    %v1598 = vld [vmem:[#allocation8 + $0x3dc] sm:$0xf]
    %v1599 = vld [vmem:[#allocation8 + $0x3e0] sm:$0xf]
    %v1600 = vld [vmem:[#allocation8 + $0x3e4] sm:$0xf]
    %v1601 = vld [vmem:[#allocation8 + $0x3e8] sm:$0xf]
    %v1602 = vld [vmem:[#allocation8 + $0x3ec] sm:$0xf]
    %v1603 = vld [vmem:[#allocation8 + $0x3f0] sm:$0xf]
    %v1604 = vld [vmem:[#allocation8 + $0x3f4] sm:$0xf]
    %v1605 = vld [vmem:[#allocation8 + $0x3f8] sm:$0xf]
    %v1606 = vld [vmem:[#allocation8 + $0x3fc] sm:$0xf]
    %v1607 = vld [vmem:[#allocation8 + $0x400] sm:$0xf]
    %v1608 = vld [vmem:[#allocation8 + $0x404] sm:$0xf]
    %v1609 = vld [vmem:[#allocation8 + $0x408] sm:$0xf]
    %v1610 = vld [vmem:[#allocation8 + $0x40c] sm:$0xf]
    %v1611 = vld [vmem:[#allocation8 + $0x410] sm:$0xf]
    %v1612 = vld [vmem:[#allocation8 + $0x414] sm:$0xf]
    %v1613 = vld [vmem:[#allocation8 + $0x418] sm:$0xf]
    %v1614 = vld [vmem:[#allocation8 + $0x41c] sm:$0xf]
    %v1615 = vld [vmem:[#allocation8 + $0x420] sm:$0xf]
    %v1616 = vld [vmem:[#allocation8 + $0x424] sm:$0xf]
    %v1617 = vld [vmem:[#allocation8 + $0x428] sm:$0xf]
    %v1618 = vld [vmem:[#allocation8 + $0x42c] sm:$0xf]
    %v1619 = vld [vmem:[#allocation8 + $0x430] sm:$0xf]
    %v1620 = vld [vmem:[#allocation8 + $0x434] sm:$0xf]
    %v1621 = vld [vmem:[#allocation8 + $0x438] sm:$0xf]
    %v1622 = vld [vmem:[#allocation8 + $0x43c] sm:$0xf]
    %v1623 = vld [vmem:[#allocation8 + $0x440] sm:$0xf]
    %v1624 = vld [vmem:[#allocation8 + $0x444] sm:$0xf]
    %v1625 = vld [vmem:[#allocation8 + $0x448] sm:$0xf]
    %v1626 = vld [vmem:[#allocation8 + $0x44c] sm:$0xf]
    %v1627 = vld [vmem:[#allocation8 + $0x450] sm:$0xf]
    %v1628 = vld [vmem:[#allocation8 + $0x454] sm:$0xf]
    %v1629 = vld [vmem:[#allocation8 + $0x458] sm:$0xf]
    %v1630 = vld [vmem:[#allocation8 + $0x45c] sm:$0xf]
    %v1631 = vld [vmem:[#allocation8 + $0x460] sm:$0xf]
    %v1632 = vld [vmem:[#allocation8 + $0x464] sm:$0xf]
    %v1633 = vld [vmem:[#allocation8 + $0x468] sm:$0xf]
    %v1634 = vld [vmem:[#allocation8 + $0x46c] sm:$0xf]
    %v1635 = vld [vmem:[#allocation8 + $0x470] sm:$0xf]
    %v1636 = vld [vmem:[#allocation8 + $0x474] sm:$0xf]
    %v1637 = vld [vmem:[#allocation8 + $0x478] sm:$0xf]
    %v1638 = vld [vmem:[#allocation8 + $0x47c] sm:$0xf]
    %v1639 = vld [vmem:[#allocation8 + $0x480] sm:$0xf]
    %v1640 = vld [vmem:[#allocation8 + $0x484] sm:$0xf]
    %v1641 = vld [vmem:[#allocation8 + $0x488] sm:$0xf]
    %v1642 = vld [vmem:[#allocation8 + $0x48c] sm:$0xf]
    %v1643 = vld [vmem:[#allocation8 + $0x490] sm:$0xf]
    %v1644 = vld [vmem:[#allocation8 + $0x494] sm:$0xf]
    %v1645 = vld [vmem:[#allocation8 + $0x498] sm:$0xf]
    %v1646 = vld [vmem:[#allocation8 + $0x49c] sm:$0xf]
    %v1647 = vld [vmem:[#allocation8 + $0x4a0] sm:$0xf]
    %v1648 = vld [vmem:[#allocation8 + $0x4a4] sm:$0xf]
    %v1649 = vld [vmem:[#allocation8 + $0x4a8] sm:$0xf]
    %v1650 = vld [vmem:[#allocation8 + $0x4ac] sm:$0xf]
    %v1651 = vld [vmem:[#allocation8 + $0x4b0] sm:$0xf]
    %v1652 = vld [vmem:[#allocation8 + $0x4b4] sm:$0xf]
    %v1653 = vld [vmem:[#allocation8 + $0x4b8] sm:$0xf]
    %v1654 = vld [vmem:[#allocation8 + $0x4bc] sm:$0xf]
    %v1655 = vld [vmem:[#allocation8 + $0x4c0] sm:$0xf]
    %v1656 = vld [vmem:[#allocation8 + $0x4c4] sm:$0xf]
    %v1657 = vld [vmem:[#allocation8 + $0x4c8] sm:$0xf]
    %v1658 = vld [vmem:[#allocation8 + $0x4cc] sm:$0xf]
    %v1659 = vld [vmem:[#allocation8 + $0x4d0] sm:$0xf]
    %v1660 = vld [vmem:[#allocation8 + $0x4d4] sm:$0xf]
    %v1661 = vld [vmem:[#allocation8 + $0x4d8] sm:$0xf]
    %v1662 = vld [vmem:[#allocation8 + $0x4dc] sm:$0xf]
    %v1663 = vld [vmem:[#allocation8 + $0x4e0] sm:$0xf]
    %v1664 = vld [vmem:[#allocation8 + $0x4e4] sm:$0xf]
    %v1665 = vld [vmem:[#allocation8 + $0x4e8] sm:$0xf]
    %v1666 = vld [vmem:[#allocation8 + $0x4ec] sm:$0xf]
    %v1667 = vld [vmem:[#allocation8 + $0x4f0] sm:$0xf]
    %v1668 = vld [vmem:[#allocation8 + $0x4f4] sm:$0xf]
    %v1669 = vld [vmem:[#allocation8 + $0x4f8] sm:$0xf]
    %v1670 = vld [vmem:[#allocation8 + $0x4fc] sm:$0xf]
    %v1671 = vld [vmem:[#allocation8 + $0x500] sm:$0xf]
    %v1672 = vld [vmem:[#allocation8 + $0x504] sm:$0xf]
    %v1673 = vld [vmem:[#allocation8 + $0x508] sm:$0xf]
    %v1674 = vld [vmem:[#allocation8 + $0x50c] sm:$0xf]
    %v1675 = vld [vmem:[#allocation8 + $0x510] sm:$0xf]
    %v1676 = vld [vmem:[#allocation8 + $0x514] sm:$0xf]
    %v1677 = vld [vmem:[#allocation8 + $0x518] sm:$0xf]
    %v1678 = vld [vmem:[#allocation8 + $0x51c] sm:$0xf]
    %v1679 = vld [vmem:[#allocation8 + $0x520] sm:$0xf]
    %v1680 = vld [vmem:[#allocation8 + $0x524] sm:$0xf]
    %v1681 = vld [vmem:[#allocation8 + $0x528] sm:$0xf]
    %v1682 = vld [vmem:[#allocation8 + $0x52c] sm:$0xf]
    %v1683 = vld [vmem:[#allocation8 + $0x530] sm:$0xf]
    %v1684 = vld [vmem:[#allocation8 + $0x534] sm:$0xf]
    %v1685 = vld [vmem:[#allocation8 + $0x538] sm:$0xf]
    %v1686 = vld [vmem:[#allocation8 + $0x53c] sm:$0xf]
    %v1687 = vld [vmem:[#allocation8 + $0x540] sm:$0xf]
    %v1688 = vld [vmem:[#allocation8 + $0x544] sm:$0xf]
    %v1689 = vld [vmem:[#allocation8 + $0x548] sm:$0xf]
    %v1690 = vld [vmem:[#allocation8 + $0x54c] sm:$0xf]
    %v1691 = vld [vmem:[#allocation8 + $0x550] sm:$0xf]
    %v1692 = vld [vmem:[#allocation8 + $0x554] sm:$0xf]
    %v1693 = vld [vmem:[#allocation8 + $0x558] sm:$0xf]
    %v1694 = vld [vmem:[#allocation8 + $0x55c] sm:$0xf]
    %v1695 = vld [vmem:[#allocation8 + $0x560] sm:$0xf]
    %v1696 = vld [vmem:[#allocation8 + $0x564] sm:$0xf]
    %v1697 = vld [vmem:[#allocation8 + $0x568] sm:$0xf]
    %v1698 = vld [vmem:[#allocation8 + $0x56c] sm:$0xf]
    %v1699 = vld [vmem:[#allocation8 + $0x570] sm:$0xf]
    %v1700 = vld [vmem:[#allocation8 + $0x574] sm:$0xf]
    %v1701 = vld [vmem:[#allocation8 + $0x578] sm:$0xf]
    %v1702 = vld [vmem:[#allocation8 + $0x57c] sm:$0xf]
    %v1703 = vld [vmem:[#allocation8 + $0x580] sm:$0xf]
    %v1704 = vld [vmem:[#allocation8 + $0x584] sm:$0xf]
    %v1705 = vld [vmem:[#allocation8 + $0x588] sm:$0xf]
    %v1706 = vld [vmem:[#allocation8 + $0x58c] sm:$0xf]
    %v1707 = vld [vmem:[#allocation8 + $0x590] sm:$0xf]
    %v1708 = vld [vmem:[#allocation8 + $0x594] sm:$0xf]
    %v1709 = vld [vmem:[#allocation8 + $0x598] sm:$0xf]
    %v1710 = vld [vmem:[#allocation8 + $0x59c] sm:$0xf]
    %v1711 = vld [vmem:[#allocation8 + $0x5a0] sm:$0xf]
    %v1712 = vld [vmem:[#allocation8 + $0x5a4] sm:$0xf]
    %v1713 = vld [vmem:[#allocation8 + $0x5a8] sm:$0xf]
    %v1714 = vld [vmem:[#allocation8 + $0x5ac] sm:$0xf]
    %v1715 = vld [vmem:[#allocation8 + $0x5b0] sm:$0xf]
    %v1716 = vld [vmem:[#allocation8 + $0x5b4] sm:$0xf]
    %v1717 = vld [vmem:[#allocation8 + $0x5b8] sm:$0xf]
    %v1718 = vld [vmem:[#allocation8 + $0x5bc] sm:$0xf]
    %v1719 = vld [vmem:[#allocation8 + $0x5c0] sm:$0xf]
    %v1720 = vld [vmem:[#allocation8 + $0x5c4] sm:$0xf]
    %v1721 = vld [vmem:[#allocation8 + $0x5c8] sm:$0xf]
    %v1722 = vld [vmem:[#allocation8 + $0x5cc] sm:$0xf]
    %v1723 = vld [vmem:[#allocation8 + $0x5d0] sm:$0xf]
    %v1724 = vld [vmem:[#allocation8 + $0x5d4] sm:$0xf]
    %v1725 = vld [vmem:[#allocation8 + $0x5d8] sm:$0xf]
    %v1726 = vld [vmem:[#allocation8 + $0x5dc] sm:$0xf]
    %v1727 = vld [vmem:[#allocation8 + $0x5e0] sm:$0xf]
    %v1728 = vld [vmem:[#allocation8 + $0x5e4] sm:$0xf]
    %v1729 = vld [vmem:[#allocation8 + $0x5e8] sm:$0xf]
    %v1730 = vld [vmem:[#allocation8 + $0x5ec] sm:$0xf]
    %v1731 = vld [vmem:[#allocation8 + $0x5f0] sm:$0xf]
    %v1732 = vld [vmem:[#allocation8 + $0x5f4] sm:$0xf]
    %v1733 = vld [vmem:[#allocation8 + $0x5f8] sm:$0xf]
    %v1734 = vld [vmem:[#allocation8 + $0x5fc] sm:$0xf]
    %v1735 = vld [vmem:[#allocation8 + $0x600] sm:$0xf]
    %v1736 = vld [vmem:[#allocation8 + $0x604] sm:$0xf]
    %v1737 = vld [vmem:[#allocation8 + $0x608] sm:$0xf]
    %v1738 = vld [vmem:[#allocation8 + $0x60c] sm:$0xf]
    %v1739 = vld [vmem:[#allocation8 + $0x610] sm:$0xf]
    %v1740 = vld [vmem:[#allocation8 + $0x614] sm:$0xf]
    %v1741 = vld [vmem:[#allocation8 + $0x618] sm:$0xf]
    %v1742 = vld [vmem:[#allocation8 + $0x61c] sm:$0xf]
    %v1743 = vld [vmem:[#allocation8 + $0x620] sm:$0xf]
    %v1744 = vld [vmem:[#allocation8 + $0x624] sm:$0xf]
    %v1745 = vld [vmem:[#allocation8 + $0x628] sm:$0xf]
    %v1746 = vld [vmem:[#allocation8 + $0x62c] sm:$0xf]
    %v1747 = vld [vmem:[#allocation8 + $0x630] sm:$0xf]
    %v1748 = vld [vmem:[#allocation8 + $0x634] sm:$0xf]
    %v1749 = vld [vmem:[#allocation8 + $0x638] sm:$0xf]
    %v1750 = vld [vmem:[#allocation8 + $0x63c] sm:$0xf]
    %v1751 = vld [vmem:[#allocation8 + $0x640] sm:$0xf]
    %v1752 = vld [vmem:[#allocation8 + $0x644] sm:$0xf]
    %v1753 = vld [vmem:[#allocation8 + $0x648] sm:$0xf]
    %v1754 = vld [vmem:[#allocation8 + $0x64c] sm:$0xf]
    %v1755 = vld [vmem:[#allocation8 + $0x650] sm:$0xf]
    %v1756 = vld [vmem:[#allocation8 + $0x654] sm:$0xf]
    %v1757 = vld [vmem:[#allocation8 + $0x658] sm:$0xf]
    %v1758 = vld [vmem:[#allocation8 + $0x65c] sm:$0xf]
    %v1759 = vld [vmem:[#allocation8 + $0x660] sm:$0xf]
    %v1760 = vld [vmem:[#allocation8 + $0x664] sm:$0xf]
    %v1761 = vld [vmem:[#allocation8 + $0x668] sm:$0xf]
    %v1762 = vld [vmem:[#allocation8 + $0x66c] sm:$0xf]
    %v1763 = vld [vmem:[#allocation8 + $0x670] sm:$0xf]
    %v1764 = vld [vmem:[#allocation8 + $0x674] sm:$0xf]
    %v1765 = vld [vmem:[#allocation8 + $0x678] sm:$0xf]
    %v1766 = vld [vmem:[#allocation8 + $0x67c] sm:$0xf]
    %v1767 = vld [vmem:[#allocation8 + $0x680] sm:$0xf]
    %v1768 = vld [vmem:[#allocation8 + $0x684] sm:$0xf]
    %v1769 = vld [vmem:[#allocation8 + $0x688] sm:$0xf]
    %v1770 = vld [vmem:[#allocation8 + $0x68c] sm:$0xf]
    %v1771 = vld [vmem:[#allocation8 + $0x690] sm:$0xf]
    %v1772 = vld [vmem:[#allocation8 + $0x694] sm:$0xf]
    %v1773 = vld [vmem:[#allocation8 + $0x698] sm:$0xf]
    %v1774 = vld [vmem:[#allocation8 + $0x69c] sm:$0xf]
    %v1775 = vld [vmem:[#allocation8 + $0x6a0] sm:$0xf]
    %v1776 = vld [vmem:[#allocation8 + $0x6a4] sm:$0xf]
    %v1777 = vld [vmem:[#allocation8 + $0x6a8] sm:$0xf]
    %v1778 = vld [vmem:[#allocation8 + $0x6ac] sm:$0xf]
    %v1779 = vld [vmem:[#allocation8 + $0x6b0] sm:$0xf]
    %v1780 = vld [vmem:[#allocation8 + $0x6b4] sm:$0xf]
    %v1781 = vld [vmem:[#allocation8 + $0x6b8] sm:$0xf]
    %v1782 = vld [vmem:[#allocation8 + $0x6bc] sm:$0xf]
    %v1783 = vld [vmem:[#allocation8 + $0x6c0] sm:$0xf]
    %v1784 = vld [vmem:[#allocation8 + $0x6c4] sm:$0xf]
    %v1785 = vld [vmem:[#allocation8 + $0x6c8] sm:$0xf]
    %v1786 = vld [vmem:[#allocation8 + $0x6cc] sm:$0xf]
    %v1787 = vld [vmem:[#allocation8 + $0x6d0] sm:$0xf]
    %v1788 = vld [vmem:[#allocation8 + $0x6d4] sm:$0xf]
    %v1789 = vld [vmem:[#allocation8 + $0x6d8] sm:$0xf]
    %v1790 = vld [vmem:[#allocation8 + $0x6dc] sm:$0xf]
    %v1791 = vld [vmem:[#allocation8 + $0x6e0] sm:$0xf]
    %v1792 = vld [vmem:[#allocation8 + $0x6e4] sm:$0xf]
    %v1793 = vld [vmem:[#allocation8 + $0x6e8] sm:$0xf]
    %v1794 = vld [vmem:[#allocation8 + $0x6ec] sm:$0xf]
    %v1795 = vld [vmem:[#allocation8 + $0x6f0] sm:$0xf]
    %v1796 = vld [vmem:[#allocation8 + $0x6f4] sm:$0xf]
    %v1797 = vld [vmem:[#allocation8 + $0x6f8] sm:$0xf]
    %v1798 = vld [vmem:[#allocation8 + $0x6fc] sm:$0xf]
    %v1799 = vld [vmem:[#allocation8 + $0x700] sm:$0xf]
    %v1800 = vld [vmem:[#allocation8 + $0x704] sm:$0xf]
    %v1801 = vld [vmem:[#allocation8 + $0x708] sm:$0xf]
    %v1802 = vld [vmem:[#allocation8 + $0x70c] sm:$0xf]
    %v1803 = vld [vmem:[#allocation8 + $0x710] sm:$0xf]
    %v1804 = vld [vmem:[#allocation8 + $0x714] sm:$0xf]
    %v1805 = vld [vmem:[#allocation8 + $0x718] sm:$0xf]
    %v1806 = vld [vmem:[#allocation8 + $0x71c] sm:$0xf]
    %v1807 = vld [vmem:[#allocation8 + $0x720] sm:$0xf]
    %v1808 = vld [vmem:[#allocation8 + $0x724] sm:$0xf]
    %v1809 = vld [vmem:[#allocation8 + $0x728] sm:$0xf]
    %v1810 = vld [vmem:[#allocation8 + $0x72c] sm:$0xf]
    %v1811 = vld [vmem:[#allocation8 + $0x730] sm:$0xf]
    %v1812 = vld [vmem:[#allocation8 + $0x734] sm:$0xf]
    %v1813 = vld [vmem:[#allocation8 + $0x738] sm:$0xf]
    %v1814 = vld [vmem:[#allocation8 + $0x73c] sm:$0xf]
    %v1815 = vld [vmem:[#allocation8 + $0x740] sm:$0xf]
    %v1816 = vld [vmem:[#allocation8 + $0x744] sm:$0xf]
    %v1817 = vld [vmem:[#allocation8 + $0x748] sm:$0xf]
    %v1818 = vld [vmem:[#allocation8 + $0x74c] sm:$0xf]
    %v1819 = vld [vmem:[#allocation8 + $0x750] sm:$0xf]
    %v1820 = vld [vmem:[#allocation8 + $0x754] sm:$0xf]
    %v1821 = vld [vmem:[#allocation8 + $0x758] sm:$0xf]
    %v1822 = vld [vmem:[#allocation8 + $0x75c] sm:$0xf]
    %v1823 = vld [vmem:[#allocation8 + $0x760] sm:$0xf]
    %v1824 = vld [vmem:[#allocation8 + $0x764] sm:$0xf]
    %v1825 = vld [vmem:[#allocation8 + $0x768] sm:$0xf]
    %v1826 = vld [vmem:[#allocation8 + $0x76c] sm:$0xf]
    %v1827 = vld [vmem:[#allocation8 + $0x770] sm:$0xf]
    %v1828 = vld [vmem:[#allocation8 + $0x774] sm:$0xf]
    %v1829 = vld [vmem:[#allocation8 + $0x778] sm:$0xf]
    %v1830 = vld [vmem:[#allocation8 + $0x77c] sm:$0xf]
    %v1831 = vld [vmem:[#allocation8 + $0x780] sm:$0xf]
    %v1832 = vld [vmem:[#allocation8 + $0x784] sm:$0xf]
    %v1833 = vld [vmem:[#allocation8 + $0x788] sm:$0xf]
    %v1834 = vld [vmem:[#allocation8 + $0x78c] sm:$0xf]
    %v1835 = vld [vmem:[#allocation8 + $0x790] sm:$0xf]
    %v1836 = vld [vmem:[#allocation8 + $0x794] sm:$0xf]
    %v1837 = vld [vmem:[#allocation8 + $0x798] sm:$0xf]
    %v1838 = vld [vmem:[#allocation8 + $0x79c] sm:$0xf]
    %v1839 = vld [vmem:[#allocation8 + $0x7a0] sm:$0xf]
    %v1840 = vld [vmem:[#allocation8 + $0x7a4] sm:$0xf]
    %v1841 = vld [vmem:[#allocation8 + $0x7a8] sm:$0xf]
    %v1842 = vld [vmem:[#allocation8 + $0x7ac] sm:$0xf]
    %v1843 = vld [vmem:[#allocation8 + $0x7b0] sm:$0xf]
    %v1844 = vld [vmem:[#allocation8 + $0x7b4] sm:$0xf]
    %v1845 = vld [vmem:[#allocation8 + $0x7b8] sm:$0xf]
    %v1846 = vld [vmem:[#allocation8 + $0x7bc] sm:$0xf]
    %v1847 = vld [vmem:[#allocation8 + $0x7c0] sm:$0xf]
    %v1848 = vld [vmem:[#allocation8 + $0x7c4] sm:$0xf]
    %v1849 = vld [vmem:[#allocation8 + $0x7c8] sm:$0xf]
    %v1850 = vld [vmem:[#allocation8 + $0x7cc] sm:$0xf]
    %v1851 = vld [vmem:[#allocation8 + $0x7d0] sm:$0xf]
    %v1852 = vld [vmem:[#allocation8 + $0x7d4] sm:$0xf]
    %v1853 = vld [vmem:[#allocation8 + $0x7d8] sm:$0xf]
    %v1854 = vld [vmem:[#allocation8 + $0x7dc] sm:$0xf]
    %v1855 = vld [vmem:[#allocation8 + $0x7e0] sm:$0xf]
    %v1856 = vld [vmem:[#allocation8 + $0x7e4] sm:$0xf]
    %v1857 = vld [vmem:[#allocation8 + $0x7e8] sm:$0xf]
    %v1858 = vld [vmem:[#allocation8 + $0x7ec] sm:$0xf]
    %v1859 = vld [vmem:[#allocation8 + $0x7f0] sm:$0xf]
    %v1860 = vld [vmem:[#allocation8 + $0x7f4] sm:$0xf]
    %v1861 = vld [vmem:[#allocation8 + $0x7f8] sm:$0xf]
    %v1862 = vld [vmem:[#allocation8 + $0x7fc] sm:$0xf]
    %v1863 = vld [vmem:[%s4] sm:$0x1]
    %v1865 = vlaneseq
    %v1866 = vshrl.u32 %v1865, 7
    %v1867 = vsub.s32 0, %v1866
    %v1868 = vrot.slane %v1863, %v1867
    %v2382 = vunpack.c.l.b16 %v1351
    %v2383 = vunpack.c.l.b16 %v1352
    %v2384 = vunpack.c.l.b16 %v1353
    %v2385 = vunpack.c.l.b16 %v1354
    %v2386 = vunpack.c.l.b16 %v1355
    %v2387 = vunpack.c.l.b16 %v1356
    %v2388 = vunpack.c.l.b16 %v1357
    %v2389 = vunpack.c.l.b16 %v1358
    %v2390 = vunpack.c.l.b16 %v1359
    %v2391 = vunpack.c.l.b16 %v1360
    %v2392 = vunpack.c.l.b16 %v1361
    %v2393 = vunpack.c.l.b16 %v1362
    %v2394 = vunpack.c.l.b16 %v1363
    %v2395 = vunpack.c.l.b16 %v1364
    %v2396 = vunpack.c.l.b16 %v1365
    %v2397 = vunpack.c.l.b16 %v1366
    %v2398 = vunpack.c.l.b16 %v1367
    %v2399 = vunpack.c.l.b16 %v1368
    %v2400 = vunpack.c.l.b16 %v1369
    %v2401 = vunpack.c.l.b16 %v1370
    %v2402 = vunpack.c.l.b16 %v1371
    %v2403 = vunpack.c.l.b16 %v1372
    %v2404 = vunpack.c.l.b16 %v1373
    %v2405 = vunpack.c.l.b16 %v1374
    %v2406 = vunpack.c.l.b16 %v1375
    %v2407 = vunpack.c.l.b16 %v1376
    %v2408 = vunpack.c.l.b16 %v1377
    %v2409 = vunpack.c.l.b16 %v1378
    %v2410 = vunpack.c.l.b16 %v1379
    %v2411 = vunpack.c.l.b16 %v1380
    %v2412 = vunpack.c.l.b16 %v1381
    %v2413 = vunpack.c.l.b16 %v1382
    %v2414 = vunpack.c.l.b16 %v1383
    %v2415 = vunpack.c.l.b16 %v1384
    %v2416 = vunpack.c.l.b16 %v1385
    %v2417 = vunpack.c.l.b16 %v1386
    %v2418 = vunpack.c.l.b16 %v1387
    %v2419 = vunpack.c.l.b16 %v1388
    %v2420 = vunpack.c.l.b16 %v1389
    %v2421 = vunpack.c.l.b16 %v1390
    %v2422 = vunpack.c.l.b16 %v1391
    %v2423 = vunpack.c.l.b16 %v1392
    %v2424 = vunpack.c.l.b16 %v1393
    %v2425 = vunpack.c.l.b16 %v1394
    %v2426 = vunpack.c.l.b16 %v1395
    %v2427 = vunpack.c.l.b16 %v1396
    %v2428 = vunpack.c.l.b16 %v1397
    %v2429 = vunpack.c.l.b16 %v1398
    %v2430 = vunpack.c.l.b16 %v1399
    %v2431 = vunpack.c.l.b16 %v1400
    %v2432 = vunpack.c.l.b16 %v1401
    %v2433 = vunpack.c.l.b16 %v1402
    %v2434 = vunpack.c.l.b16 %v1403
    %v2435 = vunpack.c.l.b16 %v1404
    %v2436 = vunpack.c.l.b16 %v1405
    %v2437 = vunpack.c.l.b16 %v1406
    %v2438 = vunpack.c.l.b16 %v1407
    %v2439 = vunpack.c.l.b16 %v1408
    %v2440 = vunpack.c.l.b16 %v1409
    %v2441 = vunpack.c.l.b16 %v1410
    %v2442 = vunpack.c.l.b16 %v1411
    %v2443 = vunpack.c.l.b16 %v1412
    %v2444 = vunpack.c.l.b16 %v1413
    %v2445 = vunpack.c.l.b16 %v1414
    %v2446 = vunpack.c.l.b16 %v1415
    %v2447 = vunpack.c.l.b16 %v1416
    %v2448 = vunpack.c.l.b16 %v1417
    %v2449 = vunpack.c.l.b16 %v1418
    %v2450 = vunpack.c.l.b16 %v1419
    %v2451 = vunpack.c.l.b16 %v1420
    %v2452 = vunpack.c.l.b16 %v1421
    %v2453 = vunpack.c.l.b16 %v1422
    %v2454 = vunpack.c.l.b16 %v1423
    %v2455 = vunpack.c.l.b16 %v1424
    %v2456 = vunpack.c.l.b16 %v1425
    %v2457 = vunpack.c.l.b16 %v1426
    %v2458 = vunpack.c.l.b16 %v1427
    %v2459 = vunpack.c.l.b16 %v1428
    %v2460 = vunpack.c.l.b16 %v1429
    %v2461 = vunpack.c.l.b16 %v1430
    %v2462 = vunpack.c.l.b16 %v1431
    %v2463 = vunpack.c.l.b16 %v1432
    %v2464 = vunpack.c.l.b16 %v1433
    %v2465 = vunpack.c.l.b16 %v1434
    %v2466 = vunpack.c.l.b16 %v1435
    %v2467 = vunpack.c.l.b16 %v1436
    %v2468 = vunpack.c.l.b16 %v1437
    %v2469 = vunpack.c.l.b16 %v1438
    %v2470 = vunpack.c.l.b16 %v1439
    %v2471 = vunpack.c.l.b16 %v1440
    %v2472 = vunpack.c.l.b16 %v1441
    %v2473 = vunpack.c.l.b16 %v1442
    %v2474 = vunpack.c.l.b16 %v1443
    %v2475 = vunpack.c.l.b16 %v1444
    %v2476 = vunpack.c.l.b16 %v1445
    %v2477 = vunpack.c.l.b16 %v1446
    %v2478 = vunpack.c.l.b16 %v1447
    %v2479 = vunpack.c.l.b16 %v1448
    %v2480 = vunpack.c.l.b16 %v1449
    %v2481 = vunpack.c.l.b16 %v1450
    %v2482 = vunpack.c.l.b16 %v1451
    %v2483 = vunpack.c.l.b16 %v1452
    %v2484 = vunpack.c.l.b16 %v1453
    %v2485 = vunpack.c.l.b16 %v1454
    %v2486 = vunpack.c.l.b16 %v1455
    %v2487 = vunpack.c.l.b16 %v1456
    %v2488 = vunpack.c.l.b16 %v1457
    %v2489 = vunpack.c.l.b16 %v1458
    %v2490 = vunpack.c.l.b16 %v1459
    %v2491 = vunpack.c.l.b16 %v1460
    %v2492 = vunpack.c.l.b16 %v1461
    %v2493 = vunpack.c.l.b16 %v1462
    %v2494 = vunpack.c.l.b16 %v1463
    %v2495 = vunpack.c.l.b16 %v1464
    %v2496 = vunpack.c.l.b16 %v1465
    %v2497 = vunpack.c.l.b16 %v1466
    %v2498 = vunpack.c.l.b16 %v1467
    %v2499 = vunpack.c.l.b16 %v1468
    %v2500 = vunpack.c.l.b16 %v1469
    %v2501 = vunpack.c.l.b16 %v1470
    %v2502 = vunpack.c.l.b16 %v1471
    %v2503 = vunpack.c.l.b16 %v1472
    %v2504 = vunpack.c.l.b16 %v1473
    %v2505 = vunpack.c.l.b16 %v1474
    %v2506 = vunpack.c.l.b16 %v1475
    %v2507 = vunpack.c.l.b16 %v1476
    %v2508 = vunpack.c.l.b16 %v1477
    %v2509 = vunpack.c.l.b16 %v1478
    %v2510 = vunpack.c.l.b16 %v1479
    %v2511 = vunpack.c.l.b16 %v1480
    %v2512 = vunpack.c.l.b16 %v1481
    %v2513 = vunpack.c.l.b16 %v1482
    %v2514 = vunpack.c.l.b16 %v1483
    %v2515 = vunpack.c.l.b16 %v1484
    %v2516 = vunpack.c.l.b16 %v1485
    %v2517 = vunpack.c.l.b16 %v1486
    %v2518 = vunpack.c.l.b16 %v1487
    %v2519 = vunpack.c.l.b16 %v1488
    %v2520 = vunpack.c.l.b16 %v1489
    %v2521 = vunpack.c.l.b16 %v1490
    %v2522 = vunpack.c.l.b16 %v1491
    %v2523 = vunpack.c.l.b16 %v1492
    %v2524 = vunpack.c.l.b16 %v1493
    %v2525 = vunpack.c.l.b16 %v1494
    %v2526 = vunpack.c.l.b16 %v1495
    %v2527 = vunpack.c.l.b16 %v1496
    %v2528 = vunpack.c.l.b16 %v1497
    %v2529 = vunpack.c.l.b16 %v1498
    %v2530 = vunpack.c.l.b16 %v1499
    %v2531 = vunpack.c.l.b16 %v1500
    %v2532 = vunpack.c.l.b16 %v1501
    %v2533 = vunpack.c.l.b16 %v1502
    %v2534 = vunpack.c.l.b16 %v1503
    %v2535 = vunpack.c.l.b16 %v1504
    %v2536 = vunpack.c.l.b16 %v1505
    %v2537 = vunpack.c.l.b16 %v1506
    %v2538 = vunpack.c.l.b16 %v1507
    %v2539 = vunpack.c.l.b16 %v1508
    %v2540 = vunpack.c.l.b16 %v1509
    %v2541 = vunpack.c.l.b16 %v1510
    %v2542 = vunpack.c.l.b16 %v1511
    %v2543 = vunpack.c.l.b16 %v1512
    %v2544 = vunpack.c.l.b16 %v1513
    %v2545 = vunpack.c.l.b16 %v1514
    %v2546 = vunpack.c.l.b16 %v1515
    %v2547 = vunpack.c.l.b16 %v1516
    %v2548 = vunpack.c.l.b16 %v1517
    %v2549 = vunpack.c.l.b16 %v1518
    %v2550 = vunpack.c.l.b16 %v1519
    %v2551 = vunpack.c.l.b16 %v1520
    %v2552 = vunpack.c.l.b16 %v1521
    %v2553 = vunpack.c.l.b16 %v1522
    %v2554 = vunpack.c.l.b16 %v1523
    %v2555 = vunpack.c.l.b16 %v1524
    %v2556 = vunpack.c.l.b16 %v1525
    %v2557 = vunpack.c.l.b16 %v1526
    %v2558 = vunpack.c.l.b16 %v1527
    %v2559 = vunpack.c.l.b16 %v1528
    %v2560 = vunpack.c.l.b16 %v1529
    %v2561 = vunpack.c.l.b16 %v1530
    %v2562 = vunpack.c.l.b16 %v1531
    %v2563 = vunpack.c.l.b16 %v1532
    %v2564 = vunpack.c.l.b16 %v1533
    %v2565 = vunpack.c.l.b16 %v1534
    %v2566 = vunpack.c.l.b16 %v1535
    %v2567 = vunpack.c.l.b16 %v1536
    %v2568 = vunpack.c.l.b16 %v1537
    %v2569 = vunpack.c.l.b16 %v1538
    %v2570 = vunpack.c.l.b16 %v1539
    %v2571 = vunpack.c.l.b16 %v1540
    %v2572 = vunpack.c.l.b16 %v1541
    %v2573 = vunpack.c.l.b16 %v1542
    %v2574 = vunpack.c.l.b16 %v1543
    %v2575 = vunpack.c.l.b16 %v1544
    %v2576 = vunpack.c.l.b16 %v1545
    %v2577 = vunpack.c.l.b16 %v1546
    %v2578 = vunpack.c.l.b16 %v1547
    %v2579 = vunpack.c.l.b16 %v1548
    %v2580 = vunpack.c.l.b16 %v1549
    %v2581 = vunpack.c.l.b16 %v1550
    %v2582 = vunpack.c.l.b16 %v1551
    %v2583 = vunpack.c.l.b16 %v1552
    %v2584 = vunpack.c.l.b16 %v1553
    %v2585 = vunpack.c.l.b16 %v1554
    %v2586 = vunpack.c.l.b16 %v1555
    %v2587 = vunpack.c.l.b16 %v1556
    %v2588 = vunpack.c.l.b16 %v1557
    %v2589 = vunpack.c.l.b16 %v1558
    %v2590 = vunpack.c.l.b16 %v1559
    %v2591 = vunpack.c.l.b16 %v1560
    %v2592 = vunpack.c.l.b16 %v1561
    %v2593 = vunpack.c.l.b16 %v1562
    %v2594 = vunpack.c.l.b16 %v1563
    %v2595 = vunpack.c.l.b16 %v1564
    %v2596 = vunpack.c.l.b16 %v1565
    %v2597 = vunpack.c.l.b16 %v1566
    %v2598 = vunpack.c.l.b16 %v1567
    %v2599 = vunpack.c.l.b16 %v1568
    %v2600 = vunpack.c.l.b16 %v1569
    %v2601 = vunpack.c.l.b16 %v1570
    %v2602 = vunpack.c.l.b16 %v1571
    %v2603 = vunpack.c.l.b16 %v1572
    %v2604 = vunpack.c.l.b16 %v1573
    %v2605 = vunpack.c.l.b16 %v1574
    %v2606 = vunpack.c.l.b16 %v1575
    %v2607 = vunpack.c.l.b16 %v1576
    %v2608 = vunpack.c.l.b16 %v1577
    %v2609 = vunpack.c.l.b16 %v1578
    %v2610 = vunpack.c.l.b16 %v1579
    %v2611 = vunpack.c.l.b16 %v1580
    %v2612 = vunpack.c.l.b16 %v1581
    %v2613 = vunpack.c.l.b16 %v1582
    %v2614 = vunpack.c.l.b16 %v1583
    %v2615 = vunpack.c.l.b16 %v1584
    %v2616 = vunpack.c.l.b16 %v1585
    %v2617 = vunpack.c.l.b16 %v1586
    %v2618 = vunpack.c.l.b16 %v1587
    %v2619 = vunpack.c.l.b16 %v1588
    %v2620 = vunpack.c.l.b16 %v1589
    %v2621 = vunpack.c.l.b16 %v1590
    %v2622 = vunpack.c.l.b16 %v1591
    %v2623 = vunpack.c.l.b16 %v1592
    %v2624 = vunpack.c.l.b16 %v1593
    %v2625 = vunpack.c.l.b16 %v1594
    %v2626 = vunpack.c.l.b16 %v1595
    %v2627 = vunpack.c.l.b16 %v1596
    %v2628 = vunpack.c.l.b16 %v1597
    %v2629 = vunpack.c.l.b16 %v1598
    %v2630 = vunpack.c.l.b16 %v1599
    %v2631 = vunpack.c.l.b16 %v1600
    %v2632 = vunpack.c.l.b16 %v1601
    %v2633 = vunpack.c.l.b16 %v1602
    %v2634 = vunpack.c.l.b16 %v1603
    %v2635 = vunpack.c.l.b16 %v1604
    %v2636 = vunpack.c.l.b16 %v1605
    %v2637 = vunpack.c.l.b16 %v1606
    %v2638 = vunpack.c.l.b16 %v1607
    %v2639 = vunpack.c.l.b16 %v1608
    %v2640 = vunpack.c.l.b16 %v1609
    %v2641 = vunpack.c.l.b16 %v1610
    %v2642 = vunpack.c.l.b16 %v1611
    %v2643 = vunpack.c.l.b16 %v1612
    %v2644 = vunpack.c.l.b16 %v1613
    %v2645 = vunpack.c.l.b16 %v1614
    %v2646 = vunpack.c.l.b16 %v1615
    %v2647 = vunpack.c.l.b16 %v1616
    %v2648 = vunpack.c.l.b16 %v1617
    %v2649 = vunpack.c.l.b16 %v1618
    %v2650 = vunpack.c.l.b16 %v1619
    %v2651 = vunpack.c.l.b16 %v1620
    %v2652 = vunpack.c.l.b16 %v1621
    %v2653 = vunpack.c.l.b16 %v1622
    %v2654 = vunpack.c.l.b16 %v1623
    %v2655 = vunpack.c.l.b16 %v1624
    %v2656 = vunpack.c.l.b16 %v1625
    %v2657 = vunpack.c.l.b16 %v1626
    %v2658 = vunpack.c.l.b16 %v1627
    %v2659 = vunpack.c.l.b16 %v1628
    %v2660 = vunpack.c.l.b16 %v1629
    %v2661 = vunpack.c.l.b16 %v1630
    %v2662 = vunpack.c.l.b16 %v1631
    %v2663 = vunpack.c.l.b16 %v1632
    %v2664 = vunpack.c.l.b16 %v1633
    %v2665 = vunpack.c.l.b16 %v1634
    %v2666 = vunpack.c.l.b16 %v1635
    %v2667 = vunpack.c.l.b16 %v1636
    %v2668 = vunpack.c.l.b16 %v1637
    %v2669 = vunpack.c.l.b16 %v1638
    %v2670 = vunpack.c.l.b16 %v1639
    %v2671 = vunpack.c.l.b16 %v1640
    %v2672 = vunpack.c.l.b16 %v1641
    %v2673 = vunpack.c.l.b16 %v1642
    %v2674 = vunpack.c.l.b16 %v1643
    %v2675 = vunpack.c.l.b16 %v1644
    %v2676 = vunpack.c.l.b16 %v1645
    %v2677 = vunpack.c.l.b16 %v1646
    %v2678 = vunpack.c.l.b16 %v1647
    %v2679 = vunpack.c.l.b16 %v1648
    %v2680 = vunpack.c.l.b16 %v1649
    %v2681 = vunpack.c.l.b16 %v1650
    %v2682 = vunpack.c.l.b16 %v1651
    %v2683 = vunpack.c.l.b16 %v1652
    %v2684 = vunpack.c.l.b16 %v1653
    %v2685 = vunpack.c.l.b16 %v1654
    %v2686 = vunpack.c.l.b16 %v1655
    %v2687 = vunpack.c.l.b16 %v1656
    %v2688 = vunpack.c.l.b16 %v1657
    %v2689 = vunpack.c.l.b16 %v1658
    %v2690 = vunpack.c.l.b16 %v1659
    %v2691 = vunpack.c.l.b16 %v1660
    %v2692 = vunpack.c.l.b16 %v1661
    %v2693 = vunpack.c.l.b16 %v1662
    %v2694 = vunpack.c.l.b16 %v1663
    %v2695 = vunpack.c.l.b16 %v1664
    %v2696 = vunpack.c.l.b16 %v1665
    %v2697 = vunpack.c.l.b16 %v1666
    %v2698 = vunpack.c.l.b16 %v1667
    %v2699 = vunpack.c.l.b16 %v1668
    %v2700 = vunpack.c.l.b16 %v1669
    %v2701 = vunpack.c.l.b16 %v1670
    %v2702 = vunpack.c.l.b16 %v1671
    %v2703 = vunpack.c.l.b16 %v1672
    %v2704 = vunpack.c.l.b16 %v1673
    %v2705 = vunpack.c.l.b16 %v1674
    %v2706 = vunpack.c.l.b16 %v1675
    %v2707 = vunpack.c.l.b16 %v1676
    %v2708 = vunpack.c.l.b16 %v1677
    %v2709 = vunpack.c.l.b16 %v1678
    %v2710 = vunpack.c.l.b16 %v1679
    %v2711 = vunpack.c.l.b16 %v1680
    %v2712 = vunpack.c.l.b16 %v1681
    %v2713 = vunpack.c.l.b16 %v1682
    %v2714 = vunpack.c.l.b16 %v1683
    %v2715 = vunpack.c.l.b16 %v1684
    %v2716 = vunpack.c.l.b16 %v1685
    %v2717 = vunpack.c.l.b16 %v1686
    %v2718 = vunpack.c.l.b16 %v1687
    %v2719 = vunpack.c.l.b16 %v1688
    %v2720 = vunpack.c.l.b16 %v1689
    %v2721 = vunpack.c.l.b16 %v1690
    %v2722 = vunpack.c.l.b16 %v1691
    %v2723 = vunpack.c.l.b16 %v1692
    %v2724 = vunpack.c.l.b16 %v1693
    %v2725 = vunpack.c.l.b16 %v1694
    %v2726 = vunpack.c.l.b16 %v1695
    %v2727 = vunpack.c.l.b16 %v1696
    %v2728 = vunpack.c.l.b16 %v1697
    %v2729 = vunpack.c.l.b16 %v1698
    %v2730 = vunpack.c.l.b16 %v1699
    %v2731 = vunpack.c.l.b16 %v1700
    %v2732 = vunpack.c.l.b16 %v1701
    %v2733 = vunpack.c.l.b16 %v1702
    %v2734 = vunpack.c.l.b16 %v1703
    %v2735 = vunpack.c.l.b16 %v1704
    %v2736 = vunpack.c.l.b16 %v1705
    %v2737 = vunpack.c.l.b16 %v1706
    %v2738 = vunpack.c.l.b16 %v1707
    %v2739 = vunpack.c.l.b16 %v1708
    %v2740 = vunpack.c.l.b16 %v1709
    %v2741 = vunpack.c.l.b16 %v1710
    %v2742 = vunpack.c.l.b16 %v1711
    %v2743 = vunpack.c.l.b16 %v1712
    %v2744 = vunpack.c.l.b16 %v1713
    %v2745 = vunpack.c.l.b16 %v1714
    %v2746 = vunpack.c.l.b16 %v1715
    %v2747 = vunpack.c.l.b16 %v1716
    %v2748 = vunpack.c.l.b16 %v1717
    %v2749 = vunpack.c.l.b16 %v1718
    %v2750 = vunpack.c.l.b16 %v1719
    %v2751 = vunpack.c.l.b16 %v1720
    %v2752 = vunpack.c.l.b16 %v1721
    %v2753 = vunpack.c.l.b16 %v1722
    %v2754 = vunpack.c.l.b16 %v1723
    %v2755 = vunpack.c.l.b16 %v1724
    %v2756 = vunpack.c.l.b16 %v1725
    %v2757 = vunpack.c.l.b16 %v1726
    %v2758 = vunpack.c.l.b16 %v1727
    %v2759 = vunpack.c.l.b16 %v1728
    %v2760 = vunpack.c.l.b16 %v1729
    %v2761 = vunpack.c.l.b16 %v1730
    %v2762 = vunpack.c.l.b16 %v1731
    %v2763 = vunpack.c.l.b16 %v1732
    %v2764 = vunpack.c.l.b16 %v1733
    %v2765 = vunpack.c.l.b16 %v1734
    %v2766 = vunpack.c.l.b16 %v1735
    %v2767 = vunpack.c.l.b16 %v1736
    %v2768 = vunpack.c.l.b16 %v1737
    %v2769 = vunpack.c.l.b16 %v1738
    %v2770 = vunpack.c.l.b16 %v1739
    %v2771 = vunpack.c.l.b16 %v1740
    %v2772 = vunpack.c.l.b16 %v1741
    %v2773 = vunpack.c.l.b16 %v1742
    %v2774 = vunpack.c.l.b16 %v1743
    %v2775 = vunpack.c.l.b16 %v1744
    %v2776 = vunpack.c.l.b16 %v1745
    %v2777 = vunpack.c.l.b16 %v1746
    %v2778 = vunpack.c.l.b16 %v1747
    %v2779 = vunpack.c.l.b16 %v1748
    %v2780 = vunpack.c.l.b16 %v1749
    %v2781 = vunpack.c.l.b16 %v1750
    %v2782 = vunpack.c.l.b16 %v1751
    %v2783 = vunpack.c.l.b16 %v1752
    %v2784 = vunpack.c.l.b16 %v1753
    %v2785 = vunpack.c.l.b16 %v1754
    %v2786 = vunpack.c.l.b16 %v1755
    %v2787 = vunpack.c.l.b16 %v1756
    %v2788 = vunpack.c.l.b16 %v1757
    %v2789 = vunpack.c.l.b16 %v1758
    %v2790 = vunpack.c.l.b16 %v1759
    %v2791 = vunpack.c.l.b16 %v1760
    %v2792 = vunpack.c.l.b16 %v1761
    %v2793 = vunpack.c.l.b16 %v1762
    %v2794 = vunpack.c.l.b16 %v1763
    %v2795 = vunpack.c.l.b16 %v1764
    %v2796 = vunpack.c.l.b16 %v1765
    %v2797 = vunpack.c.l.b16 %v1766
    %v2798 = vunpack.c.l.b16 %v1767
    %v2799 = vunpack.c.l.b16 %v1768
    %v2800 = vunpack.c.l.b16 %v1769
    %v2801 = vunpack.c.l.b16 %v1770
    %v2802 = vunpack.c.l.b16 %v1771
    %v2803 = vunpack.c.l.b16 %v1772
    %v2804 = vunpack.c.l.b16 %v1773
    %v2805 = vunpack.c.l.b16 %v1774
    %v2806 = vunpack.c.l.b16 %v1775
    %v2807 = vunpack.c.l.b16 %v1776
    %v2808 = vunpack.c.l.b16 %v1777
    %v2809 = vunpack.c.l.b16 %v1778
    %v2810 = vunpack.c.l.b16 %v1779
    %v2811 = vunpack.c.l.b16 %v1780
    %v2812 = vunpack.c.l.b16 %v1781
    %v2813 = vunpack.c.l.b16 %v1782
    %v2814 = vunpack.c.l.b16 %v1783
    %v2815 = vunpack.c.l.b16 %v1784
    %v2816 = vunpack.c.l.b16 %v1785
    %v2817 = vunpack.c.l.b16 %v1786
    %v2818 = vunpack.c.l.b16 %v1787
    %v2819 = vunpack.c.l.b16 %v1788
    %v2820 = vunpack.c.l.b16 %v1789
    %v2821 = vunpack.c.l.b16 %v1790
    %v2822 = vunpack.c.l.b16 %v1791
    %v2823 = vunpack.c.l.b16 %v1792
    %v2824 = vunpack.c.l.b16 %v1793
    %v2825 = vunpack.c.l.b16 %v1794
    %v2826 = vunpack.c.l.b16 %v1795
    %v2827 = vunpack.c.l.b16 %v1796
    %v2828 = vunpack.c.l.b16 %v1797
    %v2829 = vunpack.c.l.b16 %v1798
    %v2830 = vunpack.c.l.b16 %v1799
    %v2831 = vunpack.c.l.b16 %v1800
    %v2832 = vunpack.c.l.b16 %v1801
    %v2833 = vunpack.c.l.b16 %v1802
    %v2834 = vunpack.c.l.b16 %v1803
    %v2835 = vunpack.c.l.b16 %v1804
    %v2836 = vunpack.c.l.b16 %v1805
    %v2837 = vunpack.c.l.b16 %v1806
    %v2838 = vunpack.c.l.b16 %v1807
    %v2839 = vunpack.c.l.b16 %v1808
    %v2840 = vunpack.c.l.b16 %v1809
    %v2841 = vunpack.c.l.b16 %v1810
    %v2842 = vunpack.c.l.b16 %v1811
    %v2843 = vunpack.c.l.b16 %v1812
    %v2844 = vunpack.c.l.b16 %v1813
    %v2845 = vunpack.c.l.b16 %v1814
    %v2846 = vunpack.c.l.b16 %v1815
    %v2847 = vunpack.c.l.b16 %v1816
    %v2848 = vunpack.c.l.b16 %v1817
    %v2849 = vunpack.c.l.b16 %v1818
    %v2850 = vunpack.c.l.b16 %v1819
    %v2851 = vunpack.c.l.b16 %v1820
    %v2852 = vunpack.c.l.b16 %v1821
    %v2853 = vunpack.c.l.b16 %v1822
    %v2854 = vunpack.c.l.b16 %v1823
    %v2855 = vunpack.c.l.b16 %v1824
    %v2856 = vunpack.c.l.b16 %v1825
    %v2857 = vunpack.c.l.b16 %v1826
    %v2858 = vunpack.c.l.b16 %v1827
    %v2859 = vunpack.c.l.b16 %v1828
    %v2860 = vunpack.c.l.b16 %v1829
    %v2861 = vunpack.c.l.b16 %v1830
    %v2862 = vunpack.c.l.b16 %v1831
    %v2863 = vunpack.c.l.b16 %v1832
    %v2864 = vunpack.c.l.b16 %v1833
    %v2865 = vunpack.c.l.b16 %v1834
    %v2866 = vunpack.c.l.b16 %v1835
    %v2867 = vunpack.c.l.b16 %v1836
    %v2868 = vunpack.c.l.b16 %v1837
    %v2869 = vunpack.c.l.b16 %v1838
    %v2870 = vunpack.c.l.b16 %v1839
    %v2871 = vunpack.c.l.b16 %v1840
    %v2872 = vunpack.c.l.b16 %v1841
    %v2873 = vunpack.c.l.b16 %v1842
    %v2874 = vunpack.c.l.b16 %v1843
    %v2875 = vunpack.c.l.b16 %v1844
    %v2876 = vunpack.c.l.b16 %v1845
    %v2877 = vunpack.c.l.b16 %v1846
    %v2878 = vunpack.c.l.b16 %v1847
    %v2879 = vunpack.c.l.b16 %v1848
    %v2880 = vunpack.c.l.b16 %v1849
    %v2881 = vunpack.c.l.b16 %v1850
    %v2882 = vunpack.c.l.b16 %v1851
    %v2883 = vunpack.c.l.b16 %v1852
    %v2884 = vunpack.c.l.b16 %v1853
    %v2885 = vunpack.c.l.b16 %v1854
    %v2886 = vunpack.c.l.b16 %v1855
    %v2887 = vunpack.c.l.b16 %v1856
    %v2888 = vunpack.c.l.b16 %v1857
    %v2889 = vunpack.c.l.b16 %v1858
    %v2890 = vunpack.c.l.b16 %v1859
    %v2891 = vunpack.c.l.b16 %v1860
    %v2892 = vunpack.c.l.b16 %v1861
    %v2893 = vunpack.c.l.b16 %v1862
    %v2894 = vpack.c.b16 %v2383, %v2382
    %v2895 = vpack.c.b16 %v2385, %v2384
    %v2896 = vpack.c.b16 %v2387, %v2386
    %v2897 = vpack.c.b16 %v2389, %v2388
    %v2898 = vpack.c.b16 %v2391, %v2390
    %v2899 = vpack.c.b16 %v2393, %v2392
    %v2900 = vpack.c.b16 %v2395, %v2394
    %v2901 = vpack.c.b16 %v2397, %v2396
    %v2902 = vpack.c.b16 %v2399, %v2398
    %v2903 = vpack.c.b16 %v2401, %v2400
    %v2904 = vpack.c.b16 %v2403, %v2402
    %v2905 = vpack.c.b16 %v2405, %v2404
    %v2906 = vpack.c.b16 %v2407, %v2406
    %v2907 = vpack.c.b16 %v2409, %v2408
    %v2908 = vpack.c.b16 %v2411, %v2410
    %v2909 = vpack.c.b16 %v2413, %v2412
    %v2910 = vpack.c.b16 %v2415, %v2414
    %v2911 = vpack.c.b16 %v2417, %v2416
    %v2912 = vpack.c.b16 %v2419, %v2418
    %v2913 = vpack.c.b16 %v2421, %v2420
    %v2914 = vpack.c.b16 %v2423, %v2422
    %v2915 = vpack.c.b16 %v2425, %v2424
    %v2916 = vpack.c.b16 %v2427, %v2426
    %v2917 = vpack.c.b16 %v2429, %v2428
    %v2918 = vpack.c.b16 %v2431, %v2430
    %v2919 = vpack.c.b16 %v2433, %v2432
    %v2920 = vpack.c.b16 %v2435, %v2434
    %v2921 = vpack.c.b16 %v2437, %v2436
    %v2922 = vpack.c.b16 %v2439, %v2438
    %v2923 = vpack.c.b16 %v2441, %v2440
    %v2924 = vpack.c.b16 %v2443, %v2442
    %v2925 = vpack.c.b16 %v2445, %v2444
    %v2926 = vpack.c.b16 %v2447, %v2446
    %v2927 = vpack.c.b16 %v2449, %v2448
    %v2928 = vpack.c.b16 %v2451, %v2450
    %v2929 = vpack.c.b16 %v2453, %v2452
    %v2930 = vpack.c.b16 %v2455, %v2454
    %v2931 = vpack.c.b16 %v2457, %v2456
    %v2932 = vpack.c.b16 %v2459, %v2458
    %v2933 = vpack.c.b16 %v2461, %v2460
    %v2934 = vpack.c.b16 %v2463, %v2462
    %v2935 = vpack.c.b16 %v2465, %v2464
    %v2936 = vpack.c.b16 %v2467, %v2466
    %v2937 = vpack.c.b16 %v2469, %v2468
    %v2938 = vpack.c.b16 %v2471, %v2470
    %v2939 = vpack.c.b16 %v2473, %v2472
    %v2940 = vpack.c.b16 %v2475, %v2474
    %v2941 = vpack.c.b16 %v2477, %v2476
    %v2942 = vpack.c.b16 %v2479, %v2478
    %v2943 = vpack.c.b16 %v2481, %v2480
    %v2944 = vpack.c.b16 %v2483, %v2482
    %v2945 = vpack.c.b16 %v2485, %v2484
    %v2946 = vpack.c.b16 %v2487, %v2486
    %v2947 = vpack.c.b16 %v2489, %v2488
    %v2948 = vpack.c.b16 %v2491, %v2490
    %v2949 = vpack.c.b16 %v2493, %v2492
    %v2950 = vpack.c.b16 %v2495, %v2494
    %v2951 = vpack.c.b16 %v2497, %v2496
    %v2952 = vpack.c.b16 %v2499, %v2498
    %v2953 = vpack.c.b16 %v2501, %v2500
    %v2954 = vpack.c.b16 %v2503, %v2502
    %v2955 = vpack.c.b16 %v2505, %v2504
    %v2956 = vpack.c.b16 %v2507, %v2506
    %v2957 = vpack.c.b16 %v2509, %v2508
    %v2958 = vpack.c.b16 %v2511, %v2510
    %v2959 = vpack.c.b16 %v2513, %v2512
    %v2960 = vpack.c.b16 %v2515, %v2514
    %v2961 = vpack.c.b16 %v2517, %v2516
    %v2962 = vpack.c.b16 %v2519, %v2518
    %v2963 = vpack.c.b16 %v2521, %v2520
    %v2964 = vpack.c.b16 %v2523, %v2522
    %v2965 = vpack.c.b16 %v2525, %v2524
    %v2966 = vpack.c.b16 %v2527, %v2526
    %v2967 = vpack.c.b16 %v2529, %v2528
    %v2968 = vpack.c.b16 %v2531, %v2530
    %v2969 = vpack.c.b16 %v2533, %v2532
    %v2970 = vpack.c.b16 %v2535, %v2534
    %v2971 = vpack.c.b16 %v2537, %v2536
    %v2972 = vpack.c.b16 %v2539, %v2538
    %v2973 = vpack.c.b16 %v2541, %v2540
    %v2974 = vpack.c.b16 %v2543, %v2542
    %v2975 = vpack.c.b16 %v2545, %v2544
    %v2976 = vpack.c.b16 %v2547, %v2546
    %v2977 = vpack.c.b16 %v2549, %v2548
    %v2978 = vpack.c.b16 %v2551, %v2550
    %v2979 = vpack.c.b16 %v2553, %v2552
    %v2980 = vpack.c.b16 %v2555, %v2554
    %v2981 = vpack.c.b16 %v2557, %v2556
    %v2982 = vpack.c.b16 %v2559, %v2558
    %v2983 = vpack.c.b16 %v2561, %v2560
    %v2984 = vpack.c.b16 %v2563, %v2562
    %v2985 = vpack.c.b16 %v2565, %v2564
    %v2986 = vpack.c.b16 %v2567, %v2566
    %v2987 = vpack.c.b16 %v2569, %v2568
    %v2988 = vpack.c.b16 %v2571, %v2570
    %v2989 = vpack.c.b16 %v2573, %v2572
    %v2990 = vpack.c.b16 %v2575, %v2574
    %v2991 = vpack.c.b16 %v2577, %v2576
    %v2992 = vpack.c.b16 %v2579, %v2578
    %v2993 = vpack.c.b16 %v2581, %v2580
    %v2994 = vpack.c.b16 %v2583, %v2582
    %v2995 = vpack.c.b16 %v2585, %v2584
    %v2996 = vpack.c.b16 %v2587, %v2586
    %v2997 = vpack.c.b16 %v2589, %v2588
    %v2998 = vpack.c.b16 %v2591, %v2590
    %v2999 = vpack.c.b16 %v2593, %v2592
    %v3000 = vpack.c.b16 %v2595, %v2594
    %v3001 = vpack.c.b16 %v2597, %v2596
    %v3002 = vpack.c.b16 %v2599, %v2598
    %v3003 = vpack.c.b16 %v2601, %v2600
    %v3004 = vpack.c.b16 %v2603, %v2602
    %v3005 = vpack.c.b16 %v2605, %v2604
    %v3006 = vpack.c.b16 %v2607, %v2606
    %v3007 = vpack.c.b16 %v2609, %v2608
    %v3008 = vpack.c.b16 %v2611, %v2610
    %v3009 = vpack.c.b16 %v2613, %v2612
    %v3010 = vpack.c.b16 %v2615, %v2614
    %v3011 = vpack.c.b16 %v2617, %v2616
    %v3012 = vpack.c.b16 %v2619, %v2618
    %v3013 = vpack.c.b16 %v2621, %v2620
    %v3014 = vpack.c.b16 %v2623, %v2622
    %v3015 = vpack.c.b16 %v2625, %v2624
    %v3016 = vpack.c.b16 %v2627, %v2626
    %v3017 = vpack.c.b16 %v2629, %v2628
    %v3018 = vpack.c.b16 %v2631, %v2630
    %v3019 = vpack.c.b16 %v2633, %v2632
    %v3020 = vpack.c.b16 %v2635, %v2634
    %v3021 = vpack.c.b16 %v2637, %v2636
    %v3022 = vpack.c.b16 %v2639, %v2638
    %v3023 = vpack.c.b16 %v2641, %v2640
    %v3024 = vpack.c.b16 %v2643, %v2642
    %v3025 = vpack.c.b16 %v2645, %v2644
    %v3026 = vpack.c.b16 %v2647, %v2646
    %v3027 = vpack.c.b16 %v2649, %v2648
    %v3028 = vpack.c.b16 %v2651, %v2650
    %v3029 = vpack.c.b16 %v2653, %v2652
    %v3030 = vpack.c.b16 %v2655, %v2654
    %v3031 = vpack.c.b16 %v2657, %v2656
    %v3032 = vpack.c.b16 %v2659, %v2658
    %v3033 = vpack.c.b16 %v2661, %v2660
    %v3034 = vpack.c.b16 %v2663, %v2662
    %v3035 = vpack.c.b16 %v2665, %v2664
    %v3036 = vpack.c.b16 %v2667, %v2666
    %v3037 = vpack.c.b16 %v2669, %v2668
    %v3038 = vpack.c.b16 %v2671, %v2670
    %v3039 = vpack.c.b16 %v2673, %v2672
    %v3040 = vpack.c.b16 %v2675, %v2674
    %v3041 = vpack.c.b16 %v2677, %v2676
    %v3042 = vpack.c.b16 %v2679, %v2678
    %v3043 = vpack.c.b16 %v2681, %v2680
    %v3044 = vpack.c.b16 %v2683, %v2682
    %v3045 = vpack.c.b16 %v2685, %v2684
    %v3046 = vpack.c.b16 %v2687, %v2686
    %v3047 = vpack.c.b16 %v2689, %v2688
    %v3048 = vpack.c.b16 %v2691, %v2690
    %v3049 = vpack.c.b16 %v2693, %v2692
    %v3050 = vpack.c.b16 %v2695, %v2694
    %v3051 = vpack.c.b16 %v2697, %v2696
    %v3052 = vpack.c.b16 %v2699, %v2698
    %v3053 = vpack.c.b16 %v2701, %v2700
    %v3054 = vpack.c.b16 %v2703, %v2702
    %v3055 = vpack.c.b16 %v2705, %v2704
    %v3056 = vpack.c.b16 %v2707, %v2706
    %v3057 = vpack.c.b16 %v2709, %v2708
    %v3058 = vpack.c.b16 %v2711, %v2710
    %v3059 = vpack.c.b16 %v2713, %v2712
    %v3060 = vpack.c.b16 %v2715, %v2714
    %v3061 = vpack.c.b16 %v2717, %v2716
    %v3062 = vpack.c.b16 %v2719, %v2718
    %v3063 = vpack.c.b16 %v2721, %v2720
    %v3064 = vpack.c.b16 %v2723, %v2722
    %v3065 = vpack.c.b16 %v2725, %v2724
    %v3066 = vpack.c.b16 %v2727, %v2726
    %v3067 = vpack.c.b16 %v2729, %v2728
    %v3068 = vpack.c.b16 %v2731, %v2730
    %v3069 = vpack.c.b16 %v2733, %v2732
    %v3070 = vpack.c.b16 %v2735, %v2734
    %v3071 = vpack.c.b16 %v2737, %v2736
    %v3072 = vpack.c.b16 %v2739, %v2738
    %v3073 = vpack.c.b16 %v2741, %v2740
    %v3074 = vpack.c.b16 %v2743, %v2742
    %v3075 = vpack.c.b16 %v2745, %v2744
    %v3076 = vpack.c.b16 %v2747, %v2746
    %v3077 = vpack.c.b16 %v2749, %v2748
    %v3078 = vpack.c.b16 %v2751, %v2750
    %v3079 = vpack.c.b16 %v2753, %v2752
    %v3080 = vpack.c.b16 %v2755, %v2754
    %v3081 = vpack.c.b16 %v2757, %v2756
    %v3082 = vpack.c.b16 %v2759, %v2758
    %v3083 = vpack.c.b16 %v2761, %v2760
    %v3084 = vpack.c.b16 %v2763, %v2762
    %v3085 = vpack.c.b16 %v2765, %v2764
    %v3086 = vpack.c.b16 %v2767, %v2766
    %v3087 = vpack.c.b16 %v2769, %v2768
    %v3088 = vpack.c.b16 %v2771, %v2770
    %v3089 = vpack.c.b16 %v2773, %v2772
    %v3090 = vpack.c.b16 %v2775, %v2774
    %v3091 = vpack.c.b16 %v2777, %v2776
    %v3092 = vpack.c.b16 %v2779, %v2778
    %v3093 = vpack.c.b16 %v2781, %v2780
    %v3094 = vpack.c.b16 %v2783, %v2782
    %v3095 = vpack.c.b16 %v2785, %v2784
    %v3096 = vpack.c.b16 %v2787, %v2786
    %v3097 = vpack.c.b16 %v2789, %v2788
    %v3098 = vpack.c.b16 %v2791, %v2790
    %v3099 = vpack.c.b16 %v2793, %v2792
    %v3100 = vpack.c.b16 %v2795, %v2794
    %v3101 = vpack.c.b16 %v2797, %v2796
    %v3102 = vpack.c.b16 %v2799, %v2798
    %v3103 = vpack.c.b16 %v2801, %v2800
    %v3104 = vpack.c.b16 %v2803, %v2802
    %v3105 = vpack.c.b16 %v2805, %v2804
    %v3106 = vpack.c.b16 %v2807, %v2806
    %v3107 = vpack.c.b16 %v2809, %v2808
    %v3108 = vpack.c.b16 %v2811, %v2810
    %v3109 = vpack.c.b16 %v2813, %v2812
    %v3110 = vpack.c.b16 %v2815, %v2814
    %v3111 = vpack.c.b16 %v2817, %v2816
    %v3112 = vpack.c.b16 %v2819, %v2818
    %v3113 = vpack.c.b16 %v2821, %v2820
    %v3114 = vpack.c.b16 %v2823, %v2822
    %v3115 = vpack.c.b16 %v2825, %v2824
    %v3116 = vpack.c.b16 %v2827, %v2826
    %v3117 = vpack.c.b16 %v2829, %v2828
    %v3118 = vpack.c.b16 %v2831, %v2830
    %v3119 = vpack.c.b16 %v2833, %v2832
    %v3120 = vpack.c.b16 %v2835, %v2834
    %v3121 = vpack.c.b16 %v2837, %v2836
    %v3122 = vpack.c.b16 %v2839, %v2838
    %v3123 = vpack.c.b16 %v2841, %v2840
    %v3124 = vpack.c.b16 %v2843, %v2842
    %v3125 = vpack.c.b16 %v2845, %v2844
    %v3126 = vpack.c.b16 %v2847, %v2846
    %v3127 = vpack.c.b16 %v2849, %v2848
    %v3128 = vpack.c.b16 %v2851, %v2850
    %v3129 = vpack.c.b16 %v2853, %v2852
    %v3130 = vpack.c.b16 %v2855, %v2854
    %v3131 = vpack.c.b16 %v2857, %v2856
    %v3132 = vpack.c.b16 %v2859, %v2858
    %v3133 = vpack.c.b16 %v2861, %v2860
    %v3134 = vpack.c.b16 %v2863, %v2862
    %v3135 = vpack.c.b16 %v2865, %v2864
    %v3136 = vpack.c.b16 %v2867, %v2866
    %v3137 = vpack.c.b16 %v2869, %v2868
    %v3138 = vpack.c.b16 %v2871, %v2870
    %v3139 = vpack.c.b16 %v2873, %v2872
    %v3140 = vpack.c.b16 %v2875, %v2874
    %v3141 = vpack.c.b16 %v2877, %v2876
    %v3142 = vpack.c.b16 %v2879, %v2878
    %v3143 = vpack.c.b16 %v2881, %v2880
    %v3144 = vpack.c.b16 %v2883, %v2882
    %v3145 = vpack.c.b16 %v2885, %v2884
    %v3146 = vpack.c.b16 %v2887, %v2886
    %v3147 = vpack.c.b16 %v2889, %v2888
    %v3148 = vpack.c.b16 %v2891, %v2890
    %v3149 = vpack.c.b16 %v2893, %v2892
    %3406 = vmatprep.subr.bf16.mxu0 0
    %3407 = vmatpush1.bf16.msra.mxu0 %v2894
    %3408 = vmatprep.subr.bf16.mxu0 0
    %3409 = vmatpush1.bf16.msra.mxu0 %v2895
    %3410 = vmatprep.subr.bf16.mxu0 0
    %3411 = vmatpush1.bf16.msra.mxu0 %v2896
    %3412 = vmatprep.subr.bf16.mxu0 0
    %3413 = vmatpush1.bf16.msra.mxu0 %v2897
    %3414 = vmatprep.subr.bf16.mxu0 0
    %3415 = vmatpush1.bf16.msra.mxu0 %v2898
    %3416 = vmatprep.subr.bf16.mxu0 0
    %3417 = vmatpush1.bf16.msra.mxu0 %v2899
    %3418 = vmatprep.subr.bf16.mxu0 0
    %3419 = vmatpush1.bf16.msra.mxu0 %v2900
    %3420 = vmatprep.subr.bf16.mxu0 0
    %3421 = vmatpush1.bf16.msra.mxu0 %v2901
    %3422 = vmatprep.subr.bf16.mxu0 0
    %3423 = vmatpush1.bf16.msra.mxu0 %v2902
    %3424 = vmatprep.subr.bf16.mxu0 0
    %3425 = vmatpush1.bf16.msra.mxu0 %v2903
    %3426 = vmatprep.subr.bf16.mxu0 0
    %3427 = vmatpush1.bf16.msra.mxu0 %v2904
    %3428 = vmatprep.subr.bf16.mxu0 0
    %3429 = vmatpush1.bf16.msra.mxu0 %v2905
    %3430 = vmatprep.subr.bf16.mxu0 0
    %3431 = vmatpush1.bf16.msra.mxu0 %v2906
    %3432 = vmatprep.subr.bf16.mxu0 0
    %3433 = vmatpush1.bf16.msra.mxu0 %v2907
    %3434 = vmatprep.subr.bf16.mxu0 0
    %3435 = vmatpush1.bf16.msra.mxu0 %v2908
    %3436 = vmatprep.subr.bf16.mxu0 0
    %3437 = vmatpush1.bf16.msra.mxu0 %v2909
    %3438 = vmatprep.mubr.bf16.mxu0 %v1320
    %3439 = vmatmul.mubr.bf16.gmra.mrb[0].mxu0 %v1319
    %v3440 = vpop.f32.mrb[0].mxu0
    %v3441 = vadd.f32 %v1868, %v3440
    %v3442 = vpop.f32.mrb[0].mxu0
    %v3443 = vpop.f32.mrb[0].mxu0
    %v3444 = vpop.f32.mrb[0].mxu0
    %3445 = vdwg.mxu0
    %3446 = vmatprep.subr.bf16.mxu0 0
    %3447 = vmatpush1.bf16.msra.mxu0 %v2910
    %3448 = vmatprep.subr.bf16.mxu0 0
    %3449 = vmatpush1.bf16.msra.mxu0 %v2911
    %3450 = vmatprep.subr.bf16.mxu0 0
    %3451 = vmatpush1.bf16.msra.mxu0 %v2912
    %3452 = vmatprep.subr.bf16.mxu0 0
    %3453 = vmatpush1.bf16.msra.mxu0 %v2913
    %3454 = vmatprep.subr.bf16.mxu0 0
    %3455 = vmatpush1.bf16.msra.mxu0 %v2914
    %3456 = vmatprep.subr.bf16.mxu0 0
    %3457 = vmatpush1.bf16.msra.mxu0 %v2915
    %3458 = vmatprep.subr.bf16.mxu0 0
    %3459 = vmatpush1.bf16.msra.mxu0 %v2916
    %3460 = vmatprep.subr.bf16.mxu0 0
    %3461 = vmatpush1.bf16.msra.mxu0 %v2917
    %3462 = vmatprep.subr.bf16.mxu0 0
    %3463 = vmatpush1.bf16.msra.mxu0 %v2918
    %3464 = vmatprep.subr.bf16.mxu0 0
    %3465 = vmatpush1.bf16.msra.mxu0 %v2919
    %3466 = vmatprep.subr.bf16.mxu0 0
    %3467 = vmatpush1.bf16.msra.mxu0 %v2920
    %3468 = vmatprep.subr.bf16.mxu0 0
    %3469 = vmatpush1.bf16.msra.mxu0 %v2921
    %3470 = vmatprep.subr.bf16.mxu0 0
    %3471 = vmatpush1.bf16.msra.mxu0 %v2922
    %3472 = vmatprep.subr.bf16.mxu0 0
    %3473 = vmatpush1.bf16.msra.mxu0 %v2923
    %3474 = vmatprep.subr.bf16.mxu0 0
    %3475 = vmatpush1.bf16.msra.mxu0 %v2924
    %3476 = vmatprep.subr.bf16.mxu0 0
    %3477 = vmatpush1.bf16.msra.mxu0 %v2925
    %3478 = vmatprep.mubr.bf16.mxu0 %v1322
    %3479 = vmatmul.mubr.bf16.gmra.mrb[0].mxu0 %v1321
    %v3480 = vpop.f32.mrb[0].mxu0
    %v3481 = vadd.f32 %v3441, %v3480
    %v3482 = vpop.f32.mrb[0].mxu0
    %v3483 = vpop.f32.mrb[0].mxu0
    %v3484 = vpop.f32.mrb[0].mxu0
    %3485 = vdwg.mxu0
    %3486 = vmatprep.subr.bf16.mxu0 0
    %3487 = vmatpush1.bf16.msra.mxu0 %v2926
    %3488 = vmatprep.subr.bf16.mxu0 0
    %3489 = vmatpush1.bf16.msra.mxu0 %v2927
    %3490 = vmatprep.subr.bf16.mxu0 0
    %3491 = vmatpush1.bf16.msra.mxu0 %v2928
    %3492 = vmatprep.subr.bf16.mxu0 0
    %3493 = vmatpush1.bf16.msra.mxu0 %v2929
    %3494 = vmatprep.subr.bf16.mxu0 0
    %3495 = vmatpush1.bf16.msra.mxu0 %v2930
    %3496 = vmatprep.subr.bf16.mxu0 0
    %3497 = vmatpush1.bf16.msra.mxu0 %v2931
    %3498 = vmatprep.subr.bf16.mxu0 0
    %3499 = vmatpush1.bf16.msra.mxu0 %v2932
    %3500 = vmatprep.subr.bf16.mxu0 0
    %3501 = vmatpush1.bf16.msra.mxu0 %v2933
    %3502 = vmatprep.subr.bf16.mxu0 0
    %3503 = vmatpush1.bf16.msra.mxu0 %v2934
    %3504 = vmatprep.subr.bf16.mxu0 0
    %3505 = vmatpush1.bf16.msra.mxu0 %v2935
    %3506 = vmatprep.subr.bf16.mxu0 0
    %3507 = vmatpush1.bf16.msra.mxu0 %v2936
    %3508 = vmatprep.subr.bf16.mxu0 0
    %3509 = vmatpush1.bf16.msra.mxu0 %v2937
    %3510 = vmatprep.subr.bf16.mxu0 0
    %3511 = vmatpush1.bf16.msra.mxu0 %v2938
    %3512 = vmatprep.subr.bf16.mxu0 0
    %3513 = vmatpush1.bf16.msra.mxu0 %v2939
    %3514 = vmatprep.subr.bf16.mxu0 0
    %3515 = vmatpush1.bf16.msra.mxu0 %v2940
    %3516 = vmatprep.subr.bf16.mxu0 0
    %3517 = vmatpush1.bf16.msra.mxu0 %v2941
    %3518 = vmatprep.mubr.bf16.mxu0 %v1324
    %3519 = vmatmul.mubr.bf16.gmra.mrb[0].mxu0 %v1323
    %v3520 = vpop.f32.mrb[0].mxu0
    %v3521 = vadd.f32 %v3481, %v3520
    %v3522 = vpop.f32.mrb[0].mxu0
    %v3523 = vpop.f32.mrb[0].mxu0
    %v3524 = vpop.f32.mrb[0].mxu0
    %3525 = vdwg.mxu0
    %3526 = vmatprep.subr.bf16.mxu0 0
    %3527 = vmatpush1.bf16.msra.mxu0 %v2942
    %3528 = vmatprep.subr.bf16.mxu0 0
    %3529 = vmatpush1.bf16.msra.mxu0 %v2943
    %3530 = vmatprep.subr.bf16.mxu0 0
    %3531 = vmatpush1.bf16.msra.mxu0 %v2944
    %3532 = vmatprep.subr.bf16.mxu0 0
    %3533 = vmatpush1.bf16.msra.mxu0 %v2945
    %3534 = vmatprep.subr.bf16.mxu0 0
    %3535 = vmatpush1.bf16.msra.mxu0 %v2946
    %3536 = vmatprep.subr.bf16.mxu0 0
    %3537 = vmatpush1.bf16.msra.mxu0 %v2947
    %3538 = vmatprep.subr.bf16.mxu0 0
    %3539 = vmatpush1.bf16.msra.mxu0 %v2948
    %3540 = vmatprep.subr.bf16.mxu0 0
    %3541 = vmatpush1.bf16.msra.mxu0 %v2949
    %3542 = vmatprep.subr.bf16.mxu0 0
    %3543 = vmatpush1.bf16.msra.mxu0 %v2950
    %3544 = vmatprep.subr.bf16.mxu0 0
    %3545 = vmatpush1.bf16.msra.mxu0 %v2951
    %3546 = vmatprep.subr.bf16.mxu0 0
    %3547 = vmatpush1.bf16.msra.mxu0 %v2952
    %3548 = vmatprep.subr.bf16.mxu0 0
    %3549 = vmatpush1.bf16.msra.mxu0 %v2953
    %3550 = vmatprep.subr.bf16.mxu0 0
    %3551 = vmatpush1.bf16.msra.mxu0 %v2954
    %3552 = vmatprep.subr.bf16.mxu0 0
    %3553 = vmatpush1.bf16.msra.mxu0 %v2955
    %3554 = vmatprep.subr.bf16.mxu0 0
    %3555 = vmatpush1.bf16.msra.mxu0 %v2956
    %3556 = vmatprep.subr.bf16.mxu0 0
    %3557 = vmatpush1.bf16.msra.mxu0 %v2957
    %3558 = vmatprep.mubr.bf16.mxu0 %v1326
    %3559 = vmatmul.mubr.bf16.gmra.mrb[0].mxu0 %v1325
    %v3560 = vpop.f32.mrb[0].mxu0
    %v3561 = vadd.f32 %v3521, %v3560
    %v3562 = vpop.f32.mrb[0].mxu0
    %v3563 = vpop.f32.mrb[0].mxu0
    %v3564 = vpop.f32.mrb[0].mxu0
    %3565 = vdwg.mxu0
    %3566 = vmatprep.subr.bf16.mxu0 0
    %3567 = vmatpush1.bf16.msra.mxu0 %v2958
    %3568 = vmatprep.subr.bf16.mxu0 0
    %3569 = vmatpush1.bf16.msra.mxu0 %v2959
    %3570 = vmatprep.subr.bf16.mxu0 0
    %3571 = vmatpush1.bf16.msra.mxu0 %v2960
    %3572 = vmatprep.subr.bf16.mxu0 0
    %3573 = vmatpush1.bf16.msra.mxu0 %v2961
    %3574 = vmatprep.subr.bf16.mxu0 0
    %3575 = vmatpush1.bf16.msra.mxu0 %v2962
    %3576 = vmatprep.subr.bf16.mxu0 0
    %3577 = vmatpush1.bf16.msra.mxu0 %v2963
    %3578 = vmatprep.subr.bf16.mxu0 0
    %3579 = vmatpush1.bf16.msra.mxu0 %v2964
    %3580 = vmatprep.subr.bf16.mxu0 0
    %3581 = vmatpush1.bf16.msra.mxu0 %v2965
    %3582 = vmatprep.subr.bf16.mxu0 0
    %3583 = vmatpush1.bf16.msra.mxu0 %v2966
    %3584 = vmatprep.subr.bf16.mxu0 0
    %3585 = vmatpush1.bf16.msra.mxu0 %v2967
    %3586 = vmatprep.subr.bf16.mxu0 0
    %3587 = vmatpush1.bf16.msra.mxu0 %v2968
    %3588 = vmatprep.subr.bf16.mxu0 0
    %3589 = vmatpush1.bf16.msra.mxu0 %v2969
    %3590 = vmatprep.subr.bf16.mxu0 0
    %3591 = vmatpush1.bf16.msra.mxu0 %v2970
    %3592 = vmatprep.subr.bf16.mxu0 0
    %3593 = vmatpush1.bf16.msra.mxu0 %v2971
    %3594 = vmatprep.subr.bf16.mxu0 0
    %3595 = vmatpush1.bf16.msra.mxu0 %v2972
    %3596 = vmatprep.subr.bf16.mxu0 0
    %3597 = vmatpush1.bf16.msra.mxu0 %v2973
    %3598 = vmatprep.mubr.bf16.mxu0 %v1328
    %3599 = vmatmul.mubr.bf16.gmra.mrb[0].mxu0 %v1327
    %v3600 = vpop.f32.mrb[0].mxu0
    %v3601 = vadd.f32 %v3561, %v3600
    %v3602 = vpop.f32.mrb[0].mxu0
    %v3603 = vpop.f32.mrb[0].mxu0
    %v3604 = vpop.f32.mrb[0].mxu0
    %3605 = vdwg.mxu0
    %3606 = vmatprep.subr.bf16.mxu0 0
    %3607 = vmatpush1.bf16.msra.mxu0 %v2974
    %3608 = vmatprep.subr.bf16.mxu0 0
    %3609 = vmatpush1.bf16.msra.mxu0 %v2975
    %3610 = vmatprep.subr.bf16.mxu0 0
    %3611 = vmatpush1.bf16.msra.mxu0 %v2976
    %3612 = vmatprep.subr.bf16.mxu0 0
    %3613 = vmatpush1.bf16.msra.mxu0 %v2977
    %3614 = vmatprep.subr.bf16.mxu0 0
    %3615 = vmatpush1.bf16.msra.mxu0 %v2978
    %3616 = vmatprep.subr.bf16.mxu0 0
    %3617 = vmatpush1.bf16.msra.mxu0 %v2979
    %3618 = vmatprep.subr.bf16.mxu0 0
    %3619 = vmatpush1.bf16.msra.mxu0 %v2980
    %3620 = vmatprep.subr.bf16.mxu0 0
    %3621 = vmatpush1.bf16.msra.mxu0 %v2981
    %3622 = vmatprep.subr.bf16.mxu0 0
    %3623 = vmatpush1.bf16.msra.mxu0 %v2982
    %3624 = vmatprep.subr.bf16.mxu0 0
    %3625 = vmatpush1.bf16.msra.mxu0 %v2983
    %3626 = vmatprep.subr.bf16.mxu0 0
    %3627 = vmatpush1.bf16.msra.mxu0 %v2984
    %3628 = vmatprep.subr.bf16.mxu0 0
    %3629 = vmatpush1.bf16.msra.mxu0 %v2985
    %3630 = vmatprep.subr.bf16.mxu0 0
    %3631 = vmatpush1.bf16.msra.mxu0 %v2986
    %3632 = vmatprep.subr.bf16.mxu0 0
    %3633 = vmatpush1.bf16.msra.mxu0 %v2987
    %3634 = vmatprep.subr.bf16.mxu0 0
    %3635 = vmatpush1.bf16.msra.mxu0 %v2988
    %3636 = vmatprep.subr.bf16.mxu0 0
    %3637 = vmatpush1.bf16.msra.mxu0 %v2989
    %3638 = vmatprep.mubr.bf16.mxu0 %v1330
    %3639 = vmatmul.mubr.bf16.gmra.mrb[0].mxu0 %v1329
    %v3640 = vpop.f32.mrb[0].mxu0
    %v3641 = vadd.f32 %v3601, %v3640
    %v3642 = vpop.f32.mrb[0].mxu0
    %v3643 = vpop.f32.mrb[0].mxu0
    %v3644 = vpop.f32.mrb[0].mxu0
    %3645 = vdwg.mxu0
    %3646 = vmatprep.subr.bf16.mxu0 0
    %3647 = vmatpush1.bf16.msra.mxu0 %v2990
    %3648 = vmatprep.subr.bf16.mxu0 0
    %3649 = vmatpush1.bf16.msra.mxu0 %v2991
    %3650 = vmatprep.subr.bf16.mxu0 0
    %3651 = vmatpush1.bf16.msra.mxu0 %v2992
    %3652 = vmatprep.subr.bf16.mxu0 0
    %3653 = vmatpush1.bf16.msra.mxu0 %v2993
    %3654 = vmatprep.subr.bf16.mxu0 0
    %3655 = vmatpush1.bf16.msra.mxu0 %v2994
    %3656 = vmatprep.subr.bf16.mxu0 0
    %3657 = vmatpush1.bf16.msra.mxu0 %v2995
    %3658 = vmatprep.subr.bf16.mxu0 0
    %3659 = vmatpush1.bf16.msra.mxu0 %v2996
    %3660 = vmatprep.subr.bf16.mxu0 0
    %3661 = vmatpush1.bf16.msra.mxu0 %v2997
    %3662 = vmatprep.subr.bf16.mxu0 0
    %3663 = vmatpush1.bf16.msra.mxu0 %v2998
    %3664 = vmatprep.subr.bf16.mxu0 0
    %3665 = vmatpush1.bf16.msra.mxu0 %v2999
    %3666 = vmatprep.subr.bf16.mxu0 0
    %3667 = vmatpush1.bf16.msra.mxu0 %v3000
    %3668 = vmatprep.subr.bf16.mxu0 0
    %3669 = vmatpush1.bf16.msra.mxu0 %v3001
    %3670 = vmatprep.subr.bf16.mxu0 0
    %3671 = vmatpush1.bf16.msra.mxu0 %v3002
    %3672 = vmatprep.subr.bf16.mxu0 0
    %3673 = vmatpush1.bf16.msra.mxu0 %v3003
    %3674 = vmatprep.subr.bf16.mxu0 0
    %3675 = vmatpush1.bf16.msra.mxu0 %v3004
    %3676 = vmatprep.subr.bf16.mxu0 0
    %3677 = vmatpush1.bf16.msra.mxu0 %v3005
    %3678 = vmatprep.mubr.bf16.mxu0 %v1332
    %3679 = vmatmul.mubr.bf16.gmra.mrb[0].mxu0 %v1331
    %v3680 = vpop.f32.mrb[0].mxu0
    %v3681 = vadd.f32 %v3641, %v3680
    %v3682 = vpop.f32.mrb[0].mxu0
    %v3683 = vpop.f32.mrb[0].mxu0
    %v3684 = vpop.f32.mrb[0].mxu0
    %3685 = vdwg.mxu0
    %3686 = vmatprep.subr.bf16.mxu0 0
    %3687 = vmatpush1.bf16.msra.mxu0 %v3006
    %3688 = vmatprep.subr.bf16.mxu0 0
    %3689 = vmatpush1.bf16.msra.mxu0 %v3007
    %3690 = vmatprep.subr.bf16.mxu0 0
    %3691 = vmatpush1.bf16.msra.mxu0 %v3008
    %3692 = vmatprep.subr.bf16.mxu0 0
    %3693 = vmatpush1.bf16.msra.mxu0 %v3009
    %3694 = vmatprep.subr.bf16.mxu0 0
    %3695 = vmatpush1.bf16.msra.mxu0 %v3010
    %3696 = vmatprep.subr.bf16.mxu0 0
    %3697 = vmatpush1.bf16.msra.mxu0 %v3011
    %3698 = vmatprep.subr.bf16.mxu0 0
    %3699 = vmatpush1.bf16.msra.mxu0 %v3012
    %3700 = vmatprep.subr.bf16.mxu0 0
    %3701 = vmatpush1.bf16.msra.mxu0 %v3013
    %3702 = vmatprep.subr.bf16.mxu0 0
    %3703 = vmatpush1.bf16.msra.mxu0 %v3014
    %3704 = vmatprep.subr.bf16.mxu0 0
    %3705 = vmatpush1.bf16.msra.mxu0 %v3015
    %3706 = vmatprep.subr.bf16.mxu0 0
    %3707 = vmatpush1.bf16.msra.mxu0 %v3016
    %3708 = vmatprep.subr.bf16.mxu0 0
    %3709 = vmatpush1.bf16.msra.mxu0 %v3017
    %3710 = vmatprep.subr.bf16.mxu0 0
    %3711 = vmatpush1.bf16.msra.mxu0 %v3018
    %3712 = vmatprep.subr.bf16.mxu0 0
    %3713 = vmatpush1.bf16.msra.mxu0 %v3019
    %3714 = vmatprep.subr.bf16.mxu0 0
    %3715 = vmatpush1.bf16.msra.mxu0 %v3020
    %3716 = vmatprep.subr.bf16.mxu0 0
    %3717 = vmatpush1.bf16.msra.mxu0 %v3021
    %3718 = vmatprep.mubr.bf16.mxu0 %v1334
    %3719 = vmatmul.mubr.bf16.gmra.mrb[0].mxu0 %v1333
    %v3720 = vpop.f32.mrb[0].mxu0
    %v3721 = vadd.f32 %v3681, %v3720
    %v3722 = vpop.f32.mrb[0].mxu0
    %v3723 = vpop.f32.mrb[0].mxu0
    %v3724 = vpop.f32.mrb[0].mxu0
    %3725 = vdwg.mxu0
    %3726 = vmatprep.subr.bf16.mxu0 0
    %3727 = vmatpush1.bf16.msra.mxu0 %v3022
    %3728 = vmatprep.subr.bf16.mxu0 0
    %3729 = vmatpush1.bf16.msra.mxu0 %v3023
    %3730 = vmatprep.subr.bf16.mxu0 0
    %3731 = vmatpush1.bf16.msra.mxu0 %v3024
    %3732 = vmatprep.subr.bf16.mxu0 0
    %3733 = vmatpush1.bf16.msra.mxu0 %v3025
    %3734 = vmatprep.subr.bf16.mxu0 0
    %3735 = vmatpush1.bf16.msra.mxu0 %v3026
    %3736 = vmatprep.subr.bf16.mxu0 0
    %3737 = vmatpush1.bf16.msra.mxu0 %v3027
    %3738 = vmatprep.subr.bf16.mxu0 0
    %3739 = vmatpush1.bf16.msra.mxu0 %v3028
    %3740 = vmatprep.subr.bf16.mxu0 0
    %3741 = vmatpush1.bf16.msra.mxu0 %v3029
    %3742 = vmatprep.subr.bf16.mxu0 0
    %3743 = vmatpush1.bf16.msra.mxu0 %v3030
    %3744 = vmatprep.subr.bf16.mxu0 0
    %3745 = vmatpush1.bf16.msra.mxu0 %v3031
    %3746 = vmatprep.subr.bf16.mxu0 0
    %3747 = vmatpush1.bf16.msra.mxu0 %v3032
    %3748 = vmatprep.subr.bf16.mxu0 0
    %3749 = vmatpush1.bf16.msra.mxu0 %v3033
    %3750 = vmatprep.subr.bf16.mxu0 0
    %3751 = vmatpush1.bf16.msra.mxu0 %v3034
    %3752 = vmatprep.subr.bf16.mxu0 0
    %3753 = vmatpush1.bf16.msra.mxu0 %v3035
    %3754 = vmatprep.subr.bf16.mxu0 0
    %3755 = vmatpush1.bf16.msra.mxu0 %v3036
    %3756 = vmatprep.subr.bf16.mxu0 0
    %3757 = vmatpush1.bf16.msra.mxu0 %v3037
    %3758 = vmatprep.mubr.bf16.mxu0 %v1336
    %3759 = vmatmul.mubr.bf16.gmra.mrb[0].mxu0 %v1335
    %v3760 = vpop.f32.mrb[0].mxu0
    %v3761 = vadd.f32 %v3721, %v3760
    %v3762 = vpop.f32.mrb[0].mxu0
    %v3763 = vpop.f32.mrb[0].mxu0
    %v3764 = vpop.f32.mrb[0].mxu0
    %3765 = vdwg.mxu0
    %3766 = vmatprep.subr.bf16.mxu0 0
    %3767 = vmatpush1.bf16.msra.mxu0 %v3038
    %3768 = vmatprep.subr.bf16.mxu0 0
    %3769 = vmatpush1.bf16.msra.mxu0 %v3039
    %3770 = vmatprep.subr.bf16.mxu0 0
    %3771 = vmatpush1.bf16.msra.mxu0 %v3040
    %3772 = vmatprep.subr.bf16.mxu0 0
    %3773 = vmatpush1.bf16.msra.mxu0 %v3041
    %3774 = vmatprep.subr.bf16.mxu0 0
    %3775 = vmatpush1.bf16.msra.mxu0 %v3042
    %3776 = vmatprep.subr.bf16.mxu0 0
    %3777 = vmatpush1.bf16.msra.mxu0 %v3043
    %3778 = vmatprep.subr.bf16.mxu0 0
    %3779 = vmatpush1.bf16.msra.mxu0 %v3044
    %3780 = vmatprep.subr.bf16.mxu0 0
    %3781 = vmatpush1.bf16.msra.mxu0 %v3045
    %3782 = vmatprep.subr.bf16.mxu0 0
    %3783 = vmatpush1.bf16.msra.mxu0 %v3046
    %3784 = vmatprep.subr.bf16.mxu0 0
    %3785 = vmatpush1.bf16.msra.mxu0 %v3047
    %3786 = vmatprep.subr.bf16.mxu0 0
    %3787 = vmatpush1.bf16.msra.mxu0 %v3048
    %3788 = vmatprep.subr.bf16.mxu0 0
    %3789 = vmatpush1.bf16.msra.mxu0 %v3049
    %3790 = vmatprep.subr.bf16.mxu0 0
    %3791 = vmatpush1.bf16.msra.mxu0 %v3050
    %3792 = vmatprep.subr.bf16.mxu0 0
    %3793 = vmatpush1.bf16.msra.mxu0 %v3051
    %3794 = vmatprep.subr.bf16.mxu0 0
    %3795 = vmatpush1.bf16.msra.mxu0 %v3052
    %3796 = vmatprep.subr.bf16.mxu0 0
    %3797 = vmatpush1.bf16.msra.mxu0 %v3053
    %3798 = vmatprep.mubr.bf16.mxu0 %v1338
    %3799 = vmatmul.mubr.bf16.gmra.mrb[0].mxu0 %v1337
    %v3800 = vpop.f32.mrb[0].mxu0
    %v3801 = vadd.f32 %v3761, %v3800
    %v3802 = vpop.f32.mrb[0].mxu0
    %v3803 = vpop.f32.mrb[0].mxu0
    %v3804 = vpop.f32.mrb[0].mxu0
    %3805 = vdwg.mxu0
    %3806 = vmatprep.subr.bf16.mxu0 0
    %3807 = vmatpush1.bf16.msra.mxu0 %v3054
    %3808 = vmatprep.subr.bf16.mxu0 0
    %3809 = vmatpush1.bf16.msra.mxu0 %v3055
    %3810 = vmatprep.subr.bf16.mxu0 0
    %3811 = vmatpush1.bf16.msra.mxu0 %v3056
    %3812 = vmatprep.subr.bf16.mxu0 0
    %3813 = vmatpush1.bf16.msra.mxu0 %v3057
    %3814 = vmatprep.subr.bf16.mxu0 0
    %3815 = vmatpush1.bf16.msra.mxu0 %v3058
    %3816 = vmatprep.subr.bf16.mxu0 0
    %3817 = vmatpush1.bf16.msra.mxu0 %v3059
    %3818 = vmatprep.subr.bf16.mxu0 0
    %3819 = vmatpush1.bf16.msra.mxu0 %v3060
    %3820 = vmatprep.subr.bf16.mxu0 0
    %3821 = vmatpush1.bf16.msra.mxu0 %v3061
    %3822 = vmatprep.subr.bf16.mxu0 0
    %3823 = vmatpush1.bf16.msra.mxu0 %v3062
    %3824 = vmatprep.subr.bf16.mxu0 0
    %3825 = vmatpush1.bf16.msra.mxu0 %v3063
    %3826 = vmatprep.subr.bf16.mxu0 0
    %3827 = vmatpush1.bf16.msra.mxu0 %v3064
    %3828 = vmatprep.subr.bf16.mxu0 0
    %3829 = vmatpush1.bf16.msra.mxu0 %v3065
    %3830 = vmatprep.subr.bf16.mxu0 0
    %3831 = vmatpush1.bf16.msra.mxu0 %v3066
    %3832 = vmatprep.subr.bf16.mxu0 0
    %3833 = vmatpush1.bf16.msra.mxu0 %v3067
    %3834 = vmatprep.subr.bf16.mxu0 0
    %3835 = vmatpush1.bf16.msra.mxu0 %v3068
    %3836 = vmatprep.subr.bf16.mxu0 0
    %3837 = vmatpush1.bf16.msra.mxu0 %v3069
    %3838 = vmatprep.mubr.bf16.mxu0 %v1340
    %3839 = vmatmul.mubr.bf16.gmra.mrb[0].mxu0 %v1339
    %v3840 = vpop.f32.mrb[0].mxu0
    %v3841 = vadd.f32 %v3801, %v3840
    %v3842 = vpop.f32.mrb[0].mxu0
    %v3843 = vpop.f32.mrb[0].mxu0
    %v3844 = vpop.f32.mrb[0].mxu0
    %3845 = vdwg.mxu0
    %3846 = vmatprep.subr.bf16.mxu0 0
    %3847 = vmatpush1.bf16.msra.mxu0 %v3070
    %3848 = vmatprep.subr.bf16.mxu0 0
    %3849 = vmatpush1.bf16.msra.mxu0 %v3071
    %3850 = vmatprep.subr.bf16.mxu0 0
    %3851 = vmatpush1.bf16.msra.mxu0 %v3072
    %3852 = vmatprep.subr.bf16.mxu0 0
    %3853 = vmatpush1.bf16.msra.mxu0 %v3073
    %3854 = vmatprep.subr.bf16.mxu0 0
    %3855 = vmatpush1.bf16.msra.mxu0 %v3074
    %3856 = vmatprep.subr.bf16.mxu0 0
    %3857 = vmatpush1.bf16.msra.mxu0 %v3075
    %3858 = vmatprep.subr.bf16.mxu0 0
    %3859 = vmatpush1.bf16.msra.mxu0 %v3076
    %3860 = vmatprep.subr.bf16.mxu0 0
    %3861 = vmatpush1.bf16.msra.mxu0 %v3077
    %3862 = vmatprep.subr.bf16.mxu0 0
    %3863 = vmatpush1.bf16.msra.mxu0 %v3078
    %3864 = vmatprep.subr.bf16.mxu0 0
    %3865 = vmatpush1.bf16.msra.mxu0 %v3079
    %3866 = vmatprep.subr.bf16.mxu0 0
    %3867 = vmatpush1.bf16.msra.mxu0 %v3080
    %3868 = vmatprep.subr.bf16.mxu0 0
    %3869 = vmatpush1.bf16.msra.mxu0 %v3081
    %3870 = vmatprep.subr.bf16.mxu0 0
    %3871 = vmatpush1.bf16.msra.mxu0 %v3082
    %3872 = vmatprep.subr.bf16.mxu0 0
    %3873 = vmatpush1.bf16.msra.mxu0 %v3083
    %3874 = vmatprep.subr.bf16.mxu0 0
    %3875 = vmatpush1.bf16.msra.mxu0 %v3084
    %3876 = vmatprep.subr.bf16.mxu0 0
    %3877 = vmatpush1.bf16.msra.mxu0 %v3085
    %3878 = vmatprep.mubr.bf16.mxu0 %v1342
    %3879 = vmatmul.mubr.bf16.gmra.mrb[0].mxu0 %v1341
    %v3880 = vpop.f32.mrb[0].mxu0
    %v3881 = vadd.f32 %v3841, %v3880
    %v3882 = vpop.f32.mrb[0].mxu0
    %v3883 = vpop.f32.mrb[0].mxu0
    %v3884 = vpop.f32.mrb[0].mxu0
    %3885 = vdwg.mxu0
    %3886 = vmatprep.subr.bf16.mxu0 0
    %3887 = vmatpush1.bf16.msra.mxu0 %v3086
    %3888 = vmatprep.subr.bf16.mxu0 0
    %3889 = vmatpush1.bf16.msra.mxu0 %v3087
    %3890 = vmatprep.subr.bf16.mxu0 0
    %3891 = vmatpush1.bf16.msra.mxu0 %v3088
    %3892 = vmatprep.subr.bf16.mxu0 0
    %3893 = vmatpush1.bf16.msra.mxu0 %v3089
    %3894 = vmatprep.subr.bf16.mxu0 0
    %3895 = vmatpush1.bf16.msra.mxu0 %v3090
    %3896 = vmatprep.subr.bf16.mxu0 0
    %3897 = vmatpush1.bf16.msra.mxu0 %v3091
    %3898 = vmatprep.subr.bf16.mxu0 0
    %3899 = vmatpush1.bf16.msra.mxu0 %v3092
    %3900 = vmatprep.subr.bf16.mxu0 0
    %3901 = vmatpush1.bf16.msra.mxu0 %v3093
    %3902 = vmatprep.subr.bf16.mxu0 0
    %3903 = vmatpush1.bf16.msra.mxu0 %v3094
    %3904 = vmatprep.subr.bf16.mxu0 0
    %3905 = vmatpush1.bf16.msra.mxu0 %v3095
    %3906 = vmatprep.subr.bf16.mxu0 0
    %3907 = vmatpush1.bf16.msra.mxu0 %v3096
    %3908 = vmatprep.subr.bf16.mxu0 0
    %3909 = vmatpush1.bf16.msra.mxu0 %v3097
    %3910 = vmatprep.subr.bf16.mxu0 0
    %3911 = vmatpush1.bf16.msra.mxu0 %v3098
    %3912 = vmatprep.subr.bf16.mxu0 0
    %3913 = vmatpush1.bf16.msra.mxu0 %v3099
    %3914 = vmatprep.subr.bf16.mxu0 0
    %3915 = vmatpush1.bf16.msra.mxu0 %v3100
    %3916 = vmatprep.subr.bf16.mxu0 0
    %3917 = vmatpush1.bf16.msra.mxu0 %v3101
    %3918 = vmatprep.mubr.bf16.mxu0 %v1344
    %3919 = vmatmul.mubr.bf16.gmra.mrb[0].mxu0 %v1343
    %v3920 = vpop.f32.mrb[0].mxu0
    %v3921 = vadd.f32 %v3881, %v3920
    %v3922 = vpop.f32.mrb[0].mxu0
    %v3923 = vpop.f32.mrb[0].mxu0
    %v3924 = vpop.f32.mrb[0].mxu0
    %3925 = vdwg.mxu0
    %3926 = vmatprep.subr.bf16.mxu0 0
    %3927 = vmatpush1.bf16.msra.mxu0 %v3102
    %3928 = vmatprep.subr.bf16.mxu0 0
    %3929 = vmatpush1.bf16.msra.mxu0 %v3103
    %3930 = vmatprep.subr.bf16.mxu0 0
    %3931 = vmatpush1.bf16.msra.mxu0 %v3104
    %3932 = vmatprep.subr.bf16.mxu0 0
    %3933 = vmatpush1.bf16.msra.mxu0 %v3105
    %3934 = vmatprep.subr.bf16.mxu0 0
    %3935 = vmatpush1.bf16.msra.mxu0 %v3106
    %3936 = vmatprep.subr.bf16.mxu0 0
    %3937 = vmatpush1.bf16.msra.mxu0 %v3107
    %3938 = vmatprep.subr.bf16.mxu0 0
    %3939 = vmatpush1.bf16.msra.mxu0 %v3108
    %3940 = vmatprep.subr.bf16.mxu0 0
    %3941 = vmatpush1.bf16.msra.mxu0 %v3109
    %3942 = vmatprep.subr.bf16.mxu0 0
    %3943 = vmatpush1.bf16.msra.mxu0 %v3110
    %3944 = vmatprep.subr.bf16.mxu0 0
    %3945 = vmatpush1.bf16.msra.mxu0 %v3111
    %3946 = vmatprep.subr.bf16.mxu0 0
    %3947 = vmatpush1.bf16.msra.mxu0 %v3112
    %3948 = vmatprep.subr.bf16.mxu0 0
    %3949 = vmatpush1.bf16.msra.mxu0 %v3113
    %3950 = vmatprep.subr.bf16.mxu0 0
    %3951 = vmatpush1.bf16.msra.mxu0 %v3114
    %3952 = vmatprep.subr.bf16.mxu0 0
    %3953 = vmatpush1.bf16.msra.mxu0 %v3115
    %3954 = vmatprep.subr.bf16.mxu0 0
    %3955 = vmatpush1.bf16.msra.mxu0 %v3116
    %3956 = vmatprep.subr.bf16.mxu0 0
    %3957 = vmatpush1.bf16.msra.mxu0 %v3117
    %3958 = vmatprep.mubr.bf16.mxu0 %v1346
    %3959 = vmatmul.mubr.bf16.gmra.mrb[0].mxu0 %v1345
    %v3960 = vpop.f32.mrb[0].mxu0
    %v3961 = vadd.f32 %v3921, %v3960
    %v3962 = vpop.f32.mrb[0].mxu0
    %v3963 = vpop.f32.mrb[0].mxu0
    %v3964 = vpop.f32.mrb[0].mxu0
    %3965 = vdwg.mxu0
    %3966 = vmatprep.subr.bf16.mxu0 0
    %3967 = vmatpush1.bf16.msra.mxu0 %v3118
    %3968 = vmatprep.subr.bf16.mxu0 0
    %3969 = vmatpush1.bf16.msra.mxu0 %v3119
    %3970 = vmatprep.subr.bf16.mxu0 0
    %3971 = vmatpush1.bf16.msra.mxu0 %v3120
    %3972 = vmatprep.subr.bf16.mxu0 0
    %3973 = vmatpush1.bf16.msra.mxu0 %v3121
    %3974 = vmatprep.subr.bf16.mxu0 0
    %3975 = vmatpush1.bf16.msra.mxu0 %v3122
    %3976 = vmatprep.subr.bf16.mxu0 0
    %3977 = vmatpush1.bf16.msra.mxu0 %v3123
    %3978 = vmatprep.subr.bf16.mxu0 0
    %3979 = vmatpush1.bf16.msra.mxu0 %v3124
    %3980 = vmatprep.subr.bf16.mxu0 0
    %3981 = vmatpush1.bf16.msra.mxu0 %v3125
    %3982 = vmatprep.subr.bf16.mxu0 0
    %3983 = vmatpush1.bf16.msra.mxu0 %v3126
    %3984 = vmatprep.subr.bf16.mxu0 0
    %3985 = vmatpush1.bf16.msra.mxu0 %v3127
    %3986 = vmatprep.subr.bf16.mxu0 0
    %3987 = vmatpush1.bf16.msra.mxu0 %v3128
    %3988 = vmatprep.subr.bf16.mxu0 0
    %3989 = vmatpush1.bf16.msra.mxu0 %v3129
    %3990 = vmatprep.subr.bf16.mxu0 0
    %3991 = vmatpush1.bf16.msra.mxu0 %v3130
    %3992 = vmatprep.subr.bf16.mxu0 0
    %3993 = vmatpush1.bf16.msra.mxu0 %v3131
    %3994 = vmatprep.subr.bf16.mxu0 0
    %3995 = vmatpush1.bf16.msra.mxu0 %v3132
    %3996 = vmatprep.subr.bf16.mxu0 0
    %3997 = vmatpush1.bf16.msra.mxu0 %v3133
    %3998 = vmatprep.mubr.bf16.mxu0 %v1348
    %3999 = vmatmul.mubr.bf16.gmra.mrb[0].mxu0 %v1347
    %v4000 = vpop.f32.mrb[0].mxu0
    %v4001 = vadd.f32 %v3961, %v4000
    %v4002 = vpop.f32.mrb[0].mxu0
    %v4003 = vpop.f32.mrb[0].mxu0
    %v4004 = vpop.f32.mrb[0].mxu0
    %4005 = vdwg.mxu0
    %4006 = vmatprep.subr.bf16.mxu0 0
    %4007 = vmatpush1.bf16.msra.mxu0 %v3134
    %4008 = vmatprep.subr.bf16.mxu0 0
    %4009 = vmatpush1.bf16.msra.mxu0 %v3135
    %4010 = vmatprep.subr.bf16.mxu0 0
    %4011 = vmatpush1.bf16.msra.mxu0 %v3136
    %4012 = vmatprep.subr.bf16.mxu0 0
    %4013 = vmatpush1.bf16.msra.mxu0 %v3137
    %4014 = vmatprep.subr.bf16.mxu0 0
    %4015 = vmatpush1.bf16.msra.mxu0 %v3138
    %4016 = vmatprep.subr.bf16.mxu0 0
    %4017 = vmatpush1.bf16.msra.mxu0 %v3139
    %4018 = vmatprep.subr.bf16.mxu0 0
    %4019 = vmatpush1.bf16.msra.mxu0 %v3140
    %4020 = vmatprep.subr.bf16.mxu0 0
    %4021 = vmatpush1.bf16.msra.mxu0 %v3141
    %4022 = vmatprep.subr.bf16.mxu0 0
    %4023 = vmatpush1.bf16.msra.mxu0 %v3142
    %4024 = vmatprep.subr.bf16.mxu0 0
    %4025 = vmatpush1.bf16.msra.mxu0 %v3143
    %4026 = vmatprep.subr.bf16.mxu0 0
    %4027 = vmatpush1.bf16.msra.mxu0 %v3144
    %4028 = vmatprep.subr.bf16.mxu0 0
    %4029 = vmatpush1.bf16.msra.mxu0 %v3145
    %4030 = vmatprep.subr.bf16.mxu0 0
    %4031 = vmatpush1.bf16.msra.mxu0 %v3146
    %4032 = vmatprep.subr.bf16.mxu0 0
    %4033 = vmatpush1.bf16.msra.mxu0 %v3147
    %4034 = vmatprep.subr.bf16.mxu0 0
    %4035 = vmatpush1.bf16.msra.mxu0 %v3148
    %4036 = vmatprep.subr.bf16.mxu0 0
    %4037 = vmatpush1.bf16.msra.mxu0 %v3149
    %4038 = vmatprep.mubr.bf16.mxu0 %v1350
    %4039 = vmatmul.mubr.bf16.gmra.mrb[0].mxu0 %v1349
    %v4040 = vpop.f32.mrb[0].mxu0
    %v4041 = vadd.f32 %v4001, %v4040
    %v4042 = vpop.f32.mrb[0].mxu0
    %v4043 = vpop.f32.mrb[0].mxu0
    %v4044 = vpop.f32.mrb[0].mxu0
    %4045 = vdwg.mxu0
    %4046 = vst [vmem:[#allocation10] sm:$0xff] %v4041
    // Predicated region
    $region38: #{tpu_custom_call.1} parent=1 // pred_check
      _
    $region39: #{tpu_custom_call.1} parent=1 // pred_check_branch
      %4048 = sbr.rel (0) target = $region41
    $region40: #{tpu_custom_call.1} parent=1 // pred_region
      %s4050 = ssub.s32 128, 128
      %4051 = vsyncadd [#allocation4], %s4050
      %s4053 = sshll.u32 [#allocation10], 4
      %s4054 = int_to_ptr.vmem [resolvable:$true] %s4053
      %4056 = dma.vmem_to_hbm [thread:$0]  %s4054, 128, %s5, [#allocation4]
    $region41: #{tpu_custom_call.1} parent=1 // pred_fallthru
      _
    // Predicated region
    $region42: #{tpu_custom_call.1} parent=1 // pred_check
      _
    $region43: #{tpu_custom_call.1} parent=1 // pred_check_branch
      %4058 = sbr.rel (0) target = $region45
    $region44: #{tpu_custom_call.1} parent=1 // pred_region
      %4059 = dma.done [#allocation4], 128
    $region45: #{tpu_custom_call.1} parent=1 // pred_fallthru
      _
    %4060 = vsyncpa [#allocation3], 1
    %4061 = vsyncpa [#allocation6], 1
    %4062 = vsyncpa [#allocation9], 1
    %4063 = vsyncpa [#allocation4], 1

</llo_original>
